<compile_context>
chip_gen: v7x
topology: tpu7x:2x2x1
jax: 0.10.0
libtpu: 0.0.40
codegen_flags: <defaults>
</compile_context>

<pallas_src>
import math

import jax
import jax.numpy as jnp
from jax import lax
from jax.experimental import pallas as pl
from jax.experimental.pallas import tpu as pltpu

F32 = jnp.float32
BF16 = jnp.bfloat16


# ----------------------------- in-kernel helpers -----------------------------

def _ln(a, eps=1e-5):
    """F.layer_norm(x, x.shape[1:]) (no affine) over the last two dims of a
    (Bt, R, C) activation.  Two-pass mean/variance (single-pass E[x^2]-E[x]^2
    can catastrophically cancel in f32)."""
    n = a.shape[1] * a.shape[2]
    s = jnp.sum(jnp.sum(a, axis=2, keepdims=True), axis=1, keepdims=True)
    mu = s / n
    d = a - mu
    v = jnp.sum(jnp.sum(d * d, axis=2, keepdims=True), axis=1, keepdims=True) / n
    return d * lax.rsqrt(v + eps)


def _gelu_exact(x):
    """Exact (erf) GELU, matching PyTorch F.gelu default.  erf via the
    Abramowitz-Stegun 7.1.26 polynomial (|err| < 1.5e-7) so only exp (EUP) and
    VPU mul/add/select are emitted."""
    z = x * 0.7071067811865476
    az = jnp.abs(z)
    t = 1.0 / (1.0 + 0.3275911 * az)
    poly = t * (0.254829592 + t * (-0.284496736 + t * (1.421413741
                + t * (-1.453152027 + t * 1.061405429))))
    erf_abs = 1.0 - poly * jnp.exp(-az * az)
    erf = jnp.where(z < 0.0, -erf_abs, erf_abs)
    return 0.5 * x * (1.0 + erf)


def _mha(qkv3, w_o, b_o, num_heads, mask_add):
    """Batched multi-head self-attention.

    qkv3: (Bt, L, 3E) fused Q|K|V activations, f32, Q already scaled by
          1/sqrt(head_dim) (folded into the weights in the wrapper).
    w_o:  (E, E) bf16 output projection; b_o: (1, E) f32.
    Heads: small static Python loop of lane slices, each head batched over Bt
    using the flash-attention dot_general forms.  Returns (Bt*L, E) f32.
    """
    Bt, L, E3 = qkv3.shape
    E = E3 // 3
    hd = E // num_heads
    ctx_heads = []
    for h in range(num_heads):
        q = qkv3[:, :, h * hd:(h + 1) * hd].astype(BF16)
        k = qkv3[:, :, E + h * hd:E + (h + 1) * hd].astype(BF16)
        v = qkv3[:, :, 2 * E + h * hd:2 * E + (h + 1) * hd].astype(BF16)
        s = jnp.einsum('bld,bmd->blm', q, k,
                       preferred_element_type=F32)                # (Bt, L, L)
        if mask_add is not None:
            # NOTE: PyTorch float attn_mask semantics -- the mask values are
            # *added* to the scores (+1.0 on future positions, NOT -inf).
            # Intentionally reproduced for parity; do not "fix" to -inf.
            s = s + mask_add
        s = s - jnp.max(s, axis=-1, keepdims=True)
        p = jnp.exp(s)
        p = p * pl.reciprocal(jnp.sum(p, axis=-1, keepdims=True), approx=False)
        ctx_heads.append(jnp.einsum('blm,bmd->bld', p.astype(BF16), v,
                                    preferred_element_type=F32))  # (Bt, L, hd)
    ctx = jnp.concatenate(ctx_heads, axis=-1)                     # (Bt, L, E)
    ctx2 = ctx.reshape(Bt * L, E).astype(BF16)
    return jnp.dot(ctx2, w_o, preferred_element_type=F32) + b_o   # (Bt*L, E)


# --------------------------------- kernel ------------------------------------

def _make_kernel(num_heads, b_tile, seq_len, model_dim, causal):
    T, D, Bt = seq_len, model_dim, b_tile
    M = Bt * T

    def kernel(x_ref, pos_ref, wi_ref, bi_ref,
               sw_ref, sb_ref, tw_ref, tb_ref,
               wo_ref, bo_ref, out_ref, xs_ref):
        blk = pl.program_id(1)
        nblk = pl.num_programs(1)

        def dot(a, b):  # bf16 MXU operands, f32 accumulation
            return jnp.dot(a.astype(BF16), b, preferred_element_type=F32)

        # ---- first block step: outer LN -> input embed -> LN -> +pos --------
        @pl.when(blk == 0)
        def _():
            xin = _ln(x_ref[...].astype(F32))                      # (Bt,T,Din)
            xin = dot(xin.reshape(M, -1), wi_ref[...]) + bi_ref[...]
            xs_ref[...] = _ln(xin.reshape(Bt, T, D)) + pos_ref[...]

        x3 = xs_ref[...]                                           # (Bt,T,D) f32

        # per-block weight slabs (bf16 weights / f32 biases), streamed by blk
        w_s_qkv = sw_ref[0, :, 0:3 * D]                            # (D, 3D)
        w_s_o = sw_ref[0, :, 3 * D:4 * D]                          # (D, D)
        w_ff = sw_ref[0, :, 4 * D:5 * D]                           # (D, D)
        b_s_qkv = sb_ref[0, :, 0:3 * D]                            # (1, 3D)
        b_s_o = sb_ref[0, :, 3 * D:4 * D]
        b_ff = sb_ref[0, :, 4 * D:5 * D]
        w_t_qkv = tw_ref[0, :, 0:3 * T]                            # (T, 3T)
        w_t_o = tw_ref[0, :, 3 * T:4 * T]                          # (T, T)
        b_t_qkv = tb_ref[0, :, 0:3 * T]
        b_t_o = tb_ref[0, :, 3 * T:4 * T]

        # ---------------- spatial attention (seq = T, embed = D) -------------
        z = _ln(x3)
        qkv = dot(z.reshape(M, D), w_s_qkv) + b_s_qkv              # (M, 3D)
        o = _mha(qkv.reshape(Bt, T, 3 * D), w_s_o, b_s_o, num_heads, None)
        x3 = x3 + o.reshape(Bt, T, D)            # dropout1 = identity (eval)

        # ---------------- temporal attention (seq = D, embed = T) ------------
        # LN over (T, D) is transpose-invariant, so ln(x)^T == ln(x^T): the
        # branch uses one batched minor transpose in and one out, instead of
        # per-batch-element full transposes.
        zT = jnp.swapaxes(_ln(x3), 1, 2)                           # (Bt, D, T)
        qkv_t = dot(zT.reshape(Bt * D, T), w_t_qkv) + b_t_qkv      # (Bt*D, 3T)
        if causal:
            rows = lax.broadcasted_iota(jnp.int32, (D, D), 0)
            cols = lax.broadcasted_iota(jnp.int32, (D, D), 1)
            mask_add = jnp.where(cols > rows, 1.0, 0.0).astype(F32)
        else:
            mask_add = None
        ot = _mha(qkv_t.reshape(Bt, D, 3 * T), w_t_o, b_t_o, num_heads,
                  mask_add)                                        # (Bt*D, T)
        x3 = x3 + jnp.swapaxes(ot.reshape(Bt, D, T), 1, 2)   # dropout2 = id

        # ---------------- feed forward ----------------------------------------
        z = _ln(x3)
        f = dot(z.reshape(M, D), w_ff) + b_ff
        x3 = x3 + _gelu_exact(f).reshape(Bt, T, D)            # dropout3 = id

        # carry the activation to the next block step
        xs_ref[...] = x3

        # ---- last block step: output embedding -------------------------------
        @pl.when(blk == nblk - 1)
        def _():
            y = dot(x3.reshape(M, D), wo_ref[...]) + bo_ref[...]
            # TODO(synk): when D_out < 128, present a lane-dense (Bt, T*D_out)
            # out block to avoid masked partial stores (skipped here to keep
            # the reshape path maximally portable across Mosaic versions).
            out_ref[...] = y.reshape(Bt, T, -1).astype(out_ref.dtype)

    return kernel


# -------------------------------- wrapper -------------------------------------

def st_transformer_forward(x, pos_embed, params, *, num_heads, causal=False):
    B, T, D_in = x.shape
    D = params['wi'].shape[0]
    D_out = params['wo'].shape[0]
    nb = params['sp_iw'].shape[0]
    hd_s = D // num_heads
    hd_t = T // num_heads

    # ---- wrapper-side weight prep (one-time layout plumbing in XLA) ---------
    def prep_attn(iw, ib, ow, ob, E, scale):
        # torch layouts: iw (nb,3E,E), ib (nb,1,3E), ow (nb,E,E), ob (nb,1,E)
        w_qkv = jnp.transpose(iw, (0, 2, 1)).astype(F32)      # (nb, E, 3E)
        col = jnp.concatenate([jnp.full((E,), scale, F32),
                               jnp.ones((2 * E,), F32)])
        w_qkv = w_qkv * col[None, None, :]    # fold 1/sqrt(head_dim) into Q
        b_qkv = ib.astype(F32) * col[None, None, :]
        w_o = jnp.transpose(ow, (0, 2, 1)).astype(F32)
        return w_qkv, b_qkv, w_o, ob.astype(F32)

    sw_qkv, sb_qkv, sw_o, sb_o = prep_attn(
        params['sp_iw'], params['sp_ib'], params['sp_ow'], params['sp_ob'],
        D, 1.0 / math.sqrt(hd_s))
    tw_qkv, tb_qkv, tw_o, tb_o = prep_attn(
        params['tp_iw'], params['tp_ib'], params['tp_ow'], params['tp_ob'],
        T, 1.0 / math.sqrt(hd_t))
    ff_w = jnp.transpose(params['ff_w'], (0, 2, 1)).astype(F32)
    ff_b = params['ff_b'].astype(F32)

    # 4 streamed per-block slabs instead of 18 separate arrays (fewer DMAs,
    # fewer double-buffers).  Weights bf16, biases f32.
    sw_slab = jnp.concatenate([sw_qkv, sw_o, ff_w], axis=2).astype(BF16)  # (nb,D,5D)
    sb_slab = jnp.concatenate([sb_qkv, sb_o, ff_b], axis=2).astype(F32)   # (nb,1,5D)
    tw_slab = jnp.concatenate([tw_qkv, tw_o], axis=2).astype(BF16)        # (nb,T,4T)
    tb_slab = jnp.concatenate([tb_qkv, tb_o], axis=2).astype(F32)         # (nb,1,4T)

    wi = jnp.transpose(params['wi'], (1, 0)).astype(BF16)      # (D_in, D)
    bi = params['bi'].astype(F32)                               # (1, D)
    wo = jnp.transpose(params['wo'], (1, 0)).astype(BF16)       # (D, D_out)
    bo = params['bo'].astype(F32)                               # (1, D_out)
    pos = pos_embed.astype(F32)                                 # (1, T, D)

    # ---- batch tile: MXU fill vs v7x megacore vs VMEM budget ----------------
    bt_cap = max(1, B // 2)                 # keep >=2 batch grid steps (v7x)
    bt_want = min(bt_cap, max(1, -(-256 // T)))     # target Bt*T >= 256 rows
    while bt_want > 1 and bt_want * T * (D_in + D + D_out) * 4 > (8 << 20):
        bt_want -= 1                                         # crude VMEM guard
    b_tile = max(c for c in range(1, bt_want + 1) if B % c == 0)

    grid = (B // b_tile, nb)

    def inv_spec(a):        # grid-invariant, full-array block
        nd = a.ndim
        return pl.BlockSpec(tuple(a.shape), lambda i, blk, _n=nd: (0,) * _n)

    def blk_spec(a):        # per-block stacked (nb, ...) -> stream by blk
        nd = a.ndim
        return pl.BlockSpec((1,) + tuple(a.shape[1:]),
                            lambda i, blk, _n=nd: (blk,) + (0,) * (_n - 1))

    in_specs = [
        pl.BlockSpec((b_tile, T, D_in), lambda i, blk: (i, 0, 0)),   # x
        inv_spec(pos), inv_spec(wi), inv_spec(bi),
        blk_spec(sw_slab), blk_spec(sb_slab),
        blk_spec(tw_slab), blk_spec(tb_slab),
        inv_spec(wo), inv_spec(bo),
    ]
    # TODO(synk): pipeline_mode=pl.Buffered(1) on the invariant specs would
    # halve their VMEM footprint; left at default double-buffering for safety.

    est_vmem = (
        2 * b_tile * T * D_in * 4 + 2 * T * D * 4 +
        2 * (D_in * D * 2 + D * 4) +
        2 * (D * 5 * D * 2 + 5 * D * 4) + 2 * (T * 4 * T * 2 + 4 * T * 4) +
        2 * (D * D_out * 2 + D_out * 4) +
        2 * b_tile * T * D_out * 4 + b_tile * T * D * 4)
    vmem_limit = int(min(48 << 20, max(32 << 20, 2 * est_vmem)))

    kernel = _make_kernel(num_heads, b_tile, T, D, causal)

    return pl.pallas_call(
        kernel,
        out_shape=jax.ShapeDtypeStruct((B, T, D_out), x.dtype),
        grid_spec=pltpu.PrefetchScalarGridSpec(
            num_scalar_prefetch=0,
            grid=grid,
            in_specs=in_specs,
            out_specs=pl.BlockSpec((b_tile, T, D_out), lambda i, blk: (i, 0, 0)),
            scratch_shapes=[pltpu.VMEM((b_tile, T, D), jnp.float32)],
        ),
        compiler_params=pltpu.CompilerParams(
            dimension_semantics=("parallel", "arbitrary"),
            vmem_limit_bytes=vmem_limit),
    )(x, pos, wi, bi, sw_slab, sb_slab, tw_slab, tb_slab, wo, bo)


# ------------------------- pure-JAX reference (check) -------------------------

def reference_forward(x, pos_embed, params, *, num_heads, causal=False):
    def ln(a):
        axes = tuple(range(1, a.ndim))
        mu = jnp.mean(a, axis=axes, keepdims=True)
        var = jnp.mean((a - mu) ** 2, axis=axes, keepdims=True)
        return (a - mu) / jnp.sqrt(var + 1e-5)

    def mha(z, iw, ib, ow, ob, H, mask):
        B, L, E = z.shape
        hd = E // H
        qkv = jnp.einsum('ble,fe->blf', z, iw) + ib.reshape(-1)
        q, k, v = qkv[..., :E], qkv[..., E:2 * E], qkv[..., 2 * E:]
        q = q.reshape(B, L, H, hd).transpose(0, 2, 1, 3)
        k = k.reshape(B, L, H, hd).transpose(0, 2, 1, 3)
        v = v.reshape(B, L, H, hd).transpose(0, 2, 1, 3)
        s = jnp.einsum('bhld,bhmd->bhlm', q, k) / math.sqrt(hd)
        if mask is not None:
            s = s + mask
        p = jax.nn.softmax(s, axis=-1)
        o = jnp.einsum('bhlm,bhmd->bhld', p, v)
        o = o.transpose(0, 2, 1, 3).reshape(B, L, E)
        return jnp.einsum('ble,fe->blf', o, ow) + ob.reshape(-1)

    x = ln(x)
    x = jnp.einsum('btd,ed->bte', x, params['wi']) + params['bi'].reshape(-1)
    x = ln(x)
    x = x + pos_embed
    D = x.shape[2]
    if causal:
        rows = jnp.arange(D)[:, None]
        cols = jnp.arange(D)[None, :]
        mask = jnp.where(cols > rows, 1.0, 0.0)      # additive float mask
    else:
        mask = None
    for i in range(params['sp_iw'].shape[0]):
        z = ln(x)
        z = mha(z, params['sp_iw'][i], params['sp_ib'][i],
                params['sp_ow'][i], params['sp_ob'][i], num_heads, None)
        x = x + z
        xt = jnp.transpose(x, (0, 2, 1))
        z = ln(xt)
        z = mha(z, params['tp_iw'][i], params['tp_ib'][i],
                params['tp_ow'][i], params['tp_ob'][i], num_heads, mask)
        xt = xt + z
        x = jnp.transpose(xt, (0, 2, 1))
        z = ln(x)
        z = jnp.einsum('btd,ed->bte', z, params['ff_w'][i]) + params['ff_b'][i].reshape(-1)
        z = 0.5 * z * (1.0 + jax.lax.erf(z / math.sqrt(2.0)))
        x = x + z
    return jnp.einsum('btd,od->bto', x, params['wo']) + params['bo'].reshape(-1)


# ----------------------------------- main -------------------------------------

if __name__ == "__main__":
    B, T, D_in, D, D_out = 2, 8, 16, 32, 16
    num_heads, num_blocks = 4, 2

    key = jax.random.PRNGKey(0)
    keys = jax.random.split(key, 16)

    def init(k, shape, scale=0.05):
        return (scale * jax.random.normal(k, shape)).astype(jnp.float32)

    params = dict(
        wi=init(keys[0], (D, D_in)),            bi=init(keys[1], (1, D)),
        sp_iw=init(keys[2], (num_blocks, 3 * D, D)),
        sp_ib=init(keys[3], (num_blocks, 1, 3 * D)),
        sp_ow=init(keys[4], (num_blocks, D, D)),
        sp_ob=init(keys[5], (num_blocks, 1, D)),
        tp_iw=init(keys[6], (num_blocks, 3 * T, T)),
        tp_ib=init(keys[7], (num_blocks, 1, 3 * T)),
        tp_ow=init(keys[8], (num_blocks, T, T)),
        tp_ob=init(keys[9], (num_blocks, 1, T)),
        ff_w=init(keys[10], (num_blocks, D, D)),
        ff_b=init(keys[11], (num_blocks, 1, D)),
        wo=init(keys[12], (D_out, D)),          bo=init(keys[13], (1, D_out)),
    )
    x = jax.random.normal(keys[14], (B, T, D_in), dtype=jnp.float32)
    pos_embed = init(keys[15], (1, T, D), scale=0.1)

    for causal in (False, True):
        out = st_transformer_forward(x, pos_embed, params,
                                     num_heads=num_heads, causal=causal)
        out = jax.block_until_ready(out)
        ref = reference_forward(x, pos_embed, params,
                                num_heads=num_heads, causal=causal)
        assert out.shape == (B, T, D_out)
        err = float(jnp.max(jnp.abs(out - ref)))
        # bf16 matmul operands vs an all-f32 reference -> loosened tolerance.
        assert jnp.allclose(out, ref, atol=2e-2, rtol=2e-2), \
            f"causal={causal}: max abs err {err}"

    print("KERNEL_OK")
</pallas_src>

<mosaic_0001>
module attributes {stable_mosaic.version = 11 : i64} {
  func.func @kernel(%arg0: i32, %arg1: i32, %arg2: memref<1x8x16xf32, #tpu.memory_space<vmem>>, %arg3: memref<1x8x32xf32, #tpu.memory_space<vmem>>, %arg4: memref<16x32xbf16, #tpu.memory_space<vmem>>, %arg5: memref<1x32xf32, #tpu.memory_space<vmem>>, %arg6: memref<1x32x160xbf16, #tpu.memory_space<vmem>>, %arg7: memref<1x1x160xf32, #tpu.memory_space<vmem>>, %arg8: memref<1x8x32xbf16, #tpu.memory_space<vmem>>, %arg9: memref<1x1x32xf32, #tpu.memory_space<vmem>>, %arg10: memref<32x16xbf16, #tpu.memory_space<vmem>>, %arg11: memref<1x16xf32, #tpu.memory_space<vmem>>, %arg12: memref<1x8x16xf32, #tpu.memory_space<vmem>>, %arg13: memref<1x8x32xf32, #tpu.memory_space<vmem>>) attributes {dimension_semantics = [#tpu.dimension_semantics<parallel>, #tpu.dimension_semantics<arbitrary>], iteration_bounds = array<i64: 2, 2>, scalar_prefetch = 0 : i64, scratch_operands = 1 : i64, tpu.core_type = #tpu.core_type<tc>, window_params = [{transform_indices = @transform_0, window_bounds = array<i64: 1, 8, 16>}, {pipeline_mode = #tpu.pipeline_mode<synchronous>, transform_indices = @transform_1, window_bounds = array<i64: 1, 8, 32>}, {pipeline_mode = #tpu.pipeline_mode<synchronous>, transform_indices = @transform_2, window_bounds = array<i64: 16, 32>}, {pipeline_mode = #tpu.pipeline_mode<synchronous>, transform_indices = @transform_3, window_bounds = array<i64: 1, 32>}, {transform_indices = @transform_4, window_bounds = array<i64: 1, 32, 160>}, {transform_indices = @transform_5, window_bounds = array<i64: 1, 1, 160>}, {transform_indices = @transform_6, window_bounds = array<i64: 1, 8, 32>}, {transform_indices = @transform_7, window_bounds = array<i64: 1, 1, 32>}, {pipeline_mode = #tpu.pipeline_mode<synchronous>, transform_indices = @transform_8, window_bounds = array<i64: 32, 16>}, {pipeline_mode = #tpu.pipeline_mode<synchronous>, transform_indices = @transform_9, window_bounds = array<i64: 1, 16>}, {transform_indices = @transform_10, window_bounds = array<i64: 1, 8, 16>}]} {
    %c0_i32 = arith.constant 0 : i32
    %0 = arith.cmpi eq, %arg1, %c0_i32 : i32
    %1 = arith.extui %0 : i1 to i32
    %c0_i32_0 = arith.constant 0 : i32
    %2 = arith.cmpi ne, %1, %c0_i32_0 : i32
    scf.if %2 {
      %c0_106 = arith.constant 0 : index
      %c0_107 = arith.constant 0 : index
      %c0_108 = arith.constant 0 : index
      %317 = vector.load %arg2[%c0_106, %c0_107, %c0_108] : memref<1x8x16xf32, #tpu.memory_space<vmem>>, vector<1x8x16xf32>
      %cst_109 = arith.constant dense<0.000000e+00> : vector<1x8xf32>
      %318 = vector.multi_reduction <add>, %317, %cst_109 [2] : vector<1x8x16xf32> to vector<1x8xf32>
      %319 = vector.shape_cast %318 : vector<1x8xf32> to vector<1x8x1xf32>
      %cst_110 = arith.constant dense<0.000000e+00> : vector<1x1xf32>
      %320 = vector.multi_reduction <add>, %319, %cst_110 [1] : vector<1x8x1xf32> to vector<1x1xf32>
      %321 = vector.shape_cast %320 : vector<1x1xf32> to vector<1x1x1xf32>
      %cst_111 = arith.constant 1.280000e+02 : f32
      %322 = vector.broadcast %cst_111 : f32 to vector<1x1x1xf32>
      %323 = arith.divf %321, %322 : vector<1x1x1xf32>
      %324 = vector.broadcast %323 : vector<1x1x1xf32> to vector<1x8x16xf32>
      %325 = arith.subf %317, %324 : vector<1x8x16xf32>
      %326 = arith.mulf %325, %325 : vector<1x8x16xf32>
      %cst_112 = arith.constant dense<0.000000e+00> : vector<1x8xf32>
      %327 = vector.multi_reduction <add>, %326, %cst_112 [2] : vector<1x8x16xf32> to vector<1x8xf32>
      %328 = vector.shape_cast %327 : vector<1x8xf32> to vector<1x8x1xf32>
      %cst_113 = arith.constant dense<0.000000e+00> : vector<1x1xf32>
      %329 = vector.multi_reduction <add>, %328, %cst_113 [1] : vector<1x8x1xf32> to vector<1x1xf32>
      %330 = vector.shape_cast %329 : vector<1x1xf32> to vector<1x1x1xf32>
      %cst_114 = arith.constant 1.280000e+02 : f32
      %331 = vector.broadcast %cst_114 : f32 to vector<1x1x1xf32>
      %332 = arith.divf %330, %331 : vector<1x1x1xf32>
      %cst_115 = arith.constant 9.99999974E-6 : f32
      %333 = vector.broadcast %cst_115 : f32 to vector<1x1x1xf32>
      %334 = arith.addf %332, %333 : vector<1x1x1xf32>
      %335 = math.rsqrt %334 : vector<1x1x1xf32>
      %336 = vector.broadcast %335 : vector<1x1x1xf32> to vector<1x8x16xf32>
      %337 = arith.mulf %325, %336 : vector<1x8x16xf32>
      %338 = vector.shape_cast %337 : vector<1x8x16xf32> to vector<8x16xf32>
      %c0_116 = arith.constant 0 : index
      %c0_117 = arith.constant 0 : index
      %339 = vector.load %arg4[%c0_116, %c0_117] : memref<16x32xbf16, #tpu.memory_space<vmem>>, vector<16x32xbf16>
      %340 = arith.truncf %338 : vector<8x16xf32> to vector<8x16xbf16>
      %cst_118 = arith.constant dense<0.000000e+00> : vector<8x32xf32>
      %341 = tpu.matmul %340, %339, %cst_118 {dimension_numbers = #tpu.dot_dimension_numbers<[1], [0], [0], [1], [0, 0, 1, 1], [], []>} : vector<8x16xbf16>, vector<16x32xbf16>, vector<8x32xf32> -> vector<8x32xf32>
      %c0_119 = arith.constant 0 : index
      %c0_120 = arith.constant 0 : index
      %342 = vector.load %arg5[%c0_119, %c0_120] : memref<1x32xf32, #tpu.memory_space<vmem>>, vector<1x32xf32>
      %343 = vector.broadcast %342 : vector<1x32xf32> to vector<8x32xf32>
      %344 = arith.addf %341, %343 : vector<8x32xf32>
      %345 = vector.shape_cast %344 : vector<8x32xf32> to vector<1x8x32xf32>
      %cst_121 = arith.constant dense<0.000000e+00> : vector<1x8xf32>
      %346 = vector.multi_reduction <add>, %345, %cst_121 [2] : vector<1x8x32xf32> to vector<1x8xf32>
      %347 = vector.shape_cast %346 : vector<1x8xf32> to vector<1x8x1xf32>
      %cst_122 = arith.constant dense<0.000000e+00> : vector<1x1xf32>
      %348 = vector.multi_reduction <add>, %347, %cst_122 [1] : vector<1x8x1xf32> to vector<1x1xf32>
      %349 = vector.shape_cast %348 : vector<1x1xf32> to vector<1x1x1xf32>
      %cst_123 = arith.constant 2.560000e+02 : f32
      %350 = vector.broadcast %cst_123 : f32 to vector<1x1x1xf32>
      %351 = arith.divf %349, %350 : vector<1x1x1xf32>
      %352 = vector.broadcast %351 : vector<1x1x1xf32> to vector<1x8x32xf32>
      %353 = arith.subf %345, %352 : vector<1x8x32xf32>
      %354 = arith.mulf %353, %353 : vector<1x8x32xf32>
      %cst_124 = arith.constant dense<0.000000e+00> : vector<1x8xf32>
      %355 = vector.multi_reduction <add>, %354, %cst_124 [2] : vector<1x8x32xf32> to vector<1x8xf32>
      %356 = vector.shape_cast %355 : vector<1x8xf32> to vector<1x8x1xf32>
      %cst_125 = arith.constant dense<0.000000e+00> : vector<1x1xf32>
      %357 = vector.multi_reduction <add>, %356, %cst_125 [1] : vector<1x8x1xf32> to vector<1x1xf32>
      %358 = vector.shape_cast %357 : vector<1x1xf32> to vector<1x1x1xf32>
      %cst_126 = arith.constant 2.560000e+02 : f32
      %359 = vector.broadcast %cst_126 : f32 to vector<1x1x1xf32>
      %360 = arith.divf %358, %359 : vector<1x1x1xf32>
      %cst_127 = arith.constant 9.99999974E-6 : f32
      %361 = vector.broadcast %cst_127 : f32 to vector<1x1x1xf32>
      %362 = arith.addf %360, %361 : vector<1x1x1xf32>
      %363 = math.rsqrt %362 : vector<1x1x1xf32>
      %364 = vector.broadcast %363 : vector<1x1x1xf32> to vector<1x8x32xf32>
      %365 = arith.mulf %353, %364 : vector<1x8x32xf32>
      %c0_128 = arith.constant 0 : index
      %c0_129 = arith.constant 0 : index
      %c0_130 = arith.constant 0 : index
      %366 = vector.load %arg3[%c0_128, %c0_129, %c0_130] : memref<1x8x32xf32, #tpu.memory_space<vmem>>, vector<1x8x32xf32>
      %367 = arith.addf %365, %366 : vector<1x8x32xf32>
      %c0_131 = arith.constant 0 : index
      %c0_132 = arith.constant 0 : index
      %c0_133 = arith.constant 0 : index
      %368 = vector.load %arg13[%c0_131, %c0_132, %c0_133] : memref<1x8x32xf32, #tpu.memory_space<vmem>>, vector<1x8x32xf32>
      tpu.vector_store %arg13[%c0_131, %c0_132, %c0_133], %367 {strides = array<i32>} : memref<1x8x32xf32, #tpu.memory_space<vmem>>, vector<1x8x32xf32>,
    } else {
    }
    %c0 = arith.constant 0 : index
    %c0_1 = arith.constant 0 : index
    %c0_2 = arith.constant 0 : index
    %3 = vector.load %arg13[%c0, %c0_1, %c0_2] : memref<1x8x32xf32, #tpu.memory_space<vmem>>, vector<1x8x32xf32>
    %c0_3 = arith.constant 0 : index
    %c0_4 = arith.constant 0 : index
    %c0_5 = arith.constant 0 : index
    %4 = vector.load %arg6[%c0_3, %c0_4, %c0_5] : memref<1x32x160xbf16, #tpu.memory_space<vmem>>, vector<1x32x96xbf16>
    %5 = vector.shape_cast %4 : vector<1x32x96xbf16> to vector<32x96xbf16>
    %c0_6 = arith.constant 0 : index
    %c0_7 = arith.constant 0 : index
    %c96 = arith.constant 96 : index
    %6 = vector.load %arg6[%c0_6, %c0_7, %c96] : memref<1x32x160xbf16, #tpu.memory_space<vmem>>, vector<1x32x32xbf16>
    %7 = vector.shape_cast %6 : vector<1x32x32xbf16> to vector<32x32xbf16>
    %c0_8 = arith.constant 0 : index
    %c0_9 = arith.constant 0 : index
    %c128 = arith.constant 128 : index
    %8 = vector.load %arg6[%c0_8, %c0_9, %c128] : memref<1x32x160xbf16, #tpu.memory_space<vmem>>, vector<1x32x32xbf16>
    %9 = vector.shape_cast %8 : vector<1x32x32xbf16> to vector<32x32xbf16>
    %c0_10 = arith.constant 0 : index
    %c0_11 = arith.constant 0 : index
    %c0_12 = arith.constant 0 : index
    %10 = vector.load %arg7[%c0_10, %c0_11, %c0_12] : memref<1x1x160xf32, #tpu.memory_space<vmem>>, vector<1x1x96xf32>
    %11 = vector.shape_cast %10 : vector<1x1x96xf32> to vector<1x96xf32>
    %c0_13 = arith.constant 0 : index
    %c0_14 = arith.constant 0 : index
    %c96_15 = arith.constant 96 : index
    %12 = vector.load %arg7[%c0_13, %c0_14, %c96_15] : memref<1x1x160xf32, #tpu.memory_space<vmem>>, vector<1x1x32xf32>
    %13 = vector.shape_cast %12 : vector<1x1x32xf32> to vector<1x32xf32>
    %c0_16 = arith.constant 0 : index
    %c0_17 = arith.constant 0 : index
    %c128_18 = arith.constant 128 : index
    %14 = vector.load %arg7[%c0_16, %c0_17, %c128_18] : memref<1x1x160xf32, #tpu.memory_space<vmem>>, vector<1x1x32xf32>
    %15 = vector.shape_cast %14 : vector<1x1x32xf32> to vector<1x32xf32>
    %c0_19 = arith.constant 0 : index
    %c0_20 = arith.constant 0 : index
    %c0_21 = arith.constant 0 : index
    %16 = vector.load %arg8[%c0_19, %c0_20, %c0_21] : memref<1x8x32xbf16, #tpu.memory_space<vmem>>, vector<1x8x24xbf16>
    %17 = vector.shape_cast %16 : vector<1x8x24xbf16> to vector<8x24xbf16>
    %c0_22 = arith.constant 0 : index
    %c0_23 = arith.constant 0 : index
    %c24 = arith.constant 24 : index
    %18 = vector.load %arg8[%c0_22, %c0_23, %c24] : memref<1x8x32xbf16, #tpu.memory_space<vmem>>, vector<1x8x8xbf16>
    %19 = vector.shape_cast %18 : vector<1x8x8xbf16> to vector<8x8xbf16>
    %c0_24 = arith.constant 0 : index
    %c0_25 = arith.constant 0 : index
    %c0_26 = arith.constant 0 : index
    %20 = vector.load %arg9[%c0_24, %c0_25, %c0_26] : memref<1x1x32xf32, #tpu.memory_space<vmem>>, vector<1x1x24xf32>
    %21 = vector.shape_cast %20 : vector<1x1x24xf32> to vector<1x24xf32>
    %c0_27 = arith.constant 0 : index
    %c0_28 = arith.constant 0 : index
    %c24_29 = arith.constant 24 : index
    %22 = vector.load %arg9[%c0_27, %c0_28, %c24_29] : memref<1x1x32xf32, #tpu.memory_space<vmem>>, vector<1x1x8xf32>
    %23 = vector.shape_cast %22 : vector<1x1x8xf32> to vector<1x8xf32>
    %cst = arith.constant dense<0.000000e+00> : vector<1x8xf32>
    %24 = vector.multi_reduction <add>, %3, %cst [2] : vector<1x8x32xf32> to vector<1x8xf32>
    %25 = vector.shape_cast %24 : vector<1x8xf32> to vector<1x8x1xf32>
    %cst_30 = arith.constant dense<0.000000e+00> : vector<1x1xf32>
    %26 = vector.multi_reduction <add>, %25, %cst_30 [1] : vector<1x8x1xf32> to vector<1x1xf32>
    %27 = vector.shape_cast %26 : vector<1x1xf32> to vector<1x1x1xf32>
    %cst_31 = arith.constant 2.560000e+02 : f32
    %28 = vector.broadcast %cst_31 : f32 to vector<1x1x1xf32>
    %29 = arith.divf %27, %28 : vector<1x1x1xf32>
    %30 = vector.broadcast %29 : vector<1x1x1xf32> to vector<1x8x32xf32>
    %31 = arith.subf %3, %30 : vector<1x8x32xf32>
    %32 = arith.mulf %31, %31 : vector<1x8x32xf32>
    %cst_32 = arith.constant dense<0.000000e+00> : vector<1x8xf32>
    %33 = vector.multi_reduction <add>, %32, %cst_32 [2] : vector<1x8x32xf32> to vector<1x8xf32>
    %34 = vector.shape_cast %33 : vector<1x8xf32> to vector<1x8x1xf32>
    %cst_33 = arith.constant dense<0.000000e+00> : vector<1x1xf32>
    %35 = vector.multi_reduction <add>, %34, %cst_33 [1] : vector<1x8x1xf32> to vector<1x1xf32>
    %36 = vector.shape_cast %35 : vector<1x1xf32> to vector<1x1x1xf32>
    %cst_34 = arith.constant 2.560000e+02 : f32
    %37 = vector.broadcast %cst_34 : f32 to vector<1x1x1xf32>
    %38 = arith.divf %36, %37 : vector<1x1x1xf32>
    %cst_35 = arith.constant 9.99999974E-6 : f32
    %39 = vector.broadcast %cst_35 : f32 to vector<1x1x1xf32>
    %40 = arith.addf %38, %39 : vector<1x1x1xf32>
    %41 = math.rsqrt %40 : vector<1x1x1xf32>
    %42 = vector.broadcast %41 : vector<1x1x1xf32> to vector<1x8x32xf32>
    %43 = arith.mulf %31, %42 : vector<1x8x32xf32>
    %44 = vector.shape_cast %43 : vector<1x8x32xf32> to vector<8x32xf32>
    %45 = arith.truncf %44 : vector<8x32xf32> to vector<8x32xbf16>
    %cst_36 = arith.constant dense<0.000000e+00> : vector<8x96xf32>
    %46 = tpu.matmul %45, %5, %cst_36 {dimension_numbers = #tpu.dot_dimension_numbers<[1], [0], [0], [1], [0, 0, 1, 1], [], []>} : vector<8x32xbf16>, vector<32x96xbf16>, vector<8x96xf32> -> vector<8x96xf32>
    %47 = vector.broadcast %11 : vector<1x96xf32> to vector<8x96xf32>
    %48 = arith.addf %46, %47 : vector<8x96xf32>
    %49 = vector.shape_cast %48 : vector<8x96xf32> to vector<1x8x96xf32>
    %50 = vector.extract_strided_slice %49 {offsets = [0, 0, 0], sizes = [1, 8, 8], strides = [1, 1, 1]} : vector<1x8x96xf32> to vector<1x8x8xf32>
    %51 = arith.truncf %50 : vector<1x8x8xf32> to vector<1x8x8xbf16>
    %52 = vector.extract_strided_slice %49 {offsets = [0, 0, 32], sizes = [1, 8, 8], strides = [1, 1, 1]} : vector<1x8x96xf32> to vector<1x8x8xf32>
    %53 = arith.truncf %52 : vector<1x8x8xf32> to vector<1x8x8xbf16>
    %54 = vector.extract_strided_slice %49 {offsets = [0, 0, 64], sizes = [1, 8, 8], strides = [1, 1, 1]} : vector<1x8x96xf32> to vector<1x8x8xf32>
    %55 = arith.truncf %54 : vector<1x8x8xf32> to vector<1x8x8xbf16>
    "tpu.trace_start"() <{level = 10 : i32, message = "bld,bmd->blm"}> : () -> ()
    %cst_37 = arith.constant dense<0.000000e+00> : vector<1x8x8xf32>
    %56 = tpu.matmul %51, %53, %cst_37 {dimension_numbers = #tpu.dot_dimension_numbers<[2], [2], [1], [1], [0, 0, 0, 1, 1, 1], [0], [0]>} : vector<1x8x8xbf16>, vector<1x8x8xbf16>, vector<1x8x8xf32> -> vector<1x8x8xf32>
    "tpu.trace_stop"() : () -> ()
    %cst_38 = arith.constant dense<0xFF800000> : vector<1x8xf32>
    %57 = vector.multi_reduction <maximumf>, %56, %cst_38 [2] : vector<1x8x8xf32> to vector<1x8xf32>
    %58 = vector.shape_cast %57 : vector<1x8xf32> to vector<1x8x1xf32>
    %59 = vector.broadcast %58 : vector<1x8x1xf32> to vector<1x8x8xf32>
    %60 = arith.subf %56, %59 : vector<1x8x8xf32>
    %61 = math.exp %60 : vector<1x8x8xf32>
    %cst_39 = arith.constant dense<0.000000e+00> : vector<1x8xf32>
    %62 = vector.multi_reduction <add>, %61, %cst_39 [2] : vector<1x8x8xf32> to vector<1x8xf32>
    %63 = vector.shape_cast %62 : vector<1x8xf32> to vector<1x8x1xf32>
    %64 = tpu.reciprocal %63 : vector<1x8x1xf32> -> vector<1x8x1xf32>
    %65 = vector.broadcast %64 : vector<1x8x1xf32> to vector<1x8x8xf32>
    %66 = arith.mulf %61, %65 : vector<1x8x8xf32>
    %67 = arith.truncf %66 : vector<1x8x8xf32> to vector<1x8x8xbf16>
    "tpu.trace_start"() <{level = 10 : i32, message = "blm,bmd->bld"}> : () -> ()
    %cst_40 = arith.constant dense<0.000000e+00> : vector<1x8x8xf32>
    %68 = tpu.matmul %67, %55, %cst_40 {dimension_numbers = #tpu.dot_dimension_numbers<[2], [1], [1], [2], [0, 0, 0, 1, 1, 2], [0], [0]>} : vector<1x8x8xbf16>, vector<1x8x8xbf16>, vector<1x8x8xf32> -> vector<1x8x8xf32>
    "tpu.trace_stop"() : () -> ()
    %69 = vector.extract_strided_slice %49 {offsets = [0, 0, 8], sizes = [1, 8, 8], strides = [1, 1, 1]} : vector<1x8x96xf32> to vector<1x8x8xf32>
    %70 = arith.truncf %69 : vector<1x8x8xf32> to vector<1x8x8xbf16>
    %71 = vector.extract_strided_slice %49 {offsets = [0, 0, 40], sizes = [1, 8, 8], strides = [1, 1, 1]} : vector<1x8x96xf32> to vector<1x8x8xf32>
    %72 = arith.truncf %71 : vector<1x8x8xf32> to vector<1x8x8xbf16>
    %73 = vector.extract_strided_slice %49 {offsets = [0, 0, 72], sizes = [1, 8, 8], strides = [1, 1, 1]} : vector<1x8x96xf32> to vector<1x8x8xf32>
    %74 = arith.truncf %73 : vector<1x8x8xf32> to vector<1x8x8xbf16>
    "tpu.trace_start"() <{level = 10 : i32, message = "bld,bmd->blm"}> : () -> ()
    %cst_41 = arith.constant dense<0.000000e+00> : vector<1x8x8xf32>
    %75 = tpu.matmul %70, %72, %cst_41 {dimension_numbers = #tpu.dot_dimension_numbers<[2], [2], [1], [1], [0, 0, 0, 1, 1, 1], [0], [0]>} : vector<1x8x8xbf16>, vector<1x8x8xbf16>, vector<1x8x8xf32> -> vector<1x8x8xf32>
    "tpu.trace_stop"() : () -> ()
    %cst_42 = arith.constant dense<0xFF800000> : vector<1x8xf32>
    %76 = vector.multi_reduction <maximumf>, %75, %cst_42 [2] : vector<1x8x8xf32> to vector<1x8xf32>
    %77 = vector.shape_cast %76 : vector<1x8xf32> to vector<1x8x1xf32>
    %78 = vector.broadcast %77 : vector<1x8x1xf32> to vector<1x8x8xf32>
    %79 = arith.subf %75, %78 : vector<1x8x8xf32>
    %80 = math.exp %79 : vector<1x8x8xf32>
    %cst_43 = arith.constant dense<0.000000e+00> : vector<1x8xf32>
    %81 = vector.multi_reduction <add>, %80, %cst_43 [2] : vector<1x8x8xf32> to vector<1x8xf32>
    %82 = vector.shape_cast %81 : vector<1x8xf32> to vector<1x8x1xf32>
    %83 = tpu.reciprocal %82 : vector<1x8x1xf32> -> vector<1x8x1xf32>
    %84 = vector.broadcast %83 : vector<1x8x1xf32> to vector<1x8x8xf32>
    %85 = arith.mulf %80, %84 : vector<1x8x8xf32>
    %86 = arith.truncf %85 : vector<1x8x8xf32> to vector<1x8x8xbf16>
    "tpu.trace_start"() <{level = 10 : i32, message = "blm,bmd->bld"}> : () -> ()
    %cst_44 = arith.constant dense<0.000000e+00> : vector<1x8x8xf32>
    %87 = tpu.matmul %86, %74, %cst_44 {dimension_numbers = #tpu.dot_dimension_numbers<[2], [1], [1], [2], [0, 0, 0, 1, 1, 2], [0], [0]>} : vector<1x8x8xbf16>, vector<1x8x8xbf16>, vector<1x8x8xf32> -> vector<1x8x8xf32>
    "tpu.trace_stop"() : () -> ()
    %88 = vector.extract_strided_slice %49 {offsets = [0, 0, 16], sizes = [1, 8, 8], strides = [1, 1, 1]} : vector<1x8x96xf32> to vector<1x8x8xf32>
    %89 = arith.truncf %88 : vector<1x8x8xf32> to vector<1x8x8xbf16>
    %90 = vector.extract_strided_slice %49 {offsets = [0, 0, 48], sizes = [1, 8, 8], strides = [1, 1, 1]} : vector<1x8x96xf32> to vector<1x8x8xf32>
    %91 = arith.truncf %90 : vector<1x8x8xf32> to vector<1x8x8xbf16>
    %92 = vector.extract_strided_slice %49 {offsets = [0, 0, 80], sizes = [1, 8, 8], strides = [1, 1, 1]} : vector<1x8x96xf32> to vector<1x8x8xf32>
    %93 = arith.truncf %92 : vector<1x8x8xf32> to vector<1x8x8xbf16>
    "tpu.trace_start"() <{level = 10 : i32, message = "bld,bmd->blm"}> : () -> ()
    %cst_45 = arith.constant dense<0.000000e+00> : vector<1x8x8xf32>
    %94 = tpu.matmul %89, %91, %cst_45 {dimension_numbers = #tpu.dot_dimension_numbers<[2], [2], [1], [1], [0, 0, 0, 1, 1, 1], [0], [0]>} : vector<1x8x8xbf16>, vector<1x8x8xbf16>, vector<1x8x8xf32> -> vector<1x8x8xf32>
    "tpu.trace_stop"() : () -> ()
    %cst_46 = arith.constant dense<0xFF800000> : vector<1x8xf32>
    %95 = vector.multi_reduction <maximumf>, %94, %cst_46 [2] : vector<1x8x8xf32> to vector<1x8xf32>
    %96 = vector.shape_cast %95 : vector<1x8xf32> to vector<1x8x1xf32>
    %97 = vector.broadcast %96 : vector<1x8x1xf32> to vector<1x8x8xf32>
    %98 = arith.subf %94, %97 : vector<1x8x8xf32>
    %99 = math.exp %98 : vector<1x8x8xf32>
    %cst_47 = arith.constant dense<0.000000e+00> : vector<1x8xf32>
    %100 = vector.multi_reduction <add>, %99, %cst_47 [2] : vector<1x8x8xf32> to vector<1x8xf32>
    %101 = vector.shape_cast %100 : vector<1x8xf32> to vector<1x8x1xf32>
    %102 = tpu.reciprocal %101 : vector<1x8x1xf32> -> vector<1x8x1xf32>
    %103 = vector.broadcast %102 : vector<1x8x1xf32> to vector<1x8x8xf32>
    %104 = arith.mulf %99, %103 : vector<1x8x8xf32>
    %105 = arith.truncf %104 : vector<1x8x8xf32> to vector<1x8x8xbf16>
    "tpu.trace_start"() <{level = 10 : i32, message = "blm,bmd->bld"}> : () -> ()
    %cst_48 = arith.constant dense<0.000000e+00> : vector<1x8x8xf32>
    %106 = tpu.matmul %105, %93, %cst_48 {dimension_numbers = #tpu.dot_dimension_numbers<[2], [1], [1], [2], [0, 0, 0, 1, 1, 2], [0], [0]>} : vector<1x8x8xbf16>, vector<1x8x8xbf16>, vector<1x8x8xf32> -> vector<1x8x8xf32>
    "tpu.trace_stop"() : () -> ()
    %107 = vector.extract_strided_slice %49 {offsets = [0, 0, 24], sizes = [1, 8, 8], strides = [1, 1, 1]} : vector<1x8x96xf32> to vector<1x8x8xf32>
    %108 = arith.truncf %107 : vector<1x8x8xf32> to vector<1x8x8xbf16>
    %109 = vector.extract_strided_slice %49 {offsets = [0, 0, 56], sizes = [1, 8, 8], strides = [1, 1, 1]} : vector<1x8x96xf32> to vector<1x8x8xf32>
    %110 = arith.truncf %109 : vector<1x8x8xf32> to vector<1x8x8xbf16>
    %111 = vector.extract_strided_slice %49 {offsets = [0, 0, 88], sizes = [1, 8, 8], strides = [1, 1, 1]} : vector<1x8x96xf32> to vector<1x8x8xf32>
    %112 = arith.truncf %111 : vector<1x8x8xf32> to vector<1x8x8xbf16>
    "tpu.trace_start"() <{level = 10 : i32, message = "bld,bmd->blm"}> : () -> ()
    %cst_49 = arith.constant dense<0.000000e+00> : vector<1x8x8xf32>
    %113 = tpu.matmul %108, %110, %cst_49 {dimension_numbers = #tpu.dot_dimension_numbers<[2], [2], [1], [1], [0, 0, 0, 1, 1, 1], [0], [0]>} : vector<1x8x8xbf16>, vector<1x8x8xbf16>, vector<1x8x8xf32> -> vector<1x8x8xf32>
    "tpu.trace_stop"() : () -> ()
    %cst_50 = arith.constant dense<0xFF800000> : vector<1x8xf32>
    %114 = vector.multi_reduction <maximumf>, %113, %cst_50 [2] : vector<1x8x8xf32> to vector<1x8xf32>
    %115 = vector.shape_cast %114 : vector<1x8xf32> to vector<1x8x1xf32>
    %116 = vector.broadcast %115 : vector<1x8x1xf32> to vector<1x8x8xf32>
    %117 = arith.subf %113, %116 : vector<1x8x8xf32>
    %118 = math.exp %117 : vector<1x8x8xf32>
    %cst_51 = arith.constant dense<0.000000e+00> : vector<1x8xf32>
    %119 = vector.multi_reduction <add>, %118, %cst_51 [2] : vector<1x8x8xf32> to vector<1x8xf32>
    %120 = vector.shape_cast %119 : vector<1x8xf32> to vector<1x8x1xf32>
    %121 = tpu.reciprocal %120 : vector<1x8x1xf32> -> vector<1x8x1xf32>
    %122 = vector.broadcast %121 : vector<1x8x1xf32> to vector<1x8x8xf32>
    %123 = arith.mulf %118, %122 : vector<1x8x8xf32>
    %124 = arith.truncf %123 : vector<1x8x8xf32> to vector<1x8x8xbf16>
    "tpu.trace_start"() <{level = 10 : i32, message = "blm,bmd->bld"}> : () -> ()
    %cst_52 = arith.constant dense<0.000000e+00> : vector<1x8x8xf32>
    %125 = tpu.matmul %124, %112, %cst_52 {dimension_numbers = #tpu.dot_dimension_numbers<[2], [1], [1], [2], [0, 0, 0, 1, 1, 2], [0], [0]>} : vector<1x8x8xbf16>, vector<1x8x8xbf16>, vector<1x8x8xf32> -> vector<1x8x8xf32>
    "tpu.trace_stop"() : () -> ()
    %126 = tpu.concatenate %68, %87, %106, %125 in 2 : vector<1x8x8xf32>, vector<1x8x8xf32>, vector<1x8x8xf32>, vector<1x8x8xf32> -> vector<1x8x32xf32>
    %127 = vector.shape_cast %126 : vector<1x8x32xf32> to vector<8x32xf32>
    %128 = arith.truncf %127 : vector<8x32xf32> to vector<8x32xbf16>
    %cst_53 = arith.constant dense<0.000000e+00> : vector<8x32xf32>
    %129 = tpu.matmul %128, %7, %cst_53 {dimension_numbers = #tpu.dot_dimension_numbers<[1], [0], [0], [1], [0, 0, 1, 1], [], []>} : vector<8x32xbf16>, vector<32x32xbf16>, vector<8x32xf32> -> vector<8x32xf32>
    %130 = vector.broadcast %13 : vector<1x32xf32> to vector<8x32xf32>
    %131 = arith.addf %129, %130 : vector<8x32xf32>
    %132 = vector.shape_cast %131 : vector<8x32xf32> to vector<1x8x32xf32>
    %133 = arith.addf %3, %132 : vector<1x8x32xf32>
    %cst_54 = arith.constant dense<0.000000e+00> : vector<1x8xf32>
    %134 = vector.multi_reduction <add>, %133, %cst_54 [2] : vector<1x8x32xf32> to vector<1x8xf32>
    %135 = vector.shape_cast %134 : vector<1x8xf32> to vector<1x8x1xf32>
    %cst_55 = arith.constant dense<0.000000e+00> : vector<1x1xf32>
    %136 = vector.multi_reduction <add>, %135, %cst_55 [1] : vector<1x8x1xf32> to vector<1x1xf32>
    %137 = vector.shape_cast %136 : vector<1x1xf32> to vector<1x1x1xf32>
    %cst_56 = arith.constant 2.560000e+02 : f32
    %138 = vector.broadcast %cst_56 : f32 to vector<1x1x1xf32>
    %139 = arith.divf %137, %138 : vector<1x1x1xf32>
    %140 = vector.broadcast %139 : vector<1x1x1xf32> to vector<1x8x32xf32>
    %141 = arith.subf %133, %140 : vector<1x8x32xf32>
    %142 = arith.mulf %141, %141 : vector<1x8x32xf32>
    %cst_57 = arith.constant dense<0.000000e+00> : vector<1x8xf32>
    %143 = vector.multi_reduction <add>, %142, %cst_57 [2] : vector<1x8x32xf32> to vector<1x8xf32>
    %144 = vector.shape_cast %143 : vector<1x8xf32> to vector<1x8x1xf32>
    %cst_58 = arith.constant dense<0.000000e+00> : vector<1x1xf32>
    %145 = vector.multi_reduction <add>, %144, %cst_58 [1] : vector<1x8x1xf32> to vector<1x1xf32>
    %146 = vector.shape_cast %145 : vector<1x1xf32> to vector<1x1x1xf32>
    %cst_59 = arith.constant 2.560000e+02 : f32
    %147 = vector.broadcast %cst_59 : f32 to vector<1x1x1xf32>
    %148 = arith.divf %146, %147 : vector<1x1x1xf32>
    %cst_60 = arith.constant 9.99999974E-6 : f32
    %149 = vector.broadcast %cst_60 : f32 to vector<1x1x1xf32>
    %150 = arith.addf %148, %149 : vector<1x1x1xf32>
    %151 = math.rsqrt %150 : vector<1x1x1xf32>
    %152 = vector.broadcast %151 : vector<1x1x1xf32> to vector<1x8x32xf32>
    %153 = arith.mulf %141, %152 : vector<1x8x32xf32>
    %154 = tpu.transpose %153, [0, 2, 1] : vector<1x8x32xf32> -> vector<1x32x8xf32>
    %155 = vector.shape_cast %154 : vector<1x32x8xf32> to vector<32x8xf32>
    %156 = arith.truncf %155 : vector<32x8xf32> to vector<32x8xbf16>
    %cst_61 = arith.constant dense<0.000000e+00> : vector<32x24xf32>
    %157 = tpu.matmul %156, %17, %cst_61 {dimension_numbers = #tpu.dot_dimension_numbers<[1], [0], [0], [1], [0, 0, 1, 1], [], []>} : vector<32x8xbf16>, vector<8x24xbf16>, vector<32x24xf32> -> vector<32x24xf32>
    %158 = vector.broadcast %21 : vector<1x24xf32> to vector<32x24xf32>
    %159 = arith.addf %157, %158 : vector<32x24xf32>
    %160 = vector.shape_cast %159 : vector<32x24xf32> to vector<1x32x24xf32>
    %161 = vector.extract_strided_slice %160 {offsets = [0, 0, 0], sizes = [1, 32, 2], strides = [1, 1, 1]} : vector<1x32x24xf32> to vector<1x32x2xf32>
    %162 = arith.truncf %161 : vector<1x32x2xf32> to vector<1x32x2xbf16>
    %163 = vector.extract_strided_slice %160 {offsets = [0, 0, 8], sizes = [1, 32, 2], strides = [1, 1, 1]} : vector<1x32x24xf32> to vector<1x32x2xf32>
    %164 = arith.truncf %163 : vector<1x32x2xf32> to vector<1x32x2xbf16>
    %165 = vector.extract_strided_slice %160 {offsets = [0, 0, 16], sizes = [1, 32, 2], strides = [1, 1, 1]} : vector<1x32x24xf32> to vector<1x32x2xf32>
    %166 = arith.truncf %165 : vector<1x32x2xf32> to vector<1x32x2xbf16>
    "tpu.trace_start"() <{level = 10 : i32, message = "bld,bmd->blm"}> : () -> ()
    %cst_62 = arith.constant dense<0.000000e+00> : vector<1x32x32xf32>
    %167 = tpu.matmul %162, %164, %cst_62 {dimension_numbers = #tpu.dot_dimension_numbers<[2], [2], [1], [1], [0, 0, 0, 1, 1, 1], [0], [0]>} : vector<1x32x2xbf16>, vector<1x32x2xbf16>, vector<1x32x32xf32> -> vector<1x32x32xf32>
    "tpu.trace_stop"() : () -> ()
    %cst_63 = arith.constant dense<0xFF800000> : vector<1x32xf32>
    %168 = vector.multi_reduction <maximumf>, %167, %cst_63 [2] : vector<1x32x32xf32> to vector<1x32xf32>
    %169 = vector.shape_cast %168 : vector<1x32xf32> to vector<1x32x1xf32>
    %170 = vector.broadcast %169 : vector<1x32x1xf32> to vector<1x32x32xf32>
    %171 = arith.subf %167, %170 : vector<1x32x32xf32>
    %172 = math.exp %171 : vector<1x32x32xf32>
    %cst_64 = arith.constant dense<0.000000e+00> : vector<1x32xf32>
    %173 = vector.multi_reduction <add>, %172, %cst_64 [2] : vector<1x32x32xf32> to vector<1x32xf32>
    %174 = vector.shape_cast %173 : vector<1x32xf32> to vector<1x32x1xf32>
    %175 = tpu.reciprocal %174 : vector<1x32x1xf32> -> vector<1x32x1xf32>
    %176 = vector.broadcast %175 : vector<1x32x1xf32> to vector<1x32x32xf32>
    %177 = arith.mulf %172, %176 : vector<1x32x32xf32>
    %178 = arith.truncf %177 : vector<1x32x32xf32> to vector<1x32x32xbf16>
    "tpu.trace_start"() <{level = 10 : i32, message = "blm,bmd->bld"}> : () -> ()
    %cst_65 = arith.constant dense<0.000000e+00> : vector<1x32x2xf32>
    %179 = tpu.matmul %178, %166, %cst_65 {dimension_numbers = #tpu.dot_dimension_numbers<[2], [1], [1], [2], [0, 0, 0, 1, 1, 2], [0], [0]>} : vector<1x32x32xbf16>, vector<1x32x2xbf16>, vector<1x32x2xf32> -> vector<1x32x2xf32>
    "tpu.trace_stop"() : () -> ()
    %180 = vector.extract_strided_slice %160 {offsets = [0, 0, 2], sizes = [1, 32, 2], strides = [1, 1, 1]} : vector<1x32x24xf32> to vector<1x32x2xf32>
    %181 = arith.truncf %180 : vector<1x32x2xf32> to vector<1x32x2xbf16>
    %182 = vector.extract_strided_slice %160 {offsets = [0, 0, 10], sizes = [1, 32, 2], strides = [1, 1, 1]} : vector<1x32x24xf32> to vector<1x32x2xf32>
    %183 = arith.truncf %182 : vector<1x32x2xf32> to vector<1x32x2xbf16>
    %184 = vector.extract_strided_slice %160 {offsets = [0, 0, 18], sizes = [1, 32, 2], strides = [1, 1, 1]} : vector<1x32x24xf32> to vector<1x32x2xf32>
    %185 = arith.truncf %184 : vector<1x32x2xf32> to vector<1x32x2xbf16>
    "tpu.trace_start"() <{level = 10 : i32, message = "bld,bmd->blm"}> : () -> ()
    %cst_66 = arith.constant dense<0.000000e+00> : vector<1x32x32xf32>
    %186 = tpu.matmul %181, %183, %cst_66 {dimension_numbers = #tpu.dot_dimension_numbers<[2], [2], [1], [1], [0, 0, 0, 1, 1, 1], [0], [0]>} : vector<1x32x2xbf16>, vector<1x32x2xbf16>, vector<1x32x32xf32> -> vector<1x32x32xf32>
    "tpu.trace_stop"() : () -> ()
    %cst_67 = arith.constant dense<0xFF800000> : vector<1x32xf32>
    %187 = vector.multi_reduction <maximumf>, %186, %cst_67 [2] : vector<1x32x32xf32> to vector<1x32xf32>
    %188 = vector.shape_cast %187 : vector<1x32xf32> to vector<1x32x1xf32>
    %189 = vector.broadcast %188 : vector<1x32x1xf32> to vector<1x32x32xf32>
    %190 = arith.subf %186, %189 : vector<1x32x32xf32>
    %191 = math.exp %190 : vector<1x32x32xf32>
    %cst_68 = arith.constant dense<0.000000e+00> : vector<1x32xf32>
    %192 = vector.multi_reduction <add>, %191, %cst_68 [2] : vector<1x32x32xf32> to vector<1x32xf32>
    %193 = vector.shape_cast %192 : vector<1x32xf32> to vector<1x32x1xf32>
    %194 = tpu.reciprocal %193 : vector<1x32x1xf32> -> vector<1x32x1xf32>
    %195 = vector.broadcast %194 : vector<1x32x1xf32> to vector<1x32x32xf32>
    %196 = arith.mulf %191, %195 : vector<1x32x32xf32>
    %197 = arith.truncf %196 : vector<1x32x32xf32> to vector<1x32x32xbf16>
    "tpu.trace_start"() <{level = 10 : i32, message = "blm,bmd->bld"}> : () -> ()
    %cst_69 = arith.constant dense<0.000000e+00> : vector<1x32x2xf32>
    %198 = tpu.matmul %197, %185, %cst_69 {dimension_numbers = #tpu.dot_dimension_numbers<[2], [1], [1], [2], [0, 0, 0, 1, 1, 2], [0], [0]>} : vector<1x32x32xbf16>, vector<1x32x2xbf16>, vector<1x32x2xf32> -> vector<1x32x2xf32>
    "tpu.trace_stop"() : () -> ()
    %199 = vector.extract_strided_slice %160 {offsets = [0, 0, 4], sizes = [1, 32, 2], strides = [1, 1, 1]} : vector<1x32x24xf32> to vector<1x32x2xf32>
    %200 = arith.truncf %199 : vector<1x32x2xf32> to vector<1x32x2xbf16>
    %201 = vector.extract_strided_slice %160 {offsets = [0, 0, 12], sizes = [1, 32, 2], strides = [1, 1, 1]} : vector<1x32x24xf32> to vector<1x32x2xf32>
    %202 = arith.truncf %201 : vector<1x32x2xf32> to vector<1x32x2xbf16>
    %203 = vector.extract_strided_slice %160 {offsets = [0, 0, 20], sizes = [1, 32, 2], strides = [1, 1, 1]} : vector<1x32x24xf32> to vector<1x32x2xf32>
    %204 = arith.truncf %203 : vector<1x32x2xf32> to vector<1x32x2xbf16>
    "tpu.trace_start"() <{level = 10 : i32, message = "bld,bmd->blm"}> : () -> ()
    %cst_70 = arith.constant dense<0.000000e+00> : vector<1x32x32xf32>
    %205 = tpu.matmul %200, %202, %cst_70 {dimension_numbers = #tpu.dot_dimension_numbers<[2], [2], [1], [1], [0, 0, 0, 1, 1, 1], [0], [0]>} : vector<1x32x2xbf16>, vector<1x32x2xbf16>, vector<1x32x32xf32> -> vector<1x32x32xf32>
    "tpu.trace_stop"() : () -> ()
    %cst_71 = arith.constant dense<0xFF800000> : vector<1x32xf32>
    %206 = vector.multi_reduction <maximumf>, %205, %cst_71 [2] : vector<1x32x32xf32> to vector<1x32xf32>
    %207 = vector.shape_cast %206 : vector<1x32xf32> to vector<1x32x1xf32>
    %208 = vector.broadcast %207 : vector<1x32x1xf32> to vector<1x32x32xf32>
    %209 = arith.subf %205, %208 : vector<1x32x32xf32>
    %210 = math.exp %209 : vector<1x32x32xf32>
    %cst_72 = arith.constant dense<0.000000e+00> : vector<1x32xf32>
    %211 = vector.multi_reduction <add>, %210, %cst_72 [2] : vector<1x32x32xf32> to vector<1x32xf32>
    %212 = vector.shape_cast %211 : vector<1x32xf32> to vector<1x32x1xf32>
    %213 = tpu.reciprocal %212 : vector<1x32x1xf32> -> vector<1x32x1xf32>
    %214 = vector.broadcast %213 : vector<1x32x1xf32> to vector<1x32x32xf32>
    %215 = arith.mulf %210, %214 : vector<1x32x32xf32>
    %216 = arith.truncf %215 : vector<1x32x32xf32> to vector<1x32x32xbf16>
    "tpu.trace_start"() <{level = 10 : i32, message = "blm,bmd->bld"}> : () -> ()
    %cst_73 = arith.constant dense<0.000000e+00> : vector<1x32x2xf32>
    %217 = tpu.matmul %216, %204, %cst_73 {dimension_numbers = #tpu.dot_dimension_numbers<[2], [1], [1], [2], [0, 0, 0, 1, 1, 2], [0], [0]>} : vector<1x32x32xbf16>, vector<1x32x2xbf16>, vector<1x32x2xf32> -> vector<1x32x2xf32>
    "tpu.trace_stop"() : () -> ()
    %218 = vector.extract_strided_slice %160 {offsets = [0, 0, 6], sizes = [1, 32, 2], strides = [1, 1, 1]} : vector<1x32x24xf32> to vector<1x32x2xf32>
    %219 = arith.truncf %218 : vector<1x32x2xf32> to vector<1x32x2xbf16>
    %220 = vector.extract_strided_slice %160 {offsets = [0, 0, 14], sizes = [1, 32, 2], strides = [1, 1, 1]} : vector<1x32x24xf32> to vector<1x32x2xf32>
    %221 = arith.truncf %220 : vector<1x32x2xf32> to vector<1x32x2xbf16>
    %222 = vector.extract_strided_slice %160 {offsets = [0, 0, 22], sizes = [1, 32, 2], strides = [1, 1, 1]} : vector<1x32x24xf32> to vector<1x32x2xf32>
    %223 = arith.truncf %222 : vector<1x32x2xf32> to vector<1x32x2xbf16>
    "tpu.trace_start"() <{level = 10 : i32, message = "bld,bmd->blm"}> : () -> ()
    %cst_74 = arith.constant dense<0.000000e+00> : vector<1x32x32xf32>
    %224 = tpu.matmul %219, %221, %cst_74 {dimension_numbers = #tpu.dot_dimension_numbers<[2], [2], [1], [1], [0, 0, 0, 1, 1, 1], [0], [0]>} : vector<1x32x2xbf16>, vector<1x32x2xbf16>, vector<1x32x32xf32> -> vector<1x32x32xf32>
    "tpu.trace_stop"() : () -> ()
    %cst_75 = arith.constant dense<0xFF800000> : vector<1x32xf32>
    %225 = vector.multi_reduction <maximumf>, %224, %cst_75 [2] : vector<1x32x32xf32> to vector<1x32xf32>
    %226 = vector.shape_cast %225 : vector<1x32xf32> to vector<1x32x1xf32>
    %227 = vector.broadcast %226 : vector<1x32x1xf32> to vector<1x32x32xf32>
    %228 = arith.subf %224, %227 : vector<1x32x32xf32>
    %229 = math.exp %228 : vector<1x32x32xf32>
    %cst_76 = arith.constant dense<0.000000e+00> : vector<1x32xf32>
    %230 = vector.multi_reduction <add>, %229, %cst_76 [2] : vector<1x32x32xf32> to vector<1x32xf32>
    %231 = vector.shape_cast %230 : vector<1x32xf32> to vector<1x32x1xf32>
    %232 = tpu.reciprocal %231 : vector<1x32x1xf32> -> vector<1x32x1xf32>
    %233 = vector.broadcast %232 : vector<1x32x1xf32> to vector<1x32x32xf32>
    %234 = arith.mulf %229, %233 : vector<1x32x32xf32>
    %235 = arith.truncf %234 : vector<1x32x32xf32> to vector<1x32x32xbf16>
    "tpu.trace_start"() <{level = 10 : i32, message = "blm,bmd->bld"}> : () -> ()
    %cst_77 = arith.constant dense<0.000000e+00> : vector<1x32x2xf32>
    %236 = tpu.matmul %235, %223, %cst_77 {dimension_numbers = #tpu.dot_dimension_numbers<[2], [1], [1], [2], [0, 0, 0, 1, 1, 2], [0], [0]>} : vector<1x32x32xbf16>, vector<1x32x2xbf16>, vector<1x32x2xf32> -> vector<1x32x2xf32>
    "tpu.trace_stop"() : () -> ()
    %237 = tpu.concatenate %179, %198, %217, %236 in 2 : vector<1x32x2xf32>, vector<1x32x2xf32>, vector<1x32x2xf32>, vector<1x32x2xf32> -> vector<1x32x8xf32>
    %238 = vector.shape_cast %237 : vector<1x32x8xf32> to vector<32x8xf32>
    %239 = arith.truncf %238 : vector<32x8xf32> to vector<32x8xbf16>
    %cst_78 = arith.constant dense<0.000000e+00> : vector<32x8xf32>
    %240 = tpu.matmul %239, %19, %cst_78 {dimension_numbers = #tpu.dot_dimension_numbers<[1], [0], [0], [1], [0, 0, 1, 1], [], []>} : vector<32x8xbf16>, vector<8x8xbf16>, vector<32x8xf32> -> vector<32x8xf32>
    %241 = vector.broadcast %23 : vector<1x8xf32> to vector<32x8xf32>
    %242 = arith.addf %240, %241 : vector<32x8xf32>
    %243 = vector.shape_cast %242 : vector<32x8xf32> to vector<1x32x8xf32>
    %244 = tpu.transpose %243, [0, 2, 1] : vector<1x32x8xf32> -> vector<1x8x32xf32>
    %245 = arith.addf %133, %244 : vector<1x8x32xf32>
    %cst_79 = arith.constant dense<0.000000e+00> : vector<1x8xf32>
    %246 = vector.multi_reduction <add>, %245, %cst_79 [2] : vector<1x8x32xf32> to vector<1x8xf32>
    %247 = vector.shape_cast %246 : vector<1x8xf32> to vector<1x8x1xf32>
    %cst_80 = arith.constant dense<0.000000e+00> : vector<1x1xf32>
    %248 = vector.multi_reduction <add>, %247, %cst_80 [1] : vector<1x8x1xf32> to vector<1x1xf32>
    %249 = vector.shape_cast %248 : vector<1x1xf32> to vector<1x1x1xf32>
    %cst_81 = arith.constant 2.560000e+02 : f32
    %250 = vector.broadcast %cst_81 : f32 to vector<1x1x1xf32>
    %251 = arith.divf %249, %250 : vector<1x1x1xf32>
    %252 = vector.broadcast %251 : vector<1x1x1xf32> to vector<1x8x32xf32>
    %253 = arith.subf %245, %252 : vector<1x8x32xf32>
    %254 = arith.mulf %253, %253 : vector<1x8x32xf32>
    %cst_82 = arith.constant dense<0.000000e+00> : vector<1x8xf32>
    %255 = vector.multi_reduction <add>, %254, %cst_82 [2] : vector<1x8x32xf32> to vector<1x8xf32>
    %256 = vector.shape_cast %255 : vector<1x8xf32> to vector<1x8x1xf32>
    %cst_83 = arith.constant dense<0.000000e+00> : vector<1x1xf32>
    %257 = vector.multi_reduction <add>, %256, %cst_83 [1] : vector<1x8x1xf32> to vector<1x1xf32>
    %258 = vector.shape_cast %257 : vector<1x1xf32> to vector<1x1x1xf32>
    %cst_84 = arith.constant 2.560000e+02 : f32
    %259 = vector.broadcast %cst_84 : f32 to vector<1x1x1xf32>
    %260 = arith.divf %258, %259 : vector<1x1x1xf32>
    %cst_85 = arith.constant 9.99999974E-6 : f32
    %261 = vector.broadcast %cst_85 : f32 to vector<1x1x1xf32>
    %262 = arith.addf %260, %261 : vector<1x1x1xf32>
    %263 = math.rsqrt %262 : vector<1x1x1xf32>
    %264 = vector.broadcast %263 : vector<1x1x1xf32> to vector<1x8x32xf32>
    %265 = arith.mulf %253, %264 : vector<1x8x32xf32>
    %266 = vector.shape_cast %265 : vector<1x8x32xf32> to vector<8x32xf32>
    %267 = arith.truncf %266 : vector<8x32xf32> to vector<8x32xbf16>
    %cst_86 = arith.constant dense<0.000000e+00> : vector<8x32xf32>
    %268 = tpu.matmul %267, %9, %cst_86 {dimension_numbers = #tpu.dot_dimension_numbers<[1], [0], [0], [1], [0, 0, 1, 1], [], []>} : vector<8x32xbf16>, vector<32x32xbf16>, vector<8x32xf32> -> vector<8x32xf32>
    %269 = vector.broadcast %15 : vector<1x32xf32> to vector<8x32xf32>
    %270 = arith.addf %268, %269 : vector<8x32xf32>
    %cst_87 = arith.constant 0.707106769 : f32
    %271 = vector.broadcast %cst_87 : f32 to vector<8x32xf32>
    %272 = arith.mulf %270, %271 : vector<8x32xf32>
    %273 = math.absf %272 : vector<8x32xf32>
    %cst_88 = arith.constant 0.327591091 : f32
    %274 = vector.broadcast %cst_88 : f32 to vector<8x32xf32>
    %275 = arith.mulf %274, %273 : vector<8x32xf32>
    %cst_89 = arith.constant 1.000000e+00 : f32
    %276 = vector.broadcast %cst_89 : f32 to vector<8x32xf32>
    %277 = arith.addf %276, %275 : vector<8x32xf32>
    %cst_90 = arith.constant 1.000000e+00 : f32
    %278 = vector.broadcast %cst_90 : f32 to vector<8x32xf32>
    %279 = arith.divf %278, %277 : vector<8x32xf32>
    %cst_91 = arith.constant 1.06140542 : f32
    %280 = vector.broadcast %cst_91 : f32 to vector<8x32xf32>
    %281 = arith.mulf %279, %280 : vector<8x32xf32>
    %cst_92 = arith.constant -1.45315206 : f32
    %282 = vector.broadcast %cst_92 : f32 to vector<8x32xf32>
    %283 = arith.addf %282, %281 : vector<8x32xf32>
    %284 = arith.mulf %279, %283 : vector<8x32xf32>
    %cst_93 = arith.constant 1.42141378 : f32
    %285 = vector.broadcast %cst_93 : f32 to vector<8x32xf32>
    %286 = arith.addf %285, %284 : vector<8x32xf32>
    %287 = arith.mulf %279, %286 : vector<8x32xf32>
    %cst_94 = arith.constant -0.284496725 : f32
    %288 = vector.broadcast %cst_94 : f32 to vector<8x32xf32>
    %289 = arith.addf %288, %287 : vector<8x32xf32>
    %290 = arith.mulf %279, %289 : vector<8x32xf32>
    %cst_95 = arith.constant 0.254829586 : f32
    %291 = vector.broadcast %cst_95 : f32 to vector<8x32xf32>
    %292 = arith.addf %291, %290 : vector<8x32xf32>
    %293 = arith.mulf %279, %292 : vector<8x32xf32>
    %cst_96 = arith.constant 0.000000e+00 : f32
    %294 = vector.broadcast %cst_96 : f32 to vector<8x32xf32>
    %295 = arith.subf %294, %273 : vector<8x32xf32>
    %296 = arith.mulf %295, %273 : vector<8x32xf32>
    %297 = math.exp %296 : vector<8x32xf32>
    %298 = arith.mulf %293, %297 : vector<8x32xf32>
    %cst_97 = arith.constant 1.000000e+00 : f32
    %299 = vector.broadcast %cst_97 : f32 to vector<8x32xf32>
    %300 = arith.subf %299, %298 : vector<8x32xf32>
    %cst_98 = arith.constant 0.000000e+00 : f32
    %301 = vector.broadcast %cst_98 : f32 to vector<8x32xf32>
    %302 = arith.cmpf olt, %272, %301 : vector<8x32xf32>
    %cst_99 = arith.constant 0.000000e+00 : f32
    %303 = vector.broadcast %cst_99 : f32 to vector<8x32xf32>
    %304 = arith.subf %303, %300 : vector<8x32xf32>
    %305 = arith.select %302, %304, %300 : vector<8x32xi1>, vector<8x32xf32>
    %cst_100 = arith.constant 5.000000e-01 : f32
    %306 = vector.broadcast %cst_100 : f32 to vector<8x32xf32>
    %307 = arith.mulf %306, %270 : vector<8x32xf32>
    %cst_101 = arith.constant 1.000000e+00 : f32
    %308 = vector.broadcast %cst_101 : f32 to vector<8x32xf32>
    %309 = arith.addf %308, %305 : vector<8x32xf32>
    %310 = arith.mulf %307, %309 : vector<8x32xf32>
    %311 = vector.shape_cast %310 : vector<8x32xf32> to vector<1x8x32xf32>
    %312 = arith.addf %245, %311 : vector<1x8x32xf32>
    %c0_102 = arith.constant 0 : index
    %c0_103 = arith.constant 0 : index
    %c0_104 = arith.constant 0 : index
    %313 = vector.load %arg13[%c0_102, %c0_103, %c0_104] : memref<1x8x32xf32, #tpu.memory_space<vmem>>, vector<1x8x32xf32>
    tpu.vector_store %arg13[%c0_102, %c0_103, %c0_104], %312 {strides = array<i32>} : memref<1x8x32xf32, #tpu.memory_space<vmem>>, vector<1x8x32xf32>,
    %c1_i32 = arith.constant 1 : i32
    %314 = arith.cmpi eq, %arg1, %c1_i32 : i32
    %315 = arith.extui %314 : i1 to i32
    %c0_i32_105 = arith.constant 0 : i32
    %316 = arith.cmpi ne, %315, %c0_i32_105 : i32
    scf.if %316 {
      %317 = vector.shape_cast %312 : vector<1x8x32xf32> to vector<8x32xf32>
      %c0_106 = arith.constant 0 : index
      %c0_107 = arith.constant 0 : index
      %318 = vector.load %arg10[%c0_106, %c0_107] : memref<32x16xbf16, #tpu.memory_space<vmem>>, vector<32x16xbf16>
      %319 = arith.truncf %317 : vector<8x32xf32> to vector<8x32xbf16>
      %cst_108 = arith.constant dense<0.000000e+00> : vector<8x16xf32>
      %320 = tpu.matmul %319, %318, %cst_108 {dimension_numbers = #tpu.dot_dimension_numbers<[1], [0], [0], [1], [0, 0, 1, 1], [], []>} : vector<8x32xbf16>, vector<32x16xbf16>, vector<8x16xf32> -> vector<8x16xf32>
      %c0_109 = arith.constant 0 : index
      %c0_110 = arith.constant 0 : index
      %321 = vector.load %arg11[%c0_109, %c0_110] : memref<1x16xf32, #tpu.memory_space<vmem>>, vector<1x16xf32>
      %322 = vector.broadcast %321 : vector<1x16xf32> to vector<8x16xf32>
      %323 = arith.addf %320, %322 : vector<8x16xf32>
      %324 = vector.shape_cast %323 : vector<8x16xf32> to vector<1x8x16xf32>
      %c0_111 = arith.constant 0 : index
      %c0_112 = arith.constant 0 : index
      %c0_113 = arith.constant 0 : index
      %325 = vector.load %arg12[%c0_111, %c0_112, %c0_113] : memref<1x8x16xf32, #tpu.memory_space<vmem>>, vector<1x8x16xf32>
      tpu.vector_store %arg12[%c0_111, %c0_112, %c0_113], %324 {strides = array<i32>} : memref<1x8x16xf32, #tpu.memory_space<vmem>>, vector<1x8x16xf32>,
    } else {
    }
    return
  }
  func.func @transform_0(%arg0: i32, %arg1: i32) -> (i32, i32, i32) {
    %c0_i32 = arith.constant 0 : i32
    %c0_i32_0 = arith.constant 0 : i32
    %c0_i32_1 = arith.constant 0 : i32
    return %arg0, %c0_i32, %c0_i32_0 : i32, i32, i32
  }
  func.func @transform_1(%arg0: i32, %arg1: i32) -> (i32, i32, i32) {
    %c0_i32 = arith.constant 0 : i32
    %c0_i32_0 = arith.constant 0 : i32
    %c0_i32_1 = arith.constant 0 : i32
    %c0_i32_2 = arith.constant 0 : i32
    return %c0_i32, %c0_i32_0, %c0_i32_1 : i32, i32, i32
  }
  func.func @transform_2(%arg0: i32, %arg1: i32) -> (i32, i32) {
    %c0_i32 = arith.constant 0 : i32
    %c0_i32_0 = arith.constant 0 : i32
    %c0_i32_1 = arith.constant 0 : i32
    return %c0_i32, %c0_i32_0 : i32, i32
  }
  func.func @transform_3(%arg0: i32, %arg1: i32) -> (i32, i32) {
    %c0_i32 = arith.constant 0 : i32
    %c0_i32_0 = arith.constant 0 : i32
    %c0_i32_1 = arith.constant 0 : i32
    return %c0_i32, %c0_i32_0 : i32, i32
  }
  func.func @transform_4(%arg0: i32, %arg1: i32) -> (i32, i32, i32) {
    %c0_i32 = arith.constant 0 : i32
    %c0_i32_0 = arith.constant 0 : i32
    %c0_i32_1 = arith.constant 0 : i32
    return %arg1, %c0_i32, %c0_i32_0 : i32, i32, i32
  }
  func.func @transform_5(%arg0: i32, %arg1: i32) -> (i32, i32, i32) {
    %c0_i32 = arith.constant 0 : i32
    %c0_i32_0 = arith.constant 0 : i32
    %c0_i32_1 = arith.constant 0 : i32
    return %arg1, %c0_i32, %c0_i32_0 : i32, i32, i32
  }
  func.func @transform_6(%arg0: i32, %arg1: i32) -> (i32, i32, i32) {
    %c0_i32 = arith.constant 0 : i32
    %c0_i32_0 = arith.constant 0 : i32
    %c0_i32_1 = arith.constant 0 : i32
    return %arg1, %c0_i32, %c0_i32_0 : i32, i32, i32
  }
  func.func @transform_7(%arg0: i32, %arg1: i32) -> (i32, i32, i32) {
    %c0_i32 = arith.constant 0 : i32
    %c0_i32_0 = arith.constant 0 : i32
    %c0_i32_1 = arith.constant 0 : i32
    return %arg1, %c0_i32, %c0_i32_0 : i32, i32, i32
  }
  func.func @transform_8(%arg0: i32, %arg1: i32) -> (i32, i32) {
    %c0_i32 = arith.constant 0 : i32
    %c0_i32_0 = arith.constant 0 : i32
    %c0_i32_1 = arith.constant 0 : i32
    return %c0_i32, %c0_i32_0 : i32, i32
  }
  func.func @transform_9(%arg0: i32, %arg1: i32) -> (i32, i32) {
    %c0_i32 = arith.constant 0 : i32
    %c0_i32_0 = arith.constant 0 : i32
    %c0_i32_1 = arith.constant 0 : i32
    return %c0_i32, %c0_i32_0 : i32, i32
  }
  func.func @transform_10(%arg0: i32, %arg1: i32) -> (i32, i32, i32) {
    %c0_i32 = arith.constant 0 : i32
    %c0_i32_0 = arith.constant 0 : i32
    %c0_i32_1 = arith.constant 0 : i32
    return %arg0, %c0_i32, %c0_i32_0 : i32, i32, i32
  }
}

</mosaic_0001>

<llo_original>
// kernel: tpu_custom_call.1
$region0: #{tpu_custom_call.1}
  #allocation0 [shape = 'u32[]', space=smem, size = 0x4, offset = 0x4, fixed_abs, tag = 'smem constant byte address 0x4 - core index']
  #allocation1 [shape = 'u32[144,128]{1,0:T(1,128)}', space=vmem, size = 0x12000, scoped, tag = 'internal scratch']
  #allocation2 [shape = 'f32[1,8,32]{2,1,0:T(8,128)}', space=vmem, size = 0x1000, scoped, tag = 'scratch operand']
  %s0 = inlined_call_operand.vmem [shape: f32[2,8,16], index: 0, kind: input, shape index: {}]
  %s1 = inlined_call_operand.vmem [shape: f32[1,8,32], index: 1, kind: input, shape index: {}]
  %s2 = inlined_call_operand.hbm [shape: bf16[16,32], index: 2, kind: input, shape index: {}]
  %s3 = inlined_call_operand.hbm [shape: f32[1,32], index: 3, kind: input, shape index: {}]
  %s4 = inlined_call_operand.hbm [shape: bf16[2,32,160], index: 4, kind: input, shape index: {}]
  %s5 = inlined_call_operand.hbm [shape: f32[2,1,160], index: 5, kind: input, shape index: {}]
  %s6 = inlined_call_operand.vmem [shape: bf16[2,8,32], index: 6, kind: input, shape index: {}]
  %s7 = inlined_call_operand.vmem [shape: f32[2,1,32], index: 7, kind: input, shape index: {}]
  %s8 = inlined_call_operand.vmem [shape: bf16[32,16], index: 8, kind: input, shape index: {}]
  %s9 = inlined_call_operand.vmem [shape: f32[1,16], index: 9, kind: input, shape index: {}]
  %s10 = inlined_call_operand.hbm [shape: f32[2,8,16], index: 10, kind: output, shape index: {}]
  %s11 = sld [smem:[#allocation0]]
  $region97: #{tpu_custom_call.1} parent=0
    _
  %s13 = ssub.s32 1, %s11
  %s14 = scalar_select 0, %s13, %s11
  $region1: #{tpu_custom_call.1} parent=0
    #allocation3 [shape = 'u8[4096]{0}', space=vmem, size = 0x1000, scoped, tag = 'input window, operand 2, single buffered']
    #allocation4 [shape = 's32[2]{0}', space=sflag, size = 0x8, scoped, tag = 'scoped memory for tpu_custom_call.1']
    #allocation5 [shape = 's32[2]{0}', space=sflag, size = 0x8, scoped, tag = 'scoped memory for tpu_custom_call.1']
    #allocation6 [shape = 'u8[512]{0}', space=vmem, size = 0x400, scoped, tag = 'input window, operand 3, single buffered']
    #allocation7 [shape = 's32[1]{0}', space=sflag, size = 0x4, scoped, tag = 'scoped memory for tpu_custom_call.1']
    #allocation8 [shape = 'u8[32768]{0}', space=vmem, size = 0x8000, scoped, tag = 'input window, operand 4']
    #allocation9 [shape = 'u8[2048]{0}', space=vmem, size = 0x800, scoped, tag = 'input window, operand 5']
    #allocation10 [shape = 'u8[8192]{0}', space=vmem, size = 0x2000, scoped, tag = 'output window, operand 0']
    %15 = vsyncpa [#allocation4], 0
    %16 = vsyncpa [#allocation7], 0
    %17 = vsyncpa [#allocation5], 0
    %s18 = scalar_lea.sflag [#allocation5], 1
    %19 = vsyncpa %s18, 0
    loop: start=0, step=1, limit=6
    $region2: #{tpu_custom_call.1} parent=1 // loop_pre_header
      _
    $region3: #{tpu_custom_call.1} parent=1 // loop_header
      %s21 = sphi 0, %s25
      %p22 = scmp.ge.s32.totalorder %s21, 6
      %s28 = sphi 0, %s40
      %s29 = sphi 0, %s36
      %s30 = sphi 0, %s28
      %s31 = sphi 0, %s29
      %s32 = sphi 0, %s30
      %s33 = sphi 0, %s31
      %s43 = sphi 0, %s45
      %s46 = sphi 0, %s43
      %s47 = sphi 0, %s46
      %s63 = sphi 0, %s47
      %s67 = sphi 0, %s67
      %s69 = sphi 0, %s67
      %s70 = sphi 0, %s69
      %s84 = sphi 0, %s70
      %s88 = sphi 0, %s88
      %s90 = sphi 0, %s88
      %s91 = sphi 0, %s90
      %s105 = sphi 0, %s91
      %s109 = sphi 0, %s109
      %s111 = sphi 0, %s109
      %s112 = sphi 0, %s111
      %s126 = sphi 0, %s112
      %s132 = sphi 0, %s134
      %s135 = sphi 0, %s132
      %s136 = sphi 0, %s135
      %s152 = sphi 0, %s136
      %s158 = sphi 0, %s160
      %s161 = sphi 0, %s158
      %s162 = sphi 0, %s161
      %s178 = sphi 0, %s162
      %s184 = sphi 0, %s186
      %s187 = sphi 0, %s184
      %s188 = sphi 0, %s187
      %s204 = sphi 0, %s188
      %s210 = sphi 0, %s212
      %s213 = sphi 0, %s210
      %s214 = sphi 0, %s213
      %s230 = sphi 0, %s214
      %s234 = sphi 0, %s234
      %s236 = sphi 0, %s234
      %s237 = sphi 0, %s236
      %s251 = sphi 0, %s237
      %s255 = sphi 0, %s255
      %s257 = sphi 0, %s255
      %s258 = sphi 0, %s257
      %s272 = sphi 0, %s258
      %s278 = sphi 0, %s280
      %s281 = sphi 0, %s278
      %s282 = sphi 0, %s281
      %s298 = sphi 0, %s282
    $region4: #{tpu_custom_call.1} parent=1 // loop_header_branch
      %24 = sbr.rel (%p22) target = $region8
    $region5: #{tpu_custom_call.1} parent=1 // loop_body
      %s26 = ssub.s32 %s21, 1
      %s27 = ssub.s32 %s21, 2
      %s34 = sadd.s32 1, %s29
      %p35 = scmp.ge.s32.totalorder %s34, 2
      %s36 = scalar_select %p35, 0, %s34
      %s37 = sadd.s32 1, %s28
      %s38 = scalar_select %p35, %s37, %s28
      %p39 = scmp.ge.s32.totalorder %s38, 2
      %s40 = scalar_select %p39, 0, %s38
      %s41 = ssub.s32 %s28, %s40
      %p42 = scmp.eq.s32.totalorder %s41, 0
      %s44 = sadd.s32 %s43, 1
      %s45 = scalar_select %p42, %s43, %s44
      %p48 = pneg %p42
      %p49 = scmp.eq.s32.totalorder %s21, 3
      %p50 = por %p48, %p49
      %p51 = scmp.ne.s32.totalorder %s43, %s46
      %p52 = scmp.eq.s32.totalorder %s21, 0
      %p53 = por %p51, %p52
      %p54 = scmp.ne.s32.totalorder %s43, %s46
      %p55 = scmp.eq.s32.totalorder %s26, 3
      %p56 = por %p54, %p55
      %p57 = scmp.ne.s32.totalorder %s46, %s47
      %p58 = scmp.eq.s32.totalorder %s26, 0
      %p59 = por %p57, %p58
      %p60 = scmp.ne.s32.totalorder %s46, %s47
      %p61 = scmp.eq.s32.totalorder %s27, 3
      %p62 = por %p60, %p61
      %p64 = scmp.ne.s32.totalorder %s47, %s63
      %p65 = scmp.eq.s32.totalorder %s27, 0
      %p66 = por %p64, %p65
      %s68 = sadd.s32 %s67, 1
      %p71 = scmp.eq.s32.totalorder %s21, 3
      %p72 = scmp.ne.s32.totalorder %s67, %s69
      %p73 = scmp.eq.s32.totalorder %s21, 0
      %p74 = por %p72, %p73
      %p75 = scmp.ne.s32.totalorder %s67, %s69
      %p76 = scmp.eq.s32.totalorder %s26, 3
      %p77 = por %p75, %p76
      %p78 = scmp.ne.s32.totalorder %s69, %s70
      %p79 = scmp.eq.s32.totalorder %s26, 0
      %p80 = por %p78, %p79
      %p81 = scmp.ne.s32.totalorder %s69, %s70
      %p82 = scmp.eq.s32.totalorder %s27, 3
      %p83 = por %p81, %p82
      %p85 = scmp.ne.s32.totalorder %s70, %s84
      %p86 = scmp.eq.s32.totalorder %s27, 0
      %p87 = por %p85, %p86
      %s89 = sadd.s32 %s88, 1
      %p92 = scmp.eq.s32.totalorder %s21, 3
      %p93 = scmp.ne.s32.totalorder %s88, %s90
      %p94 = scmp.eq.s32.totalorder %s21, 0
      %p95 = por %p93, %p94
      %p96 = scmp.ne.s32.totalorder %s88, %s90
      %p97 = scmp.eq.s32.totalorder %s26, 3
      %p98 = por %p96, %p97
      %p99 = scmp.ne.s32.totalorder %s90, %s91
      %p100 = scmp.eq.s32.totalorder %s26, 0
      %p101 = por %p99, %p100
      %p102 = scmp.ne.s32.totalorder %s90, %s91
      %p103 = scmp.eq.s32.totalorder %s27, 3
      %p104 = por %p102, %p103
      %p106 = scmp.ne.s32.totalorder %s91, %s105
      %p107 = scmp.eq.s32.totalorder %s27, 0
      %p108 = por %p106, %p107
      %s110 = sadd.s32 %s109, 1
      %p113 = scmp.eq.s32.totalorder %s21, 3
      %p114 = scmp.ne.s32.totalorder %s109, %s111
      %p115 = scmp.eq.s32.totalorder %s21, 0
      %p116 = por %p114, %p115
      %p117 = scmp.ne.s32.totalorder %s109, %s111
      %p118 = scmp.eq.s32.totalorder %s26, 3
      %p119 = por %p117, %p118
      %p120 = scmp.ne.s32.totalorder %s111, %s112
      %p121 = scmp.eq.s32.totalorder %s26, 0
      %p122 = por %p120, %p121
      %p123 = scmp.ne.s32.totalorder %s111, %s112
      %p124 = scmp.eq.s32.totalorder %s27, 3
      %p125 = por %p123, %p124
      %p127 = scmp.ne.s32.totalorder %s112, %s126
      %p128 = scmp.eq.s32.totalorder %s27, 0
      %p129 = por %p127, %p128
      %s130 = ssub.s32 %s29, %s36
      %p131 = scmp.eq.s32.totalorder %s130, 0
      %s133 = sadd.s32 %s132, 1
      %s134 = scalar_select %p131, %s132, %s133
      %p137 = pneg %p131
      %p138 = scmp.eq.s32.totalorder %s21, 3
      %p139 = por %p137, %p138
      %p140 = scmp.ne.s32.totalorder %s132, %s135
      %p141 = scmp.eq.s32.totalorder %s21, 0
      %p142 = por %p140, %p141
      %p143 = scmp.ne.s32.totalorder %s132, %s135
      %p144 = scmp.eq.s32.totalorder %s26, 3
      %p145 = por %p143, %p144
      %p146 = scmp.ne.s32.totalorder %s135, %s136
      %p147 = scmp.eq.s32.totalorder %s26, 0
      %p148 = por %p146, %p147
      %p149 = scmp.ne.s32.totalorder %s135, %s136
      %p150 = scmp.eq.s32.totalorder %s27, 3
      %p151 = por %p149, %p150
      %p153 = scmp.ne.s32.totalorder %s136, %s152
      %p154 = scmp.eq.s32.totalorder %s27, 0
      %p155 = por %p153, %p154
      %s156 = ssub.s32 %s29, %s36
      %p157 = scmp.eq.s32.totalorder %s156, 0
      %s159 = sadd.s32 %s158, 1
      %s160 = scalar_select %p157, %s158, %s159
      %p163 = pneg %p157
      %p164 = scmp.eq.s32.totalorder %s21, 3
      %p165 = por %p163, %p164
      %p166 = scmp.ne.s32.totalorder %s158, %s161
      %p167 = scmp.eq.s32.totalorder %s21, 0
      %p168 = por %p166, %p167
      %p169 = scmp.ne.s32.totalorder %s158, %s161
      %p170 = scmp.eq.s32.totalorder %s26, 3
      %p171 = por %p169, %p170
      %p172 = scmp.ne.s32.totalorder %s161, %s162
      %p173 = scmp.eq.s32.totalorder %s26, 0
      %p174 = por %p172, %p173
      %p175 = scmp.ne.s32.totalorder %s161, %s162
      %p176 = scmp.eq.s32.totalorder %s27, 3
      %p177 = por %p175, %p176
      %p179 = scmp.ne.s32.totalorder %s162, %s178
      %p180 = scmp.eq.s32.totalorder %s27, 0
      %p181 = por %p179, %p180
      %s182 = ssub.s32 %s29, %s36
      %p183 = scmp.eq.s32.totalorder %s182, 0
      %s185 = sadd.s32 %s184, 1
      %s186 = scalar_select %p183, %s184, %s185
      %p189 = pneg %p183
      %p190 = scmp.eq.s32.totalorder %s21, 3
      %p191 = por %p189, %p190
      %p192 = scmp.ne.s32.totalorder %s184, %s187
      %p193 = scmp.eq.s32.totalorder %s21, 0
      %p194 = por %p192, %p193
      %p195 = scmp.ne.s32.totalorder %s184, %s187
      %p196 = scmp.eq.s32.totalorder %s26, 3
      %p197 = por %p195, %p196
      %p198 = scmp.ne.s32.totalorder %s187, %s188
      %p199 = scmp.eq.s32.totalorder %s26, 0
      %p200 = por %p198, %p199
      %p201 = scmp.ne.s32.totalorder %s187, %s188
      %p202 = scmp.eq.s32.totalorder %s27, 3
      %p203 = por %p201, %p202
      %p205 = scmp.ne.s32.totalorder %s188, %s204
      %p206 = scmp.eq.s32.totalorder %s27, 0
      %p207 = por %p205, %p206
      %s208 = ssub.s32 %s29, %s36
      %p209 = scmp.eq.s32.totalorder %s208, 0
      %s211 = sadd.s32 %s210, 1
      %s212 = scalar_select %p209, %s210, %s211
      %p215 = pneg %p209
      %p216 = scmp.eq.s32.totalorder %s21, 3
      %p217 = por %p215, %p216
      %p218 = scmp.ne.s32.totalorder %s210, %s213
      %p219 = scmp.eq.s32.totalorder %s21, 0
      %p220 = por %p218, %p219
      %p221 = scmp.ne.s32.totalorder %s210, %s213
      %p222 = scmp.eq.s32.totalorder %s26, 3
      %p223 = por %p221, %p222
      %p224 = scmp.ne.s32.totalorder %s213, %s214
      %p225 = scmp.eq.s32.totalorder %s26, 0
      %p226 = por %p224, %p225
      %p227 = scmp.ne.s32.totalorder %s213, %s214
      %p228 = scmp.eq.s32.totalorder %s27, 3
      %p229 = por %p227, %p228
      %p231 = scmp.ne.s32.totalorder %s214, %s230
      %p232 = scmp.eq.s32.totalorder %s27, 0
      %p233 = por %p231, %p232
      %s235 = sadd.s32 %s234, 1
      %p238 = scmp.eq.s32.totalorder %s21, 3
      %p239 = scmp.ne.s32.totalorder %s234, %s236
      %p240 = scmp.eq.s32.totalorder %s21, 0
      %p241 = por %p239, %p240
      %p242 = scmp.ne.s32.totalorder %s234, %s236
      %p243 = scmp.eq.s32.totalorder %s26, 3
      %p244 = por %p242, %p243
      %p245 = scmp.ne.s32.totalorder %s236, %s237
      %p246 = scmp.eq.s32.totalorder %s26, 0
      %p247 = por %p245, %p246
      %p248 = scmp.ne.s32.totalorder %s236, %s237
      %p249 = scmp.eq.s32.totalorder %s27, 3
      %p250 = por %p248, %p249
      %p252 = scmp.ne.s32.totalorder %s237, %s251
      %p253 = scmp.eq.s32.totalorder %s27, 0
      %p254 = por %p252, %p253
      %s256 = sadd.s32 %s255, 1
      %p259 = scmp.eq.s32.totalorder %s21, 3
      %p260 = scmp.ne.s32.totalorder %s255, %s257
      %p261 = scmp.eq.s32.totalorder %s21, 0
      %p262 = por %p260, %p261
      %p263 = scmp.ne.s32.totalorder %s255, %s257
      %p264 = scmp.eq.s32.totalorder %s26, 3
      %p265 = por %p263, %p264
      %p266 = scmp.ne.s32.totalorder %s257, %s258
      %p267 = scmp.eq.s32.totalorder %s26, 0
      %p268 = por %p266, %p267
      %p269 = scmp.ne.s32.totalorder %s257, %s258
      %p270 = scmp.eq.s32.totalorder %s27, 3
      %p271 = por %p269, %p270
      %p273 = scmp.ne.s32.totalorder %s258, %s272
      %p274 = scmp.eq.s32.totalorder %s27, 0
      %p275 = por %p273, %p274
      %s276 = ssub.s32 %s28, %s40
      %p277 = scmp.eq.s32.totalorder %s276, 0
      %s279 = sadd.s32 %s278, 1
      %s280 = scalar_select %p277, %s278, %s279
      %p283 = pneg %p277
      %p284 = scmp.eq.s32.totalorder %s21, 3
      %p285 = por %p283, %p284
      %p286 = scmp.ne.s32.totalorder %s278, %s281
      %p287 = scmp.eq.s32.totalorder %s21, 0
      %p288 = por %p286, %p287
      %p289 = scmp.ne.s32.totalorder %s278, %s281
      %p290 = scmp.eq.s32.totalorder %s26, 3
      %p291 = por %p289, %p290
      %p292 = scmp.ne.s32.totalorder %s281, %s282
      %p293 = scmp.eq.s32.totalorder %s26, 0
      %p294 = por %p292, %p293
      %p295 = scmp.ne.s32.totalorder %s281, %s282
      %p296 = scmp.eq.s32.totalorder %s27, 3
      %p297 = por %p295, %p296
      %p299 = scmp.ne.s32.totalorder %s282, %s298
      %p300 = scmp.eq.s32.totalorder %s27, 0
      %p301 = por %p299, %p300
      %p302 = scmp.le.s32.totalorder 1, %s21
      %p303 = scmp.lt.s32.totalorder %s21, 5
      %p304 = pnand %p302, %p303
      %p305 = pneg %p304
      // Predicated region
      $region9: #{tpu_custom_call.1} parent=5 // pred_check
        _
      $region10: #{tpu_custom_call.1} parent=5 // pred_check_branch
        %307 = sbr.rel (%p304) target = $region12
      $region11: #{tpu_custom_call.1} parent=5 // pred_region
        %s308 = ssub.s32 %s21, 1
        // Predicated region
        $region13: #{tpu_custom_call.1} parent=11 // pred_check
          %p309 = pneg %p80
        $region14: #{tpu_custom_call.1} parent=11 // pred_check_branch
          %311 = sbr.rel (%p309) target = $region16
        $region15: #{tpu_custom_call.1} parent=11 // pred_region
          _
        $region16: #{tpu_custom_call.1} parent=11 // pred_fallthru
          _
        // Predicated region
        $region17: #{tpu_custom_call.1} parent=11 // pred_check
          %p312 = pneg %p101
        $region18: #{tpu_custom_call.1} parent=11 // pred_check_branch
          %314 = sbr.rel (%p312) target = $region20
        $region19: #{tpu_custom_call.1} parent=11 // pred_region
          %s316 = ssub.s32 128, 128
          %317 = vsyncadd [#allocation4], %s316
          %s318 = sshll.u32 [#allocation3], 4
          %s319 = int_to_ptr.vmem [resolvable:$true] %s318
          %324 = dma.hbm_to_vmem [thread:$0]  %s2, 128, %s319, [#allocation4], 64, 64, 4
        $region20: #{tpu_custom_call.1} parent=11 // pred_fallthru
          _
        // Predicated region
        $region21: #{tpu_custom_call.1} parent=11 // pred_check
          %p325 = pneg %p122
        $region22: #{tpu_custom_call.1} parent=11 // pred_check_branch
          %327 = sbr.rel (%p325) target = $region24
        $region23: #{tpu_custom_call.1} parent=11 // pred_region
          %s329 = ssub.s32 16, 16
          %330 = vsyncadd [#allocation7], %s329
          %s332 = sshll.u32 [#allocation6], 4
          %s333 = int_to_ptr.vmem [resolvable:$true] %s332
          %335 = dma.hbm_to_vmem [thread:$0]  %s3, 16, %s333, [#allocation7]
        $region24: #{tpu_custom_call.1} parent=11 // pred_fallthru
          _
        // Predicated region
        $region25: #{tpu_custom_call.1} parent=11 // pred_check
          %p336 = pneg %p247
        $region26: #{tpu_custom_call.1} parent=11 // pred_check_branch
          %338 = sbr.rel (%p336) target = $region28
        $region27: #{tpu_custom_call.1} parent=11 // pred_region
          _
        $region28: #{tpu_custom_call.1} parent=11 // pred_fallthru
          _
        // Predicated region
        $region29: #{tpu_custom_call.1} parent=11 // pred_check
          %p339 = pneg %p268
        $region30: #{tpu_custom_call.1} parent=11 // pred_check_branch
          %341 = sbr.rel (%p339) target = $region32
        $region31: #{tpu_custom_call.1} parent=11 // pred_region
          _
        $region32: #{tpu_custom_call.1} parent=11 // pred_fallthru
          _
      $region12: #{tpu_custom_call.1} parent=5 // pred_fallthru
        _
      %p342 = scmp.lt.s32.totalorder %s21, 4
      // Predicated region
      $region33: #{tpu_custom_call.1} parent=5 // pred_check
        %p343 = pneg %p342
      $region34: #{tpu_custom_call.1} parent=5 // pred_check_branch
        %345 = sbr.rel (%p343) target = $region36
      $region35: #{tpu_custom_call.1} parent=5 // pred_region
        // Predicated region
        $region37: #{tpu_custom_call.1} parent=35 // pred_check
          %p346 = pneg %p53
        $region38: #{tpu_custom_call.1} parent=35 // pred_check_branch
          %348 = sbr.rel (%p346) target = $region40
        $region39: #{tpu_custom_call.1} parent=35 // pred_region
          %p349 = scmp.lt.s32.totalorder %s28, 1
          %s350 = scalar_select %p349, %s28, 1
          %s351 = smul.addr %s350, 8
          %s352 = scalar_lea.vmem %s0, %s351
        $region40: #{tpu_custom_call.1} parent=35 // pred_fallthru
          _
        // Predicated region
        $region41: #{tpu_custom_call.1} parent=35 // pred_check
          %p353 = pneg %p142
        $region42: #{tpu_custom_call.1} parent=35 // pred_check_branch
          %355 = sbr.rel (%p353) target = $region44
        $region43: #{tpu_custom_call.1} parent=35 // pred_region
          %s356 = sand.u32 %s21, 1
          %s357 = scalar_lea.sflag [#allocation4], %s356
          %s358 = sand.u32 %s132, 1
          %s359 = smul.addr %s358, 32
          %s360 = scalar_lea.vmem [#allocation8], %s359
          %s362 = ssub.s32 512, 512
          %363 = vsyncadd %s357, %s362
          %s364 = smul.addr %s29, 8
          %s365 = smul.addr %s364, 64
          %s366 = scalar_lea.hbm %s4, %s365
          %s367 = sshll.u32 %s360, 4
          %s368 = int_to_ptr.vmem [resolvable:$true] %s367
          %373 = dma.hbm_to_vmem [thread:$0]  %s366, 512, %s368, %s357, 128, 128, 8
        $region44: #{tpu_custom_call.1} parent=35 // pred_fallthru
          _
        // Predicated region
        $region45: #{tpu_custom_call.1} parent=35 // pred_check
          %p374 = pneg %p168
        $region46: #{tpu_custom_call.1} parent=35 // pred_check_branch
          %376 = sbr.rel (%p374) target = $region48
        $region47: #{tpu_custom_call.1} parent=35 // pred_region
          %s377 = sand.u32 %s21, 1
          %s378 = scalar_lea.sflag [#allocation4], %s377
          %s379 = sand.u32 %s158, 1
          %s380 = smul.addr %s379, 2
          %s381 = scalar_lea.vmem [#allocation9], %s380
          %s383 = ssub.s32 32, 32
          %384 = vsyncadd %s378, %s383
          %s385 = smul.addr %s29, 2
          %s386 = smul.addr %s385, 16
          %s387 = scalar_lea.hbm %s5, %s386
          %s389 = sshll.u32 %s381, 4
          %s390 = int_to_ptr.vmem [resolvable:$true] %s389
          %392 = dma.hbm_to_vmem [thread:$0]  %s387, 32, %s390, %s378
        $region48: #{tpu_custom_call.1} parent=35 // pred_fallthru
          _
        // Predicated region
        $region49: #{tpu_custom_call.1} parent=35 // pred_check
          %p393 = pneg %p194
        $region50: #{tpu_custom_call.1} parent=35 // pred_check_branch
          %395 = sbr.rel (%p393) target = $region52
        $region51: #{tpu_custom_call.1} parent=35 // pred_region
          %p396 = scmp.lt.s32.totalorder %s29, 1
          %s397 = scalar_select %p396, %s29, 1
          %s398 = smul.addr %s397, 4
          %s399 = scalar_lea.vmem %s6, %s398
        $region52: #{tpu_custom_call.1} parent=35 // pred_fallthru
          _
        // Predicated region
        $region53: #{tpu_custom_call.1} parent=35 // pred_check
          %p400 = pneg %p220
        $region54: #{tpu_custom_call.1} parent=35 // pred_check_branch
          %402 = sbr.rel (%p400) target = $region56
        $region55: #{tpu_custom_call.1} parent=35 // pred_region
          %p403 = scmp.lt.s32.totalorder %s29, 1
          %s404 = scalar_select %p403, %s29, 1
          %s405 = scalar_lea.vmem %s7, %s404
        $region56: #{tpu_custom_call.1} parent=35 // pred_fallthru
          _
      $region36: #{tpu_custom_call.1} parent=5 // pred_fallthru
        _
      %p406 = scmp.le.s32.totalorder 1, %s21
      %p407 = scmp.lt.s32.totalorder %s21, 5
      %p408 = pnand %p406, %p407
      %p409 = pneg %p408
      // Predicated region
      $region57: #{tpu_custom_call.1} parent=5 // pred_check
        _
      $region58: #{tpu_custom_call.1} parent=5 // pred_check_branch
        %411 = sbr.rel (%p408) target = $region60
      $region59: #{tpu_custom_call.1} parent=5 // pred_region
        %s412 = ssub.s32 %s21, 1
        // Predicated region
        $region61: #{tpu_custom_call.1} parent=59 // pred_check
          %p413 = pneg %p101
        $region62: #{tpu_custom_call.1} parent=59 // pred_check_branch
          %415 = sbr.rel (%p413) target = $region64
        $region63: #{tpu_custom_call.1} parent=59 // pred_region
          %416 = dma.done [#allocation4], 128
        $region64: #{tpu_custom_call.1} parent=59 // pred_fallthru
          _
        // Predicated region
        $region65: #{tpu_custom_call.1} parent=59 // pred_check
          %p417 = pneg %p122
        $region66: #{tpu_custom_call.1} parent=59 // pred_check_branch
          %419 = sbr.rel (%p417) target = $region68
        $region67: #{tpu_custom_call.1} parent=59 // pred_region
          %420 = dma.done [#allocation7], 16
        $region68: #{tpu_custom_call.1} parent=59 // pred_fallthru
          _
        %s421 = sand.u32 %s26, 1
        %s422 = scalar_lea.sflag [#allocation4], %s421
        %s423 = sand.u32 %s135, 1
        %s424 = smul.addr %s423, 32
        %s425 = scalar_lea.vmem [#allocation8], %s424
        // Predicated region
        $region69: #{tpu_custom_call.1} parent=59 // pred_check
          %p426 = pneg %p148
        $region70: #{tpu_custom_call.1} parent=59 // pred_check_branch
          %428 = sbr.rel (%p426) target = $region72
        $region71: #{tpu_custom_call.1} parent=59 // pred_region
          %429 = dma.done %s422, 512
        $region72: #{tpu_custom_call.1} parent=59 // pred_fallthru
          _
        %s430 = sand.u32 %s26, 1
        %s431 = scalar_lea.sflag [#allocation4], %s430
        %s432 = sand.u32 %s161, 1
        %s433 = smul.addr %s432, 2
        %s434 = scalar_lea.vmem [#allocation9], %s433
        // Predicated region
        $region73: #{tpu_custom_call.1} parent=59 // pred_check
          %p435 = pneg %p174
        $region74: #{tpu_custom_call.1} parent=59 // pred_check_branch
          %437 = sbr.rel (%p435) target = $region76
        $region75: #{tpu_custom_call.1} parent=59 // pred_region
          %438 = dma.done %s431, 32
        $region76: #{tpu_custom_call.1} parent=59 // pred_fallthru
          _
        %p439 = scmp.lt.s32.totalorder %s30, 1
        %s440 = scalar_select %p439, %s30, 1
        %s441 = smul.addr %s440, 8
        %s442 = scalar_lea.vmem %s0, %s441
        %p443 = pneg %p59
        %p444 = pneg %p56
        %p445 = pneg %p80
        %p446 = pneg %p77
        %p447 = pneg %p101
        %p448 = pneg %p98
        %p449 = pneg %p122
        %p450 = pneg %p119
        %s451 = sand.u32 %s26, 1
        %s452 = scalar_lea.sflag [#allocation4], %s451
        %s453 = sand.u32 %s135, 1
        %s454 = smul.addr %s453, 32
        %s455 = scalar_lea.vmem [#allocation8], %s454
        %p456 = pneg %p148
        %p457 = pneg %p145
        %s458 = sand.u32 %s26, 1
        %s459 = scalar_lea.sflag [#allocation4], %s458
        %s460 = sand.u32 %s161, 1
        %s461 = smul.addr %s460, 2
        %s462 = scalar_lea.vmem [#allocation9], %s461
        %p463 = pneg %p174
        %p464 = pneg %p171
        %p465 = scmp.lt.s32.totalorder %s31, 1
        %s466 = scalar_select %p465, %s31, 1
        %s467 = smul.addr %s466, 4
        %s468 = scalar_lea.vmem %s6, %s467
        %p469 = pneg %p200
        %p470 = pneg %p197
        %p471 = scmp.lt.s32.totalorder %s31, 1
        %s472 = scalar_select %p471, %s31, 1
        %s473 = scalar_lea.vmem %s7, %s472
        %p474 = pneg %p226
        %p475 = pneg %p223
        %p476 = pneg %p247
        %p477 = pneg %p244
        %p478 = pneg %p268
        %p479 = pneg %p265
        %p480 = pneg %p294
        %p481 = pneg %p291
        %s482 = sand.u32 %s281, 1
        %s483 = scalar_lea.sflag [#allocation5], %s482
        %s484 = sand.u32 %s281, 1
        %s485 = smul.addr %s484, 8
        %s486 = scalar_lea.vmem [#allocation10], %s485
        %p487 = scmp.lt.s32.totalorder %s30, 1
        %s488 = scalar_select %p487, %s30, 1
        %s489 = smul.addr %s488, 8
        %s490 = scalar_lea.vmem %s0, %s489
        %p491 = scmp.lt.s32.totalorder %s31, 1
        %s492 = scalar_select %p491, %s31, 1
        %s493 = smul.addr %s492, 4
        %s494 = scalar_lea.vmem %s6, %s493
        %p495 = scmp.lt.s32.totalorder %s31, 1
        %s496 = scalar_select %p495, %s31, 1
        %s497 = scalar_lea.vmem %s7, %s496
        %p499 = scmp.eq.s32.totalorder %s31, 0
        // Predicated region
        $region77: #{tpu_custom_call.1} parent=59 // pred_check
          %p500 = pneg %p499
        $region78: #{tpu_custom_call.1} parent=59 // pred_check_branch
          %502 = sbr.rel (%p500) target = $region80
        $region79: #{tpu_custom_call.1} parent=59 // pred_region
          %v503 = vld [vmem:[%s490] sm:$0xff]
          %vm504 = vcmask 130048
          %v505 = vsel %vm504, %v503, 0.0
          %506 = vadd.xlane.f32.xlu0 %v505
          %v507 = vpop.xlane.xlu0 %506
          %v508 = vrot.slane %v507, 4
          %v509 = vadd.f32 %v507, %v508
          %v510 = vrot.slane %v509, 2
          %v511 = vadd.f32 %v509, %v510
          %v512 = vrot.slane %v511, 1
          %v513 = vadd.f32 %v511, %v512
          %v514 = vrcp.pop 128.0
          %v515 = vmul.f32 %v513, %v514
          %v516 = vsub.f32 %v503, %v515
          %v517 = vmul.f32 %v516, %v516
          %v518 = vsel %vm504, %v517, 0.0
          %519 = vadd.xlane.f32.xlu0 %v518
          %v520 = vpop.xlane.xlu0 %519
          %v521 = vrot.slane %v520, 4
          %v522 = vadd.f32 %v520, %v521
          %v523 = vrot.slane %v522, 2
          %v524 = vadd.f32 %v522, %v523
          %v525 = vrot.slane %v524, 1
          %v526 = vadd.f32 %v524, %v525
          %v527 = vmul.f32 %v526, %v514
          %v528 = vadd.f32 %v527, 1e-05
          %v529 = vrsqrt.pop %v528
          %v530 = vmul.f32 %v516, %v529
          %v531 = vld [vmem:[#allocation3] sm:$0xf]
          %v532 = vld [vmem:[#allocation3 + $0x4] sm:$0xf]
          %v533 = vpack.c.bf16 %v530, %v530
          %v534 = vld [vmem:[#allocation6] sm:$0x1]
          %v536 = vlaneseq
          %v537 = vshrl.u32 %v536, 7
          %v538 = vsub.s32 0, %v537
          %v539 = vrot.slane %v534, %v538
          %v543 = vunpack.c.l.b16 %v531
          %v544 = vunpack.c.l.b16 %v532
          %v545 = vpack.c.b16 %v544, %v543
          %v548 = vsel %vm504, %v533, 0
          %550 = vmatprep.subr.bf16.mxu0 0
          %551 = vmatpush1.bf16.msra.mxu0 %v545
          %552 = vmatprep.subr.bf16.mxu0 0
          %553 = vmatpush1.bf16.msra.mxu0 0
          %554 = vmatprep.subr.bf16.mxu0 0
          %555 = vmatpush1.bf16.msra.mxu0 0
          %556 = vmatprep.subr.bf16.mxu0 0
          %557 = vmatpush1.bf16.msra.mxu0 0
          %558 = vmatprep.subr.bf16.mxu0 0
          %559 = vmatpush1.bf16.msra.mxu0 0
          %560 = vmatprep.subr.bf16.mxu0 0
          %561 = vmatpush1.bf16.msra.mxu0 0
          %562 = vmatprep.subr.bf16.mxu0 0
          %563 = vmatpush1.bf16.msra.mxu0 0
          %564 = vmatprep.subr.bf16.mxu0 0
          %565 = vmatpush1.bf16.msra.mxu0 0
          %566 = vmatprep.subr.bf16.mxu0 0
          %567 = vmatpush1.bf16.msra.mxu0 0
          %568 = vmatprep.subr.bf16.mxu0 0
          %569 = vmatpush1.bf16.msra.mxu0 0
          %570 = vmatprep.subr.bf16.mxu0 0
          %571 = vmatpush1.bf16.msra.mxu0 0
          %572 = vmatprep.subr.bf16.mxu0 0
          %573 = vmatpush1.bf16.msra.mxu0 0
          %574 = vmatprep.subr.bf16.mxu0 0
          %575 = vmatpush1.bf16.msra.mxu0 0
          %576 = vmatprep.subr.bf16.mxu0 0
          %577 = vmatpush1.bf16.msra.mxu0 0
          %578 = vmatprep.subr.bf16.mxu0 0
          %579 = vmatpush1.bf16.msra.mxu0 0
          %580 = vmatprep.subr.bf16.mxu0 0
          %581 = vmatpush1.bf16.msra.mxu0 0
          %582 = vmatprep.mubr.bf16.mxu0 0
          %583 = vmatmul.mubr.bf16.gmra.mrb[0].mxu0 %v548
          %v584 = vpop.f32.mrb[0].mxu0
          %v585 = vadd.f32 %v539, %v584
          %v586 = vpop.f32.mrb[0].mxu0
          %v587 = vpop.f32.mrb[0].mxu0
          %v588 = vpop.f32.mrb[0].mxu0
          %589 = vdwg.mxu0
          %vm590 = vcmask 261120
          %v591 = vsel %vm590, %v585, 0.0
          %592 = vadd.xlane.f32.xlu0 %v591
          %v593 = vpop.xlane.xlu0 %592
          %v594 = vrot.slane %v593, 4
          %v595 = vadd.f32 %v593, %v594
          %v596 = vrot.slane %v595, 2
          %v597 = vadd.f32 %v595, %v596
          %v598 = vrot.slane %v597, 1
          %v599 = vadd.f32 %v597, %v598
          %v600 = vrcp.pop 256.0
          %v601 = vmul.f32 %v599, %v600
          %v602 = vsub.f32 %v585, %v601
          %v603 = vmul.f32 %v602, %v602
          %v604 = vsel %vm590, %v603, 0.0
          %605 = vadd.xlane.f32.xlu0 %v604
          %v606 = vpop.xlane.xlu0 %605
          %v607 = vrot.slane %v606, 4
          %v608 = vadd.f32 %v606, %v607
          %v609 = vrot.slane %v608, 2
          %v610 = vadd.f32 %v608, %v609
          %v611 = vrot.slane %v610, 1
          %v612 = vadd.f32 %v610, %v611
          %v613 = vmul.f32 %v612, %v600
          %v614 = vadd.f32 %v613, 1e-05
          %v615 = vrsqrt.pop %v614
          %v616 = vmul.f32 %v602, %v615
          %v617 = vld [vmem:[%s1] sm:$0xff]
          %v618 = vadd.f32 %v616, %v617
          %619 = vst.msk [vmem:[#allocation2] sm:$0xff] %vm590, %v618
        $region80: #{tpu_custom_call.1} parent=59 // pred_fallthru
          _
        %v620 = vld [vmem:[#allocation2] sm:$0xff]
        %v621 = vld [vmem:[%s425] sm:$0xf]
        %v622 = vld [vmem:[%s425 + $0x8] sm:$0xf]
        %v623 = vld [vmem:[%s425 + $0x10] sm:$0xf]
        %v624 = vld [vmem:[%s425 + $0x18] sm:$0xf]
        %v625 = vld [vmem:[%s425 + $0x4] sm:$0xf]
        %v626 = vld [vmem:[%s425 + $0xc] sm:$0xf]
        %v627 = vld [vmem:[%s425 + $0x14] sm:$0xf]
        %v628 = vld [vmem:[%s425 + $0x1c] sm:$0xf]
        %v629 = vld [vmem:[%s434] sm:$0x1]
        %v630 = vld [vmem:[%s434 + $0x1] sm:$0x1]
        %v631 = vld [vmem:[%s494] sm:$0xf]
        %v632 = vld [vmem:[%s497] sm:$0x1]
        %vm633 = vcmask 261120
        %v634 = vsel %vm633, %v620, 0.0
        %635 = vadd.xlane.f32.xlu0 %v634
        %v636 = vpop.xlane.xlu0 %635
        %v637 = vrot.slane %v636, 4
        %v638 = vadd.f32 %v636, %v637
        %v639 = vrot.slane %v638, 2
        %v640 = vadd.f32 %v638, %v639
        %v641 = vrot.slane %v640, 1
        %v642 = vadd.f32 %v640, %v641
        %v643 = vrcp.pop 256.0
        %v644 = vmul.f32 %v642, %v643
        %v645 = vsub.f32 %v620, %v644
        %v646 = vmul.f32 %v645, %v645
        %v647 = vsel %vm633, %v646, 0.0
        %648 = vadd.xlane.f32.xlu0 %v647
        %v649 = vpop.xlane.xlu0 %648
        %v650 = vrot.slane %v649, 4
        %v651 = vadd.f32 %v649, %v650
        %v652 = vrot.slane %v651, 2
        %v653 = vadd.f32 %v651, %v652
        %v654 = vrot.slane %v653, 1
        %v655 = vadd.f32 %v653, %v654
        %v656 = vmul.f32 %v655, %v643
        %v657 = vadd.f32 %v656, 1e-05
        %v658 = vrsqrt.pop %v657
        %v659 = vmul.f32 %v645, %v658
        %v660 = vpack.c.bf16 %v659, %v659
        %v662 = vlaneseq
        %v663 = vshrl.u32 %v662, 7
        %v664 = vsub.s32 0, %v663
        %v665 = vrot.slane %v629, %v664
        %v671 = vunpack.c.l.b16 %v621
        %v672 = vunpack.c.l.b16 %v622
        %v673 = vunpack.c.l.b16 %v623
        %v674 = vunpack.c.l.b16 %v624
        %v675 = vpack.c.b16 %v672, %v671
        %v676 = vpack.c.b16 %v674, %v673
        %v680 = vsel %vm633, %v660, 0
        %682 = vmatprep.subr.bf16.mxu0 0
        %683 = vmatpush1.bf16.msra.mxu0 %v675
        %684 = vmatprep.subr.bf16.mxu0 0
        %685 = vmatpush1.bf16.msra.mxu0 %v676
        %686 = vmatprep.subr.bf16.mxu0 0
        %687 = vmatpush1.bf16.msra.mxu0 0
        %688 = vmatprep.subr.bf16.mxu0 0
        %689 = vmatpush1.bf16.msra.mxu0 0
        %690 = vmatprep.subr.bf16.mxu0 0
        %691 = vmatpush1.bf16.msra.mxu0 0
        %692 = vmatprep.subr.bf16.mxu0 0
        %693 = vmatpush1.bf16.msra.mxu0 0
        %694 = vmatprep.subr.bf16.mxu0 0
        %695 = vmatpush1.bf16.msra.mxu0 0
        %696 = vmatprep.subr.bf16.mxu0 0
        %697 = vmatpush1.bf16.msra.mxu0 0
        %698 = vmatprep.subr.bf16.mxu0 0
        %699 = vmatpush1.bf16.msra.mxu0 0
        %700 = vmatprep.subr.bf16.mxu0 0
        %701 = vmatpush1.bf16.msra.mxu0 0
        %702 = vmatprep.subr.bf16.mxu0 0
        %703 = vmatpush1.bf16.msra.mxu0 0
        %704 = vmatprep.subr.bf16.mxu0 0
        %705 = vmatpush1.bf16.msra.mxu0 0
        %706 = vmatprep.subr.bf16.mxu0 0
        %707 = vmatpush1.bf16.msra.mxu0 0
        %708 = vmatprep.subr.bf16.mxu0 0
        %709 = vmatpush1.bf16.msra.mxu0 0
        %710 = vmatprep.subr.bf16.mxu0 0
        %711 = vmatpush1.bf16.msra.mxu0 0
        %712 = vmatprep.subr.bf16.mxu0 0
        %713 = vmatpush1.bf16.msra.mxu0 0
        %714 = vmatprep.mubr.bf16.mxu0 0
        %715 = vmatmul.mubr.bf16.gmra.mrb[0].mxu0 %v680
        %v716 = vpop.f32.mrb[0].mxu0
        %v717 = vadd.f32 %v665, %v716
        %v718 = vpop.f32.mrb[0].mxu0
        %v719 = vpop.f32.mrb[0].mxu0
        %v720 = vpop.f32.mrb[0].mxu0
        %721 = vdwg.mxu0
        %v722 = vpack.c.bf16 %v717, %v717
        %724 = vrot.lane.b32.xlu0 %v722, 96
        %v725 = vpop.permute.xlu0 %724
        %vm726 = vcmask 64512
        %v728 = vsel %vm726, %v722, 0
        %v731 = vsel %vm726, %v725, 0
        %733 = vmatprep.subr.bf16.mxu0 0
        %734 = vmatpush1.bf16.xpose.msra.mxu0 %v731
        %735 = vmatprep.subr.bf16.mxu0 0
        %736 = vmatpush1.bf16.xpose.msra.mxu0 0
        %737 = vmatprep.subr.bf16.mxu0 0
        %738 = vmatpush1.bf16.xpose.msra.mxu0 0
        %739 = vmatprep.subr.bf16.mxu0 0
        %740 = vmatpush1.bf16.xpose.msra.mxu0 0
        %741 = vmatprep.subr.bf16.mxu0 0
        %742 = vmatpush1.bf16.xpose.msra.mxu0 0
        %743 = vmatprep.subr.bf16.mxu0 0
        %744 = vmatpush1.bf16.xpose.msra.mxu0 0
        %745 = vmatprep.subr.bf16.mxu0 0
        %746 = vmatpush1.bf16.xpose.msra.mxu0 0
        %747 = vmatprep.subr.bf16.mxu0 0
        %748 = vmatpush1.bf16.xpose.msra.mxu0 0
        %749 = vmatprep.subr.bf16.mxu0 0
        %750 = vmatpush1.bf16.xpose.msra.mxu0 0
        %751 = vmatprep.subr.bf16.mxu0 0
        %752 = vmatpush1.bf16.xpose.msra.mxu0 0
        %753 = vmatprep.subr.bf16.mxu0 0
        %754 = vmatpush1.bf16.xpose.msra.mxu0 0
        %755 = vmatprep.subr.bf16.mxu0 0
        %756 = vmatpush1.bf16.xpose.msra.mxu0 0
        %757 = vmatprep.subr.bf16.mxu0 0
        %758 = vmatpush1.bf16.xpose.msra.mxu0 0
        %759 = vmatprep.subr.bf16.mxu0 0
        %760 = vmatpush1.bf16.xpose.msra.mxu0 0
        %761 = vmatprep.subr.bf16.mxu0 0
        %762 = vmatpush1.bf16.xpose.msra.mxu0 0
        %763 = vmatprep.subr.bf16.mxu0 0
        %764 = vmatpush1.bf16.xpose.msra.mxu0 0
        %765 = vmatprep.mubr.bf16.mxu0 0
        %766 = vmatmul.mubr.bf16.gmra.mrb[0].mxu0 %v728
        %v767 = vpop.f32.mrb[0].mxu0
        %v768 = vadd.f32 0.0, %v767
        %v769 = vpop.f32.mrb[0].mxu0
        %v770 = vpop.f32.mrb[0].mxu0
        %v771 = vpop.f32.mrb[0].mxu0
        %772 = vdwg.mxu0
        %v773 = vsel %vm726, %v768, -inf
        %774 = vmax.xlane.f32.xlu0 %v773
        %v775 = vpop.xlane.xlu0 %774
        %v776 = vsub.f32 %v768, %v775
        %v777 = vmul.f32 %v776, 1.442695
        %v778 = vpow.pop %v777
        %v779 = vsel %vm726, %v778, 0.0
        %780 = vadd.xlane.f32.xlu0 %v779
        %v781 = vpop.xlane.xlu0 %780
        %v782 = vrcp.pop %v781
        %v783 = vmul.f32 %v778, %v782
        %v784 = vpack.c.bf16 %v783, %v783
        %785 = vrot.lane.b32.xlu0 %v722, 64
        %v786 = vpop.permute.xlu0 %785
        %v788 = vsel %vm726, %v784, 0
        %vm790 = vcmask 1043456
        %v792 = vsel %vm790, %v786, 0
        %794 = vmatprep.subr.bf16.mxu0 0
        %795 = vmatpush1.bf16.msra.mxu0 %v792
        %796 = vmatprep.subr.bf16.mxu0 0
        %797 = vmatpush1.bf16.msra.mxu0 0
        %798 = vmatprep.subr.bf16.mxu0 0
        %799 = vmatpush1.bf16.msra.mxu0 0
        %800 = vmatprep.subr.bf16.mxu0 0
        %801 = vmatpush1.bf16.msra.mxu0 0
        %802 = vmatprep.subr.bf16.mxu0 0
        %803 = vmatpush1.bf16.msra.mxu0 0
        %804 = vmatprep.subr.bf16.mxu0 0
        %805 = vmatpush1.bf16.msra.mxu0 0
        %806 = vmatprep.subr.bf16.mxu0 0
        %807 = vmatpush1.bf16.msra.mxu0 0
        %808 = vmatprep.subr.bf16.mxu0 0
        %809 = vmatpush1.bf16.msra.mxu0 0
        %810 = vmatprep.subr.bf16.mxu0 0
        %811 = vmatpush1.bf16.msra.mxu0 0
        %812 = vmatprep.subr.bf16.mxu0 0
        %813 = vmatpush1.bf16.msra.mxu0 0
        %814 = vmatprep.subr.bf16.mxu0 0
        %815 = vmatpush1.bf16.msra.mxu0 0
        %816 = vmatprep.subr.bf16.mxu0 0
        %817 = vmatpush1.bf16.msra.mxu0 0
        %818 = vmatprep.subr.bf16.mxu0 0
        %819 = vmatpush1.bf16.msra.mxu0 0
        %820 = vmatprep.subr.bf16.mxu0 0
        %821 = vmatpush1.bf16.msra.mxu0 0
        %822 = vmatprep.subr.bf16.mxu0 0
        %823 = vmatpush1.bf16.msra.mxu0 0
        %824 = vmatprep.subr.bf16.mxu0 0
        %825 = vmatpush1.bf16.msra.mxu0 0
        %826 = vmatprep.mubr.bf16.mxu0 0
        %827 = vmatmul.mubr.bf16.gmra.mrb[0].mxu0 %v788
        %v828 = vpop.f32.mrb[0].mxu0
        %v829 = vadd.f32 0.0, %v828
        %v830 = vpop.f32.mrb[0].mxu0
        %v831 = vpop.f32.mrb[0].mxu0
        %v832 = vpop.f32.mrb[0].mxu0
        %833 = vdwg.mxu0
        %834 = vrot.lane.b32.xlu0 %v722, 120
        %v835 = vpop.permute.xlu0 %834
        %836 = vrot.lane.b32.xlu0 %v722, 88
        %v837 = vpop.permute.xlu0 %836
        %v839 = vsel %vm726, %v835, 0
        %v842 = vsel %vm726, %v837, 0
        %844 = vmatprep.subr.bf16.mxu0 0
        %845 = vmatpush1.bf16.xpose.msra.mxu0 %v842
        %846 = vmatprep.subr.bf16.mxu0 0
        %847 = vmatpush1.bf16.xpose.msra.mxu0 0
        %848 = vmatprep.subr.bf16.mxu0 0
        %849 = vmatpush1.bf16.xpose.msra.mxu0 0
        %850 = vmatprep.subr.bf16.mxu0 0
        %851 = vmatpush1.bf16.xpose.msra.mxu0 0
        %852 = vmatprep.subr.bf16.mxu0 0
        %853 = vmatpush1.bf16.xpose.msra.mxu0 0
        %854 = vmatprep.subr.bf16.mxu0 0
        %855 = vmatpush1.bf16.xpose.msra.mxu0 0
        %856 = vmatprep.subr.bf16.mxu0 0
        %857 = vmatpush1.bf16.xpose.msra.mxu0 0
        %858 = vmatprep.subr.bf16.mxu0 0
        %859 = vmatpush1.bf16.xpose.msra.mxu0 0
        %860 = vmatprep.subr.bf16.mxu0 0
        %861 = vmatpush1.bf16.xpose.msra.mxu0 0
        %862 = vmatprep.subr.bf16.mxu0 0
        %863 = vmatpush1.bf16.xpose.msra.mxu0 0
        %864 = vmatprep.subr.bf16.mxu0 0
        %865 = vmatpush1.bf16.xpose.msra.mxu0 0
        %866 = vmatprep.subr.bf16.mxu0 0
        %867 = vmatpush1.bf16.xpose.msra.mxu0 0
        %868 = vmatprep.subr.bf16.mxu0 0
        %869 = vmatpush1.bf16.xpose.msra.mxu0 0
        %870 = vmatprep.subr.bf16.mxu0 0
        %871 = vmatpush1.bf16.xpose.msra.mxu0 0
        %872 = vmatprep.subr.bf16.mxu0 0
        %873 = vmatpush1.bf16.xpose.msra.mxu0 0
        %874 = vmatprep.subr.bf16.mxu0 0
        %875 = vmatpush1.bf16.xpose.msra.mxu0 0
        %876 = vmatprep.mubr.bf16.mxu0 0
        %877 = vmatmul.mubr.bf16.gmra.mrb[0].mxu0 %v839
        %v878 = vpop.f32.mrb[0].mxu0
        %v879 = vadd.f32 0.0, %v878
        %v880 = vpop.f32.mrb[0].mxu0
        %v881 = vpop.f32.mrb[0].mxu0
        %v882 = vpop.f32.mrb[0].mxu0
        %883 = vdwg.mxu0
        %v884 = vsel %vm726, %v879, -inf
        %885 = vmax.xlane.f32.xlu0 %v884
        %v886 = vpop.xlane.xlu0 %885
        %v887 = vsub.f32 %v879, %v886
        %v888 = vmul.f32 %v887, 1.442695
        %v889 = vpow.pop %v888
        %v890 = vsel %vm726, %v889, 0.0
        %891 = vadd.xlane.f32.xlu0 %v890
        %v892 = vpop.xlane.xlu0 %891
        %v893 = vrcp.pop %v892
        %v894 = vmul.f32 %v889, %v893
        %v895 = vpack.c.bf16 %v894, %v894
        %896 = vrot.lane.b32.xlu0 %v722, 56
        %v897 = vpop.permute.xlu0 %896
        %v899 = vsel %vm726, %v895, 0
        %v902 = vsel %vm790, %v897, 0
        %904 = vmatprep.subr.bf16.mxu0 0
        %905 = vmatpush1.bf16.msra.mxu0 %v902
        %906 = vmatprep.subr.bf16.mxu0 0
        %907 = vmatpush1.bf16.msra.mxu0 0
        %908 = vmatprep.subr.bf16.mxu0 0
        %909 = vmatpush1.bf16.msra.mxu0 0
        %910 = vmatprep.subr.bf16.mxu0 0
        %911 = vmatpush1.bf16.msra.mxu0 0
        %912 = vmatprep.subr.bf16.mxu0 0
        %913 = vmatpush1.bf16.msra.mxu0 0
        %914 = vmatprep.subr.bf16.mxu0 0
        %915 = vmatpush1.bf16.msra.mxu0 0
        %916 = vmatprep.subr.bf16.mxu0 0
        %917 = vmatpush1.bf16.msra.mxu0 0
        %918 = vmatprep.subr.bf16.mxu0 0
        %919 = vmatpush1.bf16.msra.mxu0 0
        %920 = vmatprep.subr.bf16.mxu0 0
        %921 = vmatpush1.bf16.msra.mxu0 0
        %922 = vmatprep.subr.bf16.mxu0 0
        %923 = vmatpush1.bf16.msra.mxu0 0
        %924 = vmatprep.subr.bf16.mxu0 0
        %925 = vmatpush1.bf16.msra.mxu0 0
        %926 = vmatprep.subr.bf16.mxu0 0
        %927 = vmatpush1.bf16.msra.mxu0 0
        %928 = vmatprep.subr.bf16.mxu0 0
        %929 = vmatpush1.bf16.msra.mxu0 0
        %930 = vmatprep.subr.bf16.mxu0 0
        %931 = vmatpush1.bf16.msra.mxu0 0
        %932 = vmatprep.subr.bf16.mxu0 0
        %933 = vmatpush1.bf16.msra.mxu0 0
        %934 = vmatprep.subr.bf16.mxu0 0
        %935 = vmatpush1.bf16.msra.mxu0 0
        %936 = vmatprep.mubr.bf16.mxu0 0
        %937 = vmatmul.mubr.bf16.gmra.mrb[0].mxu0 %v899
        %v938 = vpop.f32.mrb[0].mxu0
        %v939 = vadd.f32 0.0, %v938
        %v940 = vpop.f32.mrb[0].mxu0
        %v941 = vpop.f32.mrb[0].mxu0
        %v942 = vpop.f32.mrb[0].mxu0
        %943 = vdwg.mxu0
        %944 = vrot.lane.b32.xlu0 %v722, 112
        %v945 = vpop.permute.xlu0 %944
        %946 = vrot.lane.b32.xlu0 %v722, 80
        %v947 = vpop.permute.xlu0 %946
        %v949 = vsel %vm726, %v945, 0
        %v952 = vsel %vm726, %v947, 0
        %954 = vmatprep.subr.bf16.mxu0 0
        %955 = vmatpush1.bf16.xpose.msra.mxu0 %v952
        %956 = vmatprep.subr.bf16.mxu0 0
        %957 = vmatpush1.bf16.xpose.msra.mxu0 0
        %958 = vmatprep.subr.bf16.mxu0 0
        %959 = vmatpush1.bf16.xpose.msra.mxu0 0
        %960 = vmatprep.subr.bf16.mxu0 0
        %961 = vmatpush1.bf16.xpose.msra.mxu0 0
        %962 = vmatprep.subr.bf16.mxu0 0
        %963 = vmatpush1.bf16.xpose.msra.mxu0 0
        %964 = vmatprep.subr.bf16.mxu0 0
        %965 = vmatpush1.bf16.xpose.msra.mxu0 0
        %966 = vmatprep.subr.bf16.mxu0 0
        %967 = vmatpush1.bf16.xpose.msra.mxu0 0
        %968 = vmatprep.subr.bf16.mxu0 0
        %969 = vmatpush1.bf16.xpose.msra.mxu0 0
        %970 = vmatprep.subr.bf16.mxu0 0
        %971 = vmatpush1.bf16.xpose.msra.mxu0 0
        %972 = vmatprep.subr.bf16.mxu0 0
        %973 = vmatpush1.bf16.xpose.msra.mxu0 0
        %974 = vmatprep.subr.bf16.mxu0 0
        %975 = vmatpush1.bf16.xpose.msra.mxu0 0
        %976 = vmatprep.subr.bf16.mxu0 0
        %977 = vmatpush1.bf16.xpose.msra.mxu0 0
        %978 = vmatprep.subr.bf16.mxu0 0
        %979 = vmatpush1.bf16.xpose.msra.mxu0 0
        %980 = vmatprep.subr.bf16.mxu0 0
        %981 = vmatpush1.bf16.xpose.msra.mxu0 0
        %982 = vmatprep.subr.bf16.mxu0 0
        %983 = vmatpush1.bf16.xpose.msra.mxu0 0
        %984 = vmatprep.subr.bf16.mxu0 0
        %985 = vmatpush1.bf16.xpose.msra.mxu0 0
        %986 = vmatprep.mubr.bf16.mxu0 0
        %987 = vmatmul.mubr.bf16.gmra.mrb[0].mxu0 %v949
        %v988 = vpop.f32.mrb[0].mxu0
        %v989 = vadd.f32 0.0, %v988
        %v990 = vpop.f32.mrb[0].mxu0
        %v991 = vpop.f32.mrb[0].mxu0
        %v992 = vpop.f32.mrb[0].mxu0
        %993 = vdwg.mxu0
        %v994 = vsel %vm726, %v989, -inf
        %995 = vmax.xlane.f32.xlu0 %v994
        %v996 = vpop.xlane.xlu0 %995
        %v997 = vsub.f32 %v989, %v996
        %v998 = vmul.f32 %v997, 1.442695
        %v999 = vpow.pop %v998
        %v1000 = vsel %vm726, %v999, 0.0
        %1001 = vadd.xlane.f32.xlu0 %v1000
        %v1002 = vpop.xlane.xlu0 %1001
        %v1003 = vrcp.pop %v1002
        %v1004 = vmul.f32 %v999, %v1003
        %v1005 = vpack.c.bf16 %v1004, %v1004
        %1006 = vrot.lane.b32.xlu0 %v722, 48
        %v1007 = vpop.permute.xlu0 %1006
        %v1009 = vsel %vm726, %v1005, 0
        %v1012 = vsel %vm790, %v1007, 0
        %1014 = vmatprep.subr.bf16.mxu0 0
        %1015 = vmatpush1.bf16.msra.mxu0 %v1012
        %1016 = vmatprep.subr.bf16.mxu0 0
        %1017 = vmatpush1.bf16.msra.mxu0 0
        %1018 = vmatprep.subr.bf16.mxu0 0
        %1019 = vmatpush1.bf16.msra.mxu0 0
        %1020 = vmatprep.subr.bf16.mxu0 0
        %1021 = vmatpush1.bf16.msra.mxu0 0
        %1022 = vmatprep.subr.bf16.mxu0 0
        %1023 = vmatpush1.bf16.msra.mxu0 0
        %1024 = vmatprep.subr.bf16.mxu0 0
        %1025 = vmatpush1.bf16.msra.mxu0 0
        %1026 = vmatprep.subr.bf16.mxu0 0
        %1027 = vmatpush1.bf16.msra.mxu0 0
        %1028 = vmatprep.subr.bf16.mxu0 0
        %1029 = vmatpush1.bf16.msra.mxu0 0
        %1030 = vmatprep.subr.bf16.mxu0 0
        %1031 = vmatpush1.bf16.msra.mxu0 0
        %1032 = vmatprep.subr.bf16.mxu0 0
        %1033 = vmatpush1.bf16.msra.mxu0 0
        %1034 = vmatprep.subr.bf16.mxu0 0
        %1035 = vmatpush1.bf16.msra.mxu0 0
        %1036 = vmatprep.subr.bf16.mxu0 0
        %1037 = vmatpush1.bf16.msra.mxu0 0
        %1038 = vmatprep.subr.bf16.mxu0 0
        %1039 = vmatpush1.bf16.msra.mxu0 0
        %1040 = vmatprep.subr.bf16.mxu0 0
        %1041 = vmatpush1.bf16.msra.mxu0 0
        %1042 = vmatprep.subr.bf16.mxu0 0
        %1043 = vmatpush1.bf16.msra.mxu0 0
        %1044 = vmatprep.subr.bf16.mxu0 0
        %1045 = vmatpush1.bf16.msra.mxu0 0
        %1046 = vmatprep.mubr.bf16.mxu0 0
        %1047 = vmatmul.mubr.bf16.gmra.mrb[0].mxu0 %v1009
        %v1048 = vpop.f32.mrb[0].mxu0
        %v1049 = vadd.f32 0.0, %v1048
        %v1050 = vpop.f32.mrb[0].mxu0
        %v1051 = vpop.f32.mrb[0].mxu0
        %v1052 = vpop.f32.mrb[0].mxu0
        %1053 = vdwg.mxu0
        %1054 = vrot.lane.b32.xlu0 %v722, 104
        %v1055 = vpop.permute.xlu0 %1054
        %1056 = vrot.lane.b32.xlu0 %v722, 72
        %v1057 = vpop.permute.xlu0 %1056
        %v1059 = vsel %vm726, %v1055, 0
        %v1062 = vsel %vm726, %v1057, 0
        %1064 = vmatprep.subr.bf16.mxu0 0
        %1065 = vmatpush1.bf16.xpose.msra.mxu0 %v1062
        %1066 = vmatprep.subr.bf16.mxu0 0
        %1067 = vmatpush1.bf16.xpose.msra.mxu0 0
        %1068 = vmatprep.subr.bf16.mxu0 0
        %1069 = vmatpush1.bf16.xpose.msra.mxu0 0
        %1070 = vmatprep.subr.bf16.mxu0 0
        %1071 = vmatpush1.bf16.xpose.msra.mxu0 0
        %1072 = vmatprep.subr.bf16.mxu0 0
        %1073 = vmatpush1.bf16.xpose.msra.mxu0 0
        %1074 = vmatprep.subr.bf16.mxu0 0
        %1075 = vmatpush1.bf16.xpose.msra.mxu0 0
        %1076 = vmatprep.subr.bf16.mxu0 0
        %1077 = vmatpush1.bf16.xpose.msra.mxu0 0
        %1078 = vmatprep.subr.bf16.mxu0 0
        %1079 = vmatpush1.bf16.xpose.msra.mxu0 0
        %1080 = vmatprep.subr.bf16.mxu0 0
        %1081 = vmatpush1.bf16.xpose.msra.mxu0 0
        %1082 = vmatprep.subr.bf16.mxu0 0
        %1083 = vmatpush1.bf16.xpose.msra.mxu0 0
        %1084 = vmatprep.subr.bf16.mxu0 0
        %1085 = vmatpush1.bf16.xpose.msra.mxu0 0
        %1086 = vmatprep.subr.bf16.mxu0 0
        %1087 = vmatpush1.bf16.xpose.msra.mxu0 0
        %1088 = vmatprep.subr.bf16.mxu0 0
        %1089 = vmatpush1.bf16.xpose.msra.mxu0 0
        %1090 = vmatprep.subr.bf16.mxu0 0
        %1091 = vmatpush1.bf16.xpose.msra.mxu0 0
        %1092 = vmatprep.subr.bf16.mxu0 0
        %1093 = vmatpush1.bf16.xpose.msra.mxu0 0
        %1094 = vmatprep.subr.bf16.mxu0 0
        %1095 = vmatpush1.bf16.xpose.msra.mxu0 0
        %1096 = vmatprep.mubr.bf16.mxu0 0
        %1097 = vmatmul.mubr.bf16.gmra.mrb[0].mxu0 %v1059
        %v1098 = vpop.f32.mrb[0].mxu0
        %v1099 = vadd.f32 0.0, %v1098
        %v1100 = vpop.f32.mrb[0].mxu0
        %v1101 = vpop.f32.mrb[0].mxu0
        %v1102 = vpop.f32.mrb[0].mxu0
        %1103 = vdwg.mxu0
        %v1104 = vsel %vm726, %v1099, -inf
        %1105 = vmax.xlane.f32.xlu0 %v1104
        %v1106 = vpop.xlane.xlu0 %1105
        %v1107 = vsub.f32 %v1099, %v1106
        %v1108 = vmul.f32 %v1107, 1.442695
        %v1109 = vpow.pop %v1108
        %v1110 = vsel %vm726, %v1109, 0.0
        %1111 = vadd.xlane.f32.xlu0 %v1110
        %v1112 = vpop.xlane.xlu0 %1111
        %v1113 = vrcp.pop %v1112
        %v1114 = vmul.f32 %v1109, %v1113
        %v1115 = vpack.c.bf16 %v1114, %v1114
        %1116 = vrot.lane.b32.xlu0 %v722, 40
        %v1117 = vpop.permute.xlu0 %1116
        %v1119 = vsel %vm726, %v1115, 0
        %v1122 = vsel %vm790, %v1117, 0
        %1124 = vmatprep.subr.bf16.mxu0 0
        %1125 = vmatpush1.bf16.msra.mxu0 %v1122
        %1126 = vmatprep.subr.bf16.mxu0 0
        %1127 = vmatpush1.bf16.msra.mxu0 0
        %1128 = vmatprep.subr.bf16.mxu0 0
        %1129 = vmatpush1.bf16.msra.mxu0 0
        %1130 = vmatprep.subr.bf16.mxu0 0
        %1131 = vmatpush1.bf16.msra.mxu0 0
        %1132 = vmatprep.subr.bf16.mxu0 0
        %1133 = vmatpush1.bf16.msra.mxu0 0
        %1134 = vmatprep.subr.bf16.mxu0 0
        %1135 = vmatpush1.bf16.msra.mxu0 0
        %1136 = vmatprep.subr.bf16.mxu0 0
        %1137 = vmatpush1.bf16.msra.mxu0 0
        %1138 = vmatprep.subr.bf16.mxu0 0
        %1139 = vmatpush1.bf16.msra.mxu0 0
        %1140 = vmatprep.subr.bf16.mxu0 0
        %1141 = vmatpush1.bf16.msra.mxu0 0
        %1142 = vmatprep.subr.bf16.mxu0 0
        %1143 = vmatpush1.bf16.msra.mxu0 0
        %1144 = vmatprep.subr.bf16.mxu0 0
        %1145 = vmatpush1.bf16.msra.mxu0 0
        %1146 = vmatprep.subr.bf16.mxu0 0
        %1147 = vmatpush1.bf16.msra.mxu0 0
        %1148 = vmatprep.subr.bf16.mxu0 0
        %1149 = vmatpush1.bf16.msra.mxu0 0
        %1150 = vmatprep.subr.bf16.mxu0 0
        %1151 = vmatpush1.bf16.msra.mxu0 0
        %1152 = vmatprep.subr.bf16.mxu0 0
        %1153 = vmatpush1.bf16.msra.mxu0 0
        %1154 = vmatprep.subr.bf16.mxu0 0
        %1155 = vmatpush1.bf16.msra.mxu0 0
        %1156 = vmatprep.mubr.bf16.mxu0 0
        %1157 = vmatmul.mubr.bf16.gmra.mrb[0].mxu0 %v1119
        %v1158 = vpop.f32.mrb[0].mxu0
        %v1159 = vadd.f32 0.0, %v1158
        %v1160 = vpop.f32.mrb[0].mxu0
        %v1161 = vpop.f32.mrb[0].mxu0
        %v1162 = vpop.f32.mrb[0].mxu0
        %1163 = vdwg.mxu0
        %1165 = vrot.lane.b32.xlu0 %v939, 8
        %v1166 = vpop.permute.xlu0 %1165
        %1169 = vrot.lane.b32.xlu0 %v1049, 16
        %v1170 = vpop.permute.xlu0 %1169
        %1173 = vrot.lane.b32.xlu0 %v1159, 24
        %v1174 = vpop.permute.xlu0 %1173
        %v1176 = vsel %vm726, %v829, %v1166
        %vm1177 = vcmask 130048
        %v1178 = vsel %vm1177, %v1176, %v1170
        %vm1179 = vcmask 195584
        %v1180 = vsel %vm1179, %v1178, %v1174
        %v1181 = vpack.c.bf16 %v1180, %v1180
        %1182 = vrot.lane.b32.xlu0 %v675, 32
        %v1183 = vpop.permute.xlu0 %1182
        %1184 = vrot.lane.b32.xlu0 %v676, 32
        %v1185 = vpop.permute.xlu0 %1184
        %1188 = vrot.lane.b32.xlu0 %v665, 32
        %v1189 = vpop.permute.xlu0 %1188
        %v1192 = vsel %vm633, %v1181, 0
        %1194 = vmatprep.subr.bf16.mxu0 0
        %1195 = vmatpush1.bf16.msra.mxu0 %v1183
        %1196 = vmatprep.subr.bf16.mxu0 0
        %1197 = vmatpush1.bf16.msra.mxu0 %v1185
        %1198 = vmatprep.subr.bf16.mxu0 0
        %1199 = vmatpush1.bf16.msra.mxu0 0
        %1200 = vmatprep.subr.bf16.mxu0 0
        %1201 = vmatpush1.bf16.msra.mxu0 0
        %1202 = vmatprep.subr.bf16.mxu0 0
        %1203 = vmatpush1.bf16.msra.mxu0 0
        %1204 = vmatprep.subr.bf16.mxu0 0
        %1205 = vmatpush1.bf16.msra.mxu0 0
        %1206 = vmatprep.subr.bf16.mxu0 0
        %1207 = vmatpush1.bf16.msra.mxu0 0
        %1208 = vmatprep.subr.bf16.mxu0 0
        %1209 = vmatpush1.bf16.msra.mxu0 0
        %1210 = vmatprep.subr.bf16.mxu0 0
        %1211 = vmatpush1.bf16.msra.mxu0 0
        %1212 = vmatprep.subr.bf16.mxu0 0
        %1213 = vmatpush1.bf16.msra.mxu0 0
        %1214 = vmatprep.subr.bf16.mxu0 0
        %1215 = vmatpush1.bf16.msra.mxu0 0
        %1216 = vmatprep.subr.bf16.mxu0 0
        %1217 = vmatpush1.bf16.msra.mxu0 0
        %1218 = vmatprep.subr.bf16.mxu0 0
        %1219 = vmatpush1.bf16.msra.mxu0 0
        %1220 = vmatprep.subr.bf16.mxu0 0
        %1221 = vmatpush1.bf16.msra.mxu0 0
        %1222 = vmatprep.subr.bf16.mxu0 0
        %1223 = vmatpush1.bf16.msra.mxu0 0
        %1224 = vmatprep.subr.bf16.mxu0 0
        %1225 = vmatpush1.bf16.msra.mxu0 0
        %1226 = vmatprep.mubr.bf16.mxu0 0
        %1227 = vmatmul.mubr.bf16.gmra.mrb[0].mxu0 %v1192
        %v1228 = vpop.f32.mrb[0].mxu0
        %v1229 = vadd.f32 %v1189, %v1228
        %v1230 = vpop.f32.mrb[0].mxu0
        %v1231 = vpop.f32.mrb[0].mxu0
        %v1232 = vpop.f32.mrb[0].mxu0
        %1233 = vdwg.mxu0
        %v1234 = vadd.f32 %v620, %v1229
        %v1235 = vsel %vm633, %v1234, 0.0
        %1236 = vadd.xlane.f32.xlu0 %v1235
        %v1237 = vpop.xlane.xlu0 %1236
        %v1238 = vrot.slane %v1237, 4
        %v1239 = vadd.f32 %v1237, %v1238
        %v1240 = vrot.slane %v1239, 2
        %v1241 = vadd.f32 %v1239, %v1240
        %v1242 = vrot.slane %v1241, 1
        %v1243 = vadd.f32 %v1241, %v1242
        %v1244 = vmul.f32 %v1243, %v643
        %v1245 = vsub.f32 %v1234, %v1244
        %v1246 = vmul.f32 %v1245, %v1245
        %v1247 = vsel %vm633, %v1246, 0.0
        %1248 = vadd.xlane.f32.xlu0 %v1247
        %v1249 = vpop.xlane.xlu0 %1248
        %v1250 = vrot.slane %v1249, 4
        %v1251 = vadd.f32 %v1249, %v1250
        %v1252 = vrot.slane %v1251, 2
        %v1253 = vadd.f32 %v1251, %v1252
        %v1254 = vrot.slane %v1253, 1
        %v1255 = vadd.f32 %v1253, %v1254
        %v1256 = vmul.f32 %v1255, %v643
        %v1257 = vadd.f32 %v1256, 1e-05
        %v1258 = vrsqrt.pop %v1257
        %v1259 = vmul.f32 %v1245, %v1258
        %1260 = vxpose.xlu0.b32.start [1/16] %v1259, 128
        %1261 = vxpose.xlu0.b32.cont [2/16] 0.0, 128
        %1262 = vxpose.xlu0.b32.cont [3/16] 0.0, 128
        %1263 = vxpose.xlu0.b32.cont [4/16] 0.0, 128
        %1264 = vxpose.xlu0.b32.cont [5/16] 0.0, 128
        %1265 = vxpose.xlu0.b32.cont [6/16] 0.0, 128
        %1266 = vxpose.xlu0.b32.cont [7/16] 0.0, 128
        %1267 = vxpose.xlu0.b32.cont [8/16] 0.0, 128
        %1268 = vxpose.xlu0.b32.cont [9/16] 0.0, 128
        %1269 = vxpose.xlu0.b32.cont [10/16] 0.0, 128
        %1270 = vxpose.xlu0.b32.cont [11/16] 0.0, 128
        %1271 = vxpose.xlu0.b32.cont [12/16] 0.0, 128
        %1272 = vxpose.xlu0.b32.cont [13/16] 0.0, 128
        %1273 = vxpose.xlu0.b32.cont [14/16] 0.0, 128
        %1274 = vxpose.xlu0.b32.cont [15/16] 0.0, 128
        %1275 = vxpose.xlu0.b32.end [16/16] 0.0, 128
        %v1276 = vpop.trf.xlu0
        %v1277 = vpop.trf.xlu0
        %v1278 = vpop.trf.xlu0
        %v1279 = vpop.trf.xlu0
        %v1280 = vpop.trf.xlu0
        %v1281 = vpop.trf.xlu0
        %v1282 = vpop.trf.xlu0
        %v1283 = vpop.trf.xlu0
        %v1284 = vpop.trf.xlu0
        %v1285 = vpop.trf.xlu0
        %v1286 = vpop.trf.xlu0
        %v1287 = vpop.trf.xlu0
        %v1288 = vpop.trf.xlu0
        %v1289 = vpop.trf.xlu0
        %v1290 = vpop.trf.xlu0
        %v1291 = vpop.trf.xlu0
        %v1292 = vpack.c.bf16 %v1277, %v1276
        %v1293 = vpack.c.bf16 %v1279, %v1278
        %v1295 = vlaneseq
        %v1296 = vshrl.u32 %v1295, 7
        %v1297 = vsub.s32 0, %v1296
        %v1298 = vrot.slane %v632, %v1297
        %v1301 = vsel %vm726, %v1292, 0
        %v1304 = vsel %vm726, %v1293, 0
        %v1307 = vsel %vm790, %v631, 0
        %1309 = vmatprep.subr.bf16.mxu0 0
        %1310 = vmatpush1.bf16.msra.mxu0 %v1307
        %1311 = vmatprep.subr.bf16.mxu0 0
        %1312 = vmatpush1.bf16.msra.mxu0 0
        %1313 = vmatprep.subr.bf16.mxu0 0
        %1314 = vmatpush1.bf16.msra.mxu0 0
        %1315 = vmatprep.subr.bf16.mxu0 0
        %1316 = vmatpush1.bf16.msra.mxu0 0
        %1317 = vmatprep.subr.bf16.mxu0 0
        %1318 = vmatpush1.bf16.msra.mxu0 0
        %1319 = vmatprep.subr.bf16.mxu0 0
        %1320 = vmatpush1.bf16.msra.mxu0 0
        %1321 = vmatprep.subr.bf16.mxu0 0
        %1322 = vmatpush1.bf16.msra.mxu0 0
        %1323 = vmatprep.subr.bf16.mxu0 0
        %1324 = vmatpush1.bf16.msra.mxu0 0
        %1325 = vmatprep.subr.bf16.mxu0 0
        %1326 = vmatpush1.bf16.msra.mxu0 0
        %1327 = vmatprep.subr.bf16.mxu0 0
        %1328 = vmatpush1.bf16.msra.mxu0 0
        %1329 = vmatprep.subr.bf16.mxu0 0
        %1330 = vmatpush1.bf16.msra.mxu0 0
        %1331 = vmatprep.subr.bf16.mxu0 0
        %1332 = vmatpush1.bf16.msra.mxu0 0
        %1333 = vmatprep.subr.bf16.mxu0 0
        %1334 = vmatpush1.bf16.msra.mxu0 0
        %1335 = vmatprep.subr.bf16.mxu0 0
        %1336 = vmatpush1.bf16.msra.mxu0 0
        %1337 = vmatprep.subr.bf16.mxu0 0
        %1338 = vmatpush1.bf16.msra.mxu0 0
        %1339 = vmatprep.subr.bf16.mxu0 0
        %1340 = vmatpush1.bf16.msra.mxu0 0
        %1341 = vmatprep.mubr.bf16.mxu0 0
        %1342 = vmatmul.mubr.bf16.gmra.mrb[0].mxu0 %v1301
        %v1343 = vpop.f32.mrb[0].mxu0
        %v1344 = vadd.f32 %v1298, %v1343
        %v1345 = vpop.f32.mrb[0].mxu0
        %v1346 = vpop.f32.mrb[0].mxu0
        %v1347 = vadd.f32 %v1298, %v1346
        %v1348 = vpop.f32.mrb[0].mxu0
        %1349 = vmatprep.mubr.bf16.mxu0 0
        %1350 = vmatmul.mubr.bf16.gmra.mrb[0].mxu0 %v1304
        %v1351 = vpop.f32.mrb[0].mxu0
        %v1352 = vadd.f32 %v1298, %v1351
        %v1353 = vpop.f32.mrb[0].mxu0
        %v1354 = vpop.f32.mrb[0].mxu0
        %v1355 = vadd.f32 %v1298, %v1354
        %v1356 = vpop.f32.mrb[0].mxu0
        %1357 = vdwg.mxu0
        %v1358 = vpack.c.bf16 %v1347, %v1344
        %v1359 = vpack.c.bf16 %v1355, %v1352
        %1362 = vrot.lane.b32.xlu0 %v1358, 120
        %v1363 = vpop.permute.xlu0 %1362
        %1364 = vrot.lane.b32.xlu0 %v1359, 120
        %v1365 = vpop.permute.xlu0 %1364
        %vm1366 = vcmask 15360
        %v1368 = vsel %vm1366, %v1358, 0
        %v1371 = vsel %vm1366, %v1359, 0
        %v1374 = vsel %vm1366, %v1363, 0
        %v1377 = vsel %vm1366, %v1365, 0
        %1379 = vmatprep.subr.bf16.mxu0 0
        %1380 = vmatpush1.bf16.xpose.msra.mxu0 %v1374
        %1381 = vmatprep.subr.bf16.mxu0 0
        %1382 = vmatpush1.bf16.xpose.msra.mxu0 %v1377
        %1383 = vmatprep.subr.bf16.mxu0 0
        %1384 = vmatpush1.bf16.xpose.msra.mxu0 0
        %1385 = vmatprep.subr.bf16.mxu0 0
        %1386 = vmatpush1.bf16.xpose.msra.mxu0 0
        %1387 = vmatprep.subr.bf16.mxu0 0
        %1388 = vmatpush1.bf16.xpose.msra.mxu0 0
        %1389 = vmatprep.subr.bf16.mxu0 0
        %1390 = vmatpush1.bf16.xpose.msra.mxu0 0
        %1391 = vmatprep.subr.bf16.mxu0 0
        %1392 = vmatpush1.bf16.xpose.msra.mxu0 0
        %1393 = vmatprep.subr.bf16.mxu0 0
        %1394 = vmatpush1.bf16.xpose.msra.mxu0 0
        %1395 = vmatprep.subr.bf16.mxu0 0
        %1396 = vmatpush1.bf16.xpose.msra.mxu0 0
        %1397 = vmatprep.subr.bf16.mxu0 0
        %1398 = vmatpush1.bf16.xpose.msra.mxu0 0
        %1399 = vmatprep.subr.bf16.mxu0 0
        %1400 = vmatpush1.bf16.xpose.msra.mxu0 0
        %1401 = vmatprep.subr.bf16.mxu0 0
        %1402 = vmatpush1.bf16.xpose.msra.mxu0 0
        %1403 = vmatprep.subr.bf16.mxu0 0
        %1404 = vmatpush1.bf16.xpose.msra.mxu0 0
        %1405 = vmatprep.subr.bf16.mxu0 0
        %1406 = vmatpush1.bf16.xpose.msra.mxu0 0
        %1407 = vmatprep.subr.bf16.mxu0 0
        %1408 = vmatpush1.bf16.xpose.msra.mxu0 0
        %1409 = vmatprep.subr.bf16.mxu0 0
        %1410 = vmatpush1.bf16.xpose.msra.mxu0 0
        %1411 = vmatprep.mubr.bf16.mxu0 0
        %1412 = vmatmul.mubr.bf16.gmra.mrb[0].mxu0 %v1368
        %v1413 = vpop.f32.mrb[0].mxu0
        %v1414 = vadd.f32 0.0, %v1413
        %v1415 = vpop.f32.mrb[0].mxu0
        %v1416 = vpop.f32.mrb[0].mxu0
        %v1417 = vadd.f32 0.0, %v1416
        %v1418 = vpop.f32.mrb[0].mxu0
        %1419 = vmatprep.mubr.bf16.mxu0 0
        %1420 = vmatmul.mubr.bf16.gmra.mrb[0].mxu0 %v1371
        %v1421 = vpop.f32.mrb[0].mxu0
        %v1422 = vadd.f32 0.0, %v1421
        %v1423 = vpop.f32.mrb[0].mxu0
        %v1424 = vpop.f32.mrb[0].mxu0
        %v1425 = vadd.f32 0.0, %v1424
        %v1426 = vpop.f32.mrb[0].mxu0
        %1427 = vdwg.mxu0
        %v1428 = vsel %vm633, %v1414, -inf
        %1429 = vmax.xlane.f32.xlu0 %v1428
        %v1430 = vpop.xlane.xlu0 %1429
        %v1431 = vsel %vm633, %v1417, -inf
        %1432 = vmax.xlane.f32.xlu0 %v1431
        %v1433 = vpop.xlane.xlu0 %1432
        %v1434 = vsel %vm633, %v1422, -inf
        %1435 = vmax.xlane.f32.xlu0 %v1434
        %v1436 = vpop.xlane.xlu0 %1435
        %v1437 = vsel %vm633, %v1425, -inf
        %1438 = vmax.xlane.f32.xlu0 %v1437
        %v1439 = vpop.xlane.xlu0 %1438
        %v1440 = vsub.f32 %v1414, %v1430
        %v1441 = vsub.f32 %v1417, %v1433
        %v1442 = vsub.f32 %v1422, %v1436
        %v1443 = vsub.f32 %v1425, %v1439
        %v1444 = vmul.f32 %v1440, 1.442695
        %v1445 = vpow.pop %v1444
        %v1446 = vmul.f32 %v1441, 1.442695
        %v1447 = vpow.pop %v1446
        %v1448 = vmul.f32 %v1442, 1.442695
        %v1449 = vpow.pop %v1448
        %v1450 = vmul.f32 %v1443, 1.442695
        %v1451 = vpow.pop %v1450
        %v1452 = vsel %vm633, %v1445, 0.0
        %1453 = vadd.xlane.f32.xlu0 %v1452
        %v1454 = vpop.xlane.xlu0 %1453
        %v1455 = vsel %vm633, %v1447, 0.0
        %1456 = vadd.xlane.f32.xlu0 %v1455
        %v1457 = vpop.xlane.xlu0 %1456
        %v1458 = vsel %vm633, %v1449, 0.0
        %1459 = vadd.xlane.f32.xlu0 %v1458
        %v1460 = vpop.xlane.xlu0 %1459
        %v1461 = vsel %vm633, %v1451, 0.0
        %1462 = vadd.xlane.f32.xlu0 %v1461
        %v1463 = vpop.xlane.xlu0 %1462
        %v1464 = vrcp.pop %v1454
        %v1465 = vrcp.pop %v1457
        %v1466 = vrcp.pop %v1460
        %v1467 = vrcp.pop %v1463
        %v1468 = vmul.f32 %v1445, %v1464
        %v1469 = vmul.f32 %v1447, %v1465
        %v1470 = vmul.f32 %v1449, %v1466
        %v1471 = vmul.f32 %v1451, %v1467
        %v1472 = vpack.c.bf16 %v1469, %v1468
        %v1473 = vpack.c.bf16 %v1471, %v1470
        %1474 = vrot.lane.b32.xlu0 %v1358, 112
        %v1475 = vpop.permute.xlu0 %1474
        %1476 = vrot.lane.b32.xlu0 %v1359, 112
        %v1477 = vpop.permute.xlu0 %1476
        %v1481 = vsel %vm633, %v1472, 0
        %v1484 = vsel %vm633, %v1473, 0
        %1486 = vmatprep.subr.bf16.mxu0 0
        %1487 = vmatpush1.bf16.msra.mxu0 %v1475
        %1488 = vmatprep.subr.bf16.mxu0 0
        %1489 = vmatpush1.bf16.msra.mxu0 %v1477
        %1490 = vmatprep.subr.bf16.mxu0 0
        %1491 = vmatpush1.bf16.msra.mxu0 0
        %1492 = vmatprep.subr.bf16.mxu0 0
        %1493 = vmatpush1.bf16.msra.mxu0 0
        %1494 = vmatprep.subr.bf16.mxu0 0
        %1495 = vmatpush1.bf16.msra.mxu0 0
        %1496 = vmatprep.subr.bf16.mxu0 0
        %1497 = vmatpush1.bf16.msra.mxu0 0
        %1498 = vmatprep.subr.bf16.mxu0 0
        %1499 = vmatpush1.bf16.msra.mxu0 0
        %1500 = vmatprep.subr.bf16.mxu0 0
        %1501 = vmatpush1.bf16.msra.mxu0 0
        %1502 = vmatprep.subr.bf16.mxu0 0
        %1503 = vmatpush1.bf16.msra.mxu0 0
        %1504 = vmatprep.subr.bf16.mxu0 0
        %1505 = vmatpush1.bf16.msra.mxu0 0
        %1506 = vmatprep.subr.bf16.mxu0 0
        %1507 = vmatpush1.bf16.msra.mxu0 0
        %1508 = vmatprep.subr.bf16.mxu0 0
        %1509 = vmatpush1.bf16.msra.mxu0 0
        %1510 = vmatprep.subr.bf16.mxu0 0
        %1511 = vmatpush1.bf16.msra.mxu0 0
        %1512 = vmatprep.subr.bf16.mxu0 0
        %1513 = vmatpush1.bf16.msra.mxu0 0
        %1514 = vmatprep.subr.bf16.mxu0 0
        %1515 = vmatpush1.bf16.msra.mxu0 0
        %1516 = vmatprep.subr.bf16.mxu0 0
        %1517 = vmatpush1.bf16.msra.mxu0 0
        %1518 = vmatprep.mubr.bf16.mxu0 0
        %1519 = vmatmul.mubr.bf16.gmra.mrb[0].mxu0 %v1481
        %v1520 = vpop.f32.mrb[0].mxu0
        %v1521 = vadd.f32 0.0, %v1520
        %v1522 = vpop.f32.mrb[0].mxu0
        %v1523 = vpop.f32.mrb[0].mxu0
        %v1524 = vadd.f32 0.0, %v1523
        %v1525 = vpop.f32.mrb[0].mxu0
        %1526 = vmatprep.mubr.bf16.mxu0 0
        %1527 = vmatmul.mubr.bf16.gmra.mrb[0].mxu0 %v1484
        %v1528 = vpop.f32.mrb[0].mxu0
        %v1529 = vadd.f32 0.0, %v1528
        %v1530 = vpop.f32.mrb[0].mxu0
        %v1531 = vpop.f32.mrb[0].mxu0
        %v1532 = vadd.f32 0.0, %v1531
        %v1533 = vpop.f32.mrb[0].mxu0
        %1534 = vdwg.mxu0
        %1535 = vrot.lane.b32.xlu0 %v1358, 126
        %v1536 = vpop.permute.xlu0 %1535
        %1537 = vrot.lane.b32.xlu0 %v1359, 126
        %v1538 = vpop.permute.xlu0 %1537
        %1539 = vrot.lane.b32.xlu0 %v1358, 118
        %v1540 = vpop.permute.xlu0 %1539
        %1541 = vrot.lane.b32.xlu0 %v1359, 118
        %v1542 = vpop.permute.xlu0 %1541
        %v1544 = vsel %vm1366, %v1536, 0
        %v1547 = vsel %vm1366, %v1538, 0
        %v1550 = vsel %vm1366, %v1540, 0
        %v1553 = vsel %vm1366, %v1542, 0
        %1555 = vmatprep.subr.bf16.mxu0 0
        %1556 = vmatpush1.bf16.xpose.msra.mxu0 %v1550
        %1557 = vmatprep.subr.bf16.mxu0 0
        %1558 = vmatpush1.bf16.xpose.msra.mxu0 %v1553
        %1559 = vmatprep.subr.bf16.mxu0 0
        %1560 = vmatpush1.bf16.xpose.msra.mxu0 0
        %1561 = vmatprep.subr.bf16.mxu0 0
        %1562 = vmatpush1.bf16.xpose.msra.mxu0 0
        %1563 = vmatprep.subr.bf16.mxu0 0
        %1564 = vmatpush1.bf16.xpose.msra.mxu0 0
        %1565 = vmatprep.subr.bf16.mxu0 0
        %1566 = vmatpush1.bf16.xpose.msra.mxu0 0
        %1567 = vmatprep.subr.bf16.mxu0 0
        %1568 = vmatpush1.bf16.xpose.msra.mxu0 0
        %1569 = vmatprep.subr.bf16.mxu0 0
        %1570 = vmatpush1.bf16.xpose.msra.mxu0 0
        %1571 = vmatprep.subr.bf16.mxu0 0
        %1572 = vmatpush1.bf16.xpose.msra.mxu0 0
        %1573 = vmatprep.subr.bf16.mxu0 0
        %1574 = vmatpush1.bf16.xpose.msra.mxu0 0
        %1575 = vmatprep.subr.bf16.mxu0 0
        %1576 = vmatpush1.bf16.xpose.msra.mxu0 0
        %1577 = vmatprep.subr.bf16.mxu0 0
        %1578 = vmatpush1.bf16.xpose.msra.mxu0 0
        %1579 = vmatprep.subr.bf16.mxu0 0
        %1580 = vmatpush1.bf16.xpose.msra.mxu0 0
        %1581 = vmatprep.subr.bf16.mxu0 0
        %1582 = vmatpush1.bf16.xpose.msra.mxu0 0
        %1583 = vmatprep.subr.bf16.mxu0 0
        %1584 = vmatpush1.bf16.xpose.msra.mxu0 0
        %1585 = vmatprep.subr.bf16.mxu0 0
        %1586 = vmatpush1.bf16.xpose.msra.mxu0 0
        %1587 = vmatprep.mubr.bf16.mxu0 0
        %1588 = vmatmul.mubr.bf16.gmra.mrb[0].mxu0 %v1544
        %v1589 = vpop.f32.mrb[0].mxu0
        %v1590 = vadd.f32 0.0, %v1589
        %v1591 = vpop.f32.mrb[0].mxu0
        %v1592 = vpop.f32.mrb[0].mxu0
        %v1593 = vadd.f32 0.0, %v1592
        %v1594 = vpop.f32.mrb[0].mxu0
        %1595 = vmatprep.mubr.bf16.mxu0 0
        %1596 = vmatmul.mubr.bf16.gmra.mrb[0].mxu0 %v1547
        %v1597 = vpop.f32.mrb[0].mxu0
        %v1598 = vadd.f32 0.0, %v1597
        %v1599 = vpop.f32.mrb[0].mxu0
        %v1600 = vpop.f32.mrb[0].mxu0
        %v1601 = vadd.f32 0.0, %v1600
        %v1602 = vpop.f32.mrb[0].mxu0
        %1603 = vdwg.mxu0
        %v1604 = vsel %vm633, %v1590, -inf
        %1605 = vmax.xlane.f32.xlu0 %v1604
        %v1606 = vpop.xlane.xlu0 %1605
        %v1607 = vsel %vm633, %v1593, -inf
        %1608 = vmax.xlane.f32.xlu0 %v1607
        %v1609 = vpop.xlane.xlu0 %1608
        %v1610 = vsel %vm633, %v1598, -inf
        %1611 = vmax.xlane.f32.xlu0 %v1610
        %v1612 = vpop.xlane.xlu0 %1611
        %v1613 = vsel %vm633, %v1601, -inf
        %1614 = vmax.xlane.f32.xlu0 %v1613
        %v1615 = vpop.xlane.xlu0 %1614
        %v1616 = vsub.f32 %v1590, %v1606
        %v1617 = vsub.f32 %v1593, %v1609
        %v1618 = vsub.f32 %v1598, %v1612
        %v1619 = vsub.f32 %v1601, %v1615
        %v1620 = vmul.f32 %v1616, 1.442695
        %v1621 = vpow.pop %v1620
        %v1622 = vmul.f32 %v1617, 1.442695
        %v1623 = vpow.pop %v1622
        %v1624 = vmul.f32 %v1618, 1.442695
        %v1625 = vpow.pop %v1624
        %v1626 = vmul.f32 %v1619, 1.442695
        %v1627 = vpow.pop %v1626
        %v1628 = vsel %vm633, %v1621, 0.0
        %1629 = vadd.xlane.f32.xlu0 %v1628
        %v1630 = vpop.xlane.xlu0 %1629
        %v1631 = vsel %vm633, %v1623, 0.0
        %1632 = vadd.xlane.f32.xlu0 %v1631
        %v1633 = vpop.xlane.xlu0 %1632
        %v1634 = vsel %vm633, %v1625, 0.0
        %1635 = vadd.xlane.f32.xlu0 %v1634
        %v1636 = vpop.xlane.xlu0 %1635
        %v1637 = vsel %vm633, %v1627, 0.0
        %1638 = vadd.xlane.f32.xlu0 %v1637
        %v1639 = vpop.xlane.xlu0 %1638
        %v1640 = vrcp.pop %v1630
        %v1641 = vrcp.pop %v1633
        %v1642 = vrcp.pop %v1636
        %v1643 = vrcp.pop %v1639
        %v1644 = vmul.f32 %v1621, %v1640
        %v1645 = vmul.f32 %v1623, %v1641
        %v1646 = vmul.f32 %v1625, %v1642
        %v1647 = vmul.f32 %v1627, %v1643
        %v1648 = vpack.c.bf16 %v1645, %v1644
        %v1649 = vpack.c.bf16 %v1647, %v1646
        %1650 = vrot.lane.b32.xlu0 %v1358, 110
        %v1651 = vpop.permute.xlu0 %1650
        %1652 = vrot.lane.b32.xlu0 %v1359, 110
        %v1653 = vpop.permute.xlu0 %1652
        %v1657 = vsel %vm633, %v1648, 0
        %v1660 = vsel %vm633, %v1649, 0
        %1662 = vmatprep.subr.bf16.mxu0 0
        %1663 = vmatpush1.bf16.msra.mxu0 %v1651
        %1664 = vmatprep.subr.bf16.mxu0 0
        %1665 = vmatpush1.bf16.msra.mxu0 %v1653
        %1666 = vmatprep.subr.bf16.mxu0 0
        %1667 = vmatpush1.bf16.msra.mxu0 0
        %1668 = vmatprep.subr.bf16.mxu0 0
        %1669 = vmatpush1.bf16.msra.mxu0 0
        %1670 = vmatprep.subr.bf16.mxu0 0
        %1671 = vmatpush1.bf16.msra.mxu0 0
        %1672 = vmatprep.subr.bf16.mxu0 0
        %1673 = vmatpush1.bf16.msra.mxu0 0
        %1674 = vmatprep.subr.bf16.mxu0 0
        %1675 = vmatpush1.bf16.msra.mxu0 0
        %1676 = vmatprep.subr.bf16.mxu0 0
        %1677 = vmatpush1.bf16.msra.mxu0 0
        %1678 = vmatprep.subr.bf16.mxu0 0
        %1679 = vmatpush1.bf16.msra.mxu0 0
        %1680 = vmatprep.subr.bf16.mxu0 0
        %1681 = vmatpush1.bf16.msra.mxu0 0
        %1682 = vmatprep.subr.bf16.mxu0 0
        %1683 = vmatpush1.bf16.msra.mxu0 0
        %1684 = vmatprep.subr.bf16.mxu0 0
        %1685 = vmatpush1.bf16.msra.mxu0 0
        %1686 = vmatprep.subr.bf16.mxu0 0
        %1687 = vmatpush1.bf16.msra.mxu0 0
        %1688 = vmatprep.subr.bf16.mxu0 0
        %1689 = vmatpush1.bf16.msra.mxu0 0
        %1690 = vmatprep.subr.bf16.mxu0 0
        %1691 = vmatpush1.bf16.msra.mxu0 0
        %1692 = vmatprep.subr.bf16.mxu0 0
        %1693 = vmatpush1.bf16.msra.mxu0 0
        %1694 = vmatprep.mubr.bf16.mxu0 0
        %1695 = vmatmul.mubr.bf16.gmra.mrb[0].mxu0 %v1657
        %v1696 = vpop.f32.mrb[0].mxu0
        %v1697 = vadd.f32 0.0, %v1696
        %v1698 = vpop.f32.mrb[0].mxu0
        %v1699 = vpop.f32.mrb[0].mxu0
        %v1700 = vadd.f32 0.0, %v1699
        %v1701 = vpop.f32.mrb[0].mxu0
        %1702 = vmatprep.mubr.bf16.mxu0 0
        %1703 = vmatmul.mubr.bf16.gmra.mrb[0].mxu0 %v1660
        %v1704 = vpop.f32.mrb[0].mxu0
        %v1705 = vadd.f32 0.0, %v1704
        %v1706 = vpop.f32.mrb[0].mxu0
        %v1707 = vpop.f32.mrb[0].mxu0
        %v1708 = vadd.f32 0.0, %v1707
        %v1709 = vpop.f32.mrb[0].mxu0
        %1710 = vdwg.mxu0
        %1711 = vrot.lane.b32.xlu0 %v1358, 124
        %v1712 = vpop.permute.xlu0 %1711
        %1713 = vrot.lane.b32.xlu0 %v1359, 124
        %v1714 = vpop.permute.xlu0 %1713
        %1715 = vrot.lane.b32.xlu0 %v1358, 116
        %v1716 = vpop.permute.xlu0 %1715
        %1717 = vrot.lane.b32.xlu0 %v1359, 116
        %v1718 = vpop.permute.xlu0 %1717
        %v1720 = vsel %vm1366, %v1712, 0
        %v1723 = vsel %vm1366, %v1714, 0
        %v1726 = vsel %vm1366, %v1716, 0
        %v1729 = vsel %vm1366, %v1718, 0
        %1731 = vmatprep.subr.bf16.mxu0 0
        %1732 = vmatpush1.bf16.xpose.msra.mxu0 %v1726
        %1733 = vmatprep.subr.bf16.mxu0 0
        %1734 = vmatpush1.bf16.xpose.msra.mxu0 %v1729
        %1735 = vmatprep.subr.bf16.mxu0 0
        %1736 = vmatpush1.bf16.xpose.msra.mxu0 0
        %1737 = vmatprep.subr.bf16.mxu0 0
        %1738 = vmatpush1.bf16.xpose.msra.mxu0 0
        %1739 = vmatprep.subr.bf16.mxu0 0
        %1740 = vmatpush1.bf16.xpose.msra.mxu0 0
        %1741 = vmatprep.subr.bf16.mxu0 0
        %1742 = vmatpush1.bf16.xpose.msra.mxu0 0
        %1743 = vmatprep.subr.bf16.mxu0 0
        %1744 = vmatpush1.bf16.xpose.msra.mxu0 0
        %1745 = vmatprep.subr.bf16.mxu0 0
        %1746 = vmatpush1.bf16.xpose.msra.mxu0 0
        %1747 = vmatprep.subr.bf16.mxu0 0
        %1748 = vmatpush1.bf16.xpose.msra.mxu0 0
        %1749 = vmatprep.subr.bf16.mxu0 0
        %1750 = vmatpush1.bf16.xpose.msra.mxu0 0
        %1751 = vmatprep.subr.bf16.mxu0 0
        %1752 = vmatpush1.bf16.xpose.msra.mxu0 0
        %1753 = vmatprep.subr.bf16.mxu0 0
        %1754 = vmatpush1.bf16.xpose.msra.mxu0 0
        %1755 = vmatprep.subr.bf16.mxu0 0
        %1756 = vmatpush1.bf16.xpose.msra.mxu0 0
        %1757 = vmatprep.subr.bf16.mxu0 0
        %1758 = vmatpush1.bf16.xpose.msra.mxu0 0
        %1759 = vmatprep.subr.bf16.mxu0 0
        %1760 = vmatpush1.bf16.xpose.msra.mxu0 0
        %1761 = vmatprep.subr.bf16.mxu0 0
        %1762 = vmatpush1.bf16.xpose.msra.mxu0 0
        %1763 = vmatprep.mubr.bf16.mxu0 0
        %1764 = vmatmul.mubr.bf16.gmra.mrb[0].mxu0 %v1720
        %v1765 = vpop.f32.mrb[0].mxu0
        %v1766 = vadd.f32 0.0, %v1765
        %v1767 = vpop.f32.mrb[0].mxu0
        %v1768 = vpop.f32.mrb[0].mxu0
        %v1769 = vadd.f32 0.0, %v1768
        %v1770 = vpop.f32.mrb[0].mxu0
        %1771 = vmatprep.mubr.bf16.mxu0 0
        %1772 = vmatmul.mubr.bf16.gmra.mrb[0].mxu0 %v1723
        %v1773 = vpop.f32.mrb[0].mxu0
        %v1774 = vadd.f32 0.0, %v1773
        %v1775 = vpop.f32.mrb[0].mxu0
        %v1776 = vpop.f32.mrb[0].mxu0
        %v1777 = vadd.f32 0.0, %v1776
        %v1778 = vpop.f32.mrb[0].mxu0
        %1779 = vdwg.mxu0
        %v1780 = vsel %vm633, %v1766, -inf
        %1781 = vmax.xlane.f32.xlu0 %v1780
        %v1782 = vpop.xlane.xlu0 %1781
        %v1783 = vsel %vm633, %v1769, -inf
        %1784 = vmax.xlane.f32.xlu0 %v1783
        %v1785 = vpop.xlane.xlu0 %1784
        %v1786 = vsel %vm633, %v1774, -inf
        %1787 = vmax.xlane.f32.xlu0 %v1786
        %v1788 = vpop.xlane.xlu0 %1787
        %v1789 = vsel %vm633, %v1777, -inf
        %1790 = vmax.xlane.f32.xlu0 %v1789
        %v1791 = vpop.xlane.xlu0 %1790
        %v1792 = vsub.f32 %v1766, %v1782
        %v1793 = vsub.f32 %v1769, %v1785
        %v1794 = vsub.f32 %v1774, %v1788
        %v1795 = vsub.f32 %v1777, %v1791
        %v1796 = vmul.f32 %v1792, 1.442695
        %v1797 = vpow.pop %v1796
        %v1798 = vmul.f32 %v1793, 1.442695
        %v1799 = vpow.pop %v1798
        %v1800 = vmul.f32 %v1794, 1.442695
        %v1801 = vpow.pop %v1800
        %v1802 = vmul.f32 %v1795, 1.442695
        %v1803 = vpow.pop %v1802
        %v1804 = vsel %vm633, %v1797, 0.0
        %1805 = vadd.xlane.f32.xlu0 %v1804
        %v1806 = vpop.xlane.xlu0 %1805
        %v1807 = vsel %vm633, %v1799, 0.0
        %1808 = vadd.xlane.f32.xlu0 %v1807
        %v1809 = vpop.xlane.xlu0 %1808
        %v1810 = vsel %vm633, %v1801, 0.0
        %1811 = vadd.xlane.f32.xlu0 %v1810
        %v1812 = vpop.xlane.xlu0 %1811
        %v1813 = vsel %vm633, %v1803, 0.0
        %1814 = vadd.xlane.f32.xlu0 %v1813
        %v1815 = vpop.xlane.xlu0 %1814
        %v1816 = vrcp.pop %v1806
        %v1817 = vrcp.pop %v1809
        %v1818 = vrcp.pop %v1812
        %v1819 = vrcp.pop %v1815
        %v1820 = vmul.f32 %v1797, %v1816
        %v1821 = vmul.f32 %v1799, %v1817
        %v1822 = vmul.f32 %v1801, %v1818
        %v1823 = vmul.f32 %v1803, %v1819
        %v1824 = vpack.c.bf16 %v1821, %v1820
        %v1825 = vpack.c.bf16 %v1823, %v1822
        %1826 = vrot.lane.b32.xlu0 %v1358, 108
        %v1827 = vpop.permute.xlu0 %1826
        %1828 = vrot.lane.b32.xlu0 %v1359, 108
        %v1829 = vpop.permute.xlu0 %1828
        %v1833 = vsel %vm633, %v1824, 0
        %v1836 = vsel %vm633, %v1825, 0
        %1838 = vmatprep.subr.bf16.mxu0 0
        %1839 = vmatpush1.bf16.msra.mxu0 %v1827
        %1840 = vmatprep.subr.bf16.mxu0 0
        %1841 = vmatpush1.bf16.msra.mxu0 %v1829
        %1842 = vmatprep.subr.bf16.mxu0 0
        %1843 = vmatpush1.bf16.msra.mxu0 0
        %1844 = vmatprep.subr.bf16.mxu0 0
        %1845 = vmatpush1.bf16.msra.mxu0 0
        %1846 = vmatprep.subr.bf16.mxu0 0
        %1847 = vmatpush1.bf16.msra.mxu0 0
        %1848 = vmatprep.subr.bf16.mxu0 0
        %1849 = vmatpush1.bf16.msra.mxu0 0
        %1850 = vmatprep.subr.bf16.mxu0 0
        %1851 = vmatpush1.bf16.msra.mxu0 0
        %1852 = vmatprep.subr.bf16.mxu0 0
        %1853 = vmatpush1.bf16.msra.mxu0 0
        %1854 = vmatprep.subr.bf16.mxu0 0
        %1855 = vmatpush1.bf16.msra.mxu0 0
        %1856 = vmatprep.subr.bf16.mxu0 0
        %1857 = vmatpush1.bf16.msra.mxu0 0
        %1858 = vmatprep.subr.bf16.mxu0 0
        %1859 = vmatpush1.bf16.msra.mxu0 0
        %1860 = vmatprep.subr.bf16.mxu0 0
        %1861 = vmatpush1.bf16.msra.mxu0 0
        %1862 = vmatprep.subr.bf16.mxu0 0
        %1863 = vmatpush1.bf16.msra.mxu0 0
        %1864 = vmatprep.subr.bf16.mxu0 0
        %1865 = vmatpush1.bf16.msra.mxu0 0
        %1866 = vmatprep.subr.bf16.mxu0 0
        %1867 = vmatpush1.bf16.msra.mxu0 0
        %1868 = vmatprep.subr.bf16.mxu0 0
        %1869 = vmatpush1.bf16.msra.mxu0 0
        %1870 = vmatprep.mubr.bf16.mxu0 0
        %1871 = vmatmul.mubr.bf16.gmra.mrb[0].mxu0 %v1833
        %v1872 = vpop.f32.mrb[0].mxu0
        %v1873 = vadd.f32 0.0, %v1872
        %v1874 = vpop.f32.mrb[0].mxu0
        %v1875 = vpop.f32.mrb[0].mxu0
        %v1876 = vadd.f32 0.0, %v1875
        %v1877 = vpop.f32.mrb[0].mxu0
        %1878 = vmatprep.mubr.bf16.mxu0 0
        %1879 = vmatmul.mubr.bf16.gmra.mrb[0].mxu0 %v1836
        %v1880 = vpop.f32.mrb[0].mxu0
        %v1881 = vadd.f32 0.0, %v1880
        %v1882 = vpop.f32.mrb[0].mxu0
        %v1883 = vpop.f32.mrb[0].mxu0
        %v1884 = vadd.f32 0.0, %v1883
        %v1885 = vpop.f32.mrb[0].mxu0
        %1886 = vdwg.mxu0
        %1887 = vrot.lane.b32.xlu0 %v1358, 122
        %v1888 = vpop.permute.xlu0 %1887
        %1889 = vrot.lane.b32.xlu0 %v1359, 122
        %v1890 = vpop.permute.xlu0 %1889
        %1891 = vrot.lane.b32.xlu0 %v1358, 114
        %v1892 = vpop.permute.xlu0 %1891
        %1893 = vrot.lane.b32.xlu0 %v1359, 114
        %v1894 = vpop.permute.xlu0 %1893
        %v1896 = vsel %vm1366, %v1888, 0
        %v1899 = vsel %vm1366, %v1890, 0
        %v1902 = vsel %vm1366, %v1892, 0
        %v1905 = vsel %vm1366, %v1894, 0
        %1907 = vmatprep.subr.bf16.mxu0 0
        %1908 = vmatpush1.bf16.xpose.msra.mxu0 %v1902
        %1909 = vmatprep.subr.bf16.mxu0 0
        %1910 = vmatpush1.bf16.xpose.msra.mxu0 %v1905
        %1911 = vmatprep.subr.bf16.mxu0 0
        %1912 = vmatpush1.bf16.xpose.msra.mxu0 0
        %1913 = vmatprep.subr.bf16.mxu0 0
        %1914 = vmatpush1.bf16.xpose.msra.mxu0 0
        %1915 = vmatprep.subr.bf16.mxu0 0
        %1916 = vmatpush1.bf16.xpose.msra.mxu0 0
        %1917 = vmatprep.subr.bf16.mxu0 0
        %1918 = vmatpush1.bf16.xpose.msra.mxu0 0
        %1919 = vmatprep.subr.bf16.mxu0 0
        %1920 = vmatpush1.bf16.xpose.msra.mxu0 0
        %1921 = vmatprep.subr.bf16.mxu0 0
        %1922 = vmatpush1.bf16.xpose.msra.mxu0 0
        %1923 = vmatprep.subr.bf16.mxu0 0
        %1924 = vmatpush1.bf16.xpose.msra.mxu0 0
        %1925 = vmatprep.subr.bf16.mxu0 0
        %1926 = vmatpush1.bf16.xpose.msra.mxu0 0
        %1927 = vmatprep.subr.bf16.mxu0 0
        %1928 = vmatpush1.bf16.xpose.msra.mxu0 0
        %1929 = vmatprep.subr.bf16.mxu0 0
        %1930 = vmatpush1.bf16.xpose.msra.mxu0 0
        %1931 = vmatprep.subr.bf16.mxu0 0
        %1932 = vmatpush1.bf16.xpose.msra.mxu0 0
        %1933 = vmatprep.subr.bf16.mxu0 0
        %1934 = vmatpush1.bf16.xpose.msra.mxu0 0
        %1935 = vmatprep.subr.bf16.mxu0 0
        %1936 = vmatpush1.bf16.xpose.msra.mxu0 0
        %1937 = vmatprep.subr.bf16.mxu0 0
        %1938 = vmatpush1.bf16.xpose.msra.mxu0 0
        %1939 = vmatprep.mubr.bf16.mxu0 0
        %1940 = vmatmul.mubr.bf16.gmra.mrb[0].mxu0 %v1896
        %v1941 = vpop.f32.mrb[0].mxu0
        %v1942 = vadd.f32 0.0, %v1941
        %v1943 = vpop.f32.mrb[0].mxu0
        %v1944 = vpop.f32.mrb[0].mxu0
        %v1945 = vadd.f32 0.0, %v1944
        %v1946 = vpop.f32.mrb[0].mxu0
        %1947 = vmatprep.mubr.bf16.mxu0 0
        %1948 = vmatmul.mubr.bf16.gmra.mrb[0].mxu0 %v1899
        %v1949 = vpop.f32.mrb[0].mxu0
        %v1950 = vadd.f32 0.0, %v1949
        %v1951 = vpop.f32.mrb[0].mxu0
        %v1952 = vpop.f32.mrb[0].mxu0
        %v1953 = vadd.f32 0.0, %v1952
        %v1954 = vpop.f32.mrb[0].mxu0
        %1955 = vdwg.mxu0
        %v1956 = vsel %vm633, %v1942, -inf
        %1957 = vmax.xlane.f32.xlu0 %v1956
        %v1958 = vpop.xlane.xlu0 %1957
        %v1959 = vsel %vm633, %v1945, -inf
        %1960 = vmax.xlane.f32.xlu0 %v1959
        %v1961 = vpop.xlane.xlu0 %1960
        %v1962 = vsel %vm633, %v1950, -inf
        %1963 = vmax.xlane.f32.xlu0 %v1962
        %v1964 = vpop.xlane.xlu0 %1963
        %v1965 = vsel %vm633, %v1953, -inf
        %1966 = vmax.xlane.f32.xlu0 %v1965
        %v1967 = vpop.xlane.xlu0 %1966
        %v1968 = vsub.f32 %v1942, %v1958
        %v1969 = vsub.f32 %v1945, %v1961
        %v1970 = vsub.f32 %v1950, %v1964
        %v1971 = vsub.f32 %v1953, %v1967
        %v1972 = vmul.f32 %v1968, 1.442695
        %v1973 = vpow.pop %v1972
        %v1974 = vmul.f32 %v1969, 1.442695
        %v1975 = vpow.pop %v1974
        %v1976 = vmul.f32 %v1970, 1.442695
        %v1977 = vpow.pop %v1976
        %v1978 = vmul.f32 %v1971, 1.442695
        %v1979 = vpow.pop %v1978
        %v1980 = vsel %vm633, %v1973, 0.0
        %1981 = vadd.xlane.f32.xlu0 %v1980
        %v1982 = vpop.xlane.xlu0 %1981
        %v1983 = vsel %vm633, %v1975, 0.0
        %1984 = vadd.xlane.f32.xlu0 %v1983
        %v1985 = vpop.xlane.xlu0 %1984
        %v1986 = vsel %vm633, %v1977, 0.0
        %1987 = vadd.xlane.f32.xlu0 %v1986
        %v1988 = vpop.xlane.xlu0 %1987
        %v1989 = vsel %vm633, %v1979, 0.0
        %1990 = vadd.xlane.f32.xlu0 %v1989
        %v1991 = vpop.xlane.xlu0 %1990
        %v1992 = vrcp.pop %v1982
        %v1993 = vrcp.pop %v1985
        %v1994 = vrcp.pop %v1988
        %v1995 = vrcp.pop %v1991
        %v1996 = vmul.f32 %v1973, %v1992
        %v1997 = vmul.f32 %v1975, %v1993
        %v1998 = vmul.f32 %v1977, %v1994
        %v1999 = vmul.f32 %v1979, %v1995
        %v2000 = vpack.c.bf16 %v1997, %v1996
        %v2001 = vpack.c.bf16 %v1999, %v1998
        %2002 = vrot.lane.b32.xlu0 %v1358, 106
        %v2003 = vpop.permute.xlu0 %2002
        %2004 = vrot.lane.b32.xlu0 %v1359, 106
        %v2005 = vpop.permute.xlu0 %2004
        %v2009 = vsel %vm633, %v2000, 0
        %v2012 = vsel %vm633, %v2001, 0
        %2014 = vmatprep.subr.bf16.mxu0 0
        %2015 = vmatpush1.bf16.msra.mxu0 %v2003
        %2016 = vmatprep.subr.bf16.mxu0 0
        %2017 = vmatpush1.bf16.msra.mxu0 %v2005
        %2018 = vmatprep.subr.bf16.mxu0 0
        %2019 = vmatpush1.bf16.msra.mxu0 0
        %2020 = vmatprep.subr.bf16.mxu0 0
        %2021 = vmatpush1.bf16.msra.mxu0 0
        %2022 = vmatprep.subr.bf16.mxu0 0
        %2023 = vmatpush1.bf16.msra.mxu0 0
        %2024 = vmatprep.subr.bf16.mxu0 0
        %2025 = vmatpush1.bf16.msra.mxu0 0
        %2026 = vmatprep.subr.bf16.mxu0 0
        %2027 = vmatpush1.bf16.msra.mxu0 0
        %2028 = vmatprep.subr.bf16.mxu0 0
        %2029 = vmatpush1.bf16.msra.mxu0 0
        %2030 = vmatprep.subr.bf16.mxu0 0
        %2031 = vmatpush1.bf16.msra.mxu0 0
        %2032 = vmatprep.subr.bf16.mxu0 0
        %2033 = vmatpush1.bf16.msra.mxu0 0
        %2034 = vmatprep.subr.bf16.mxu0 0
        %2035 = vmatpush1.bf16.msra.mxu0 0
        %2036 = vmatprep.subr.bf16.mxu0 0
        %2037 = vmatpush1.bf16.msra.mxu0 0
        %2038 = vmatprep.subr.bf16.mxu0 0
        %2039 = vmatpush1.bf16.msra.mxu0 0
        %2040 = vmatprep.subr.bf16.mxu0 0
        %2041 = vmatpush1.bf16.msra.mxu0 0
        %2042 = vmatprep.subr.bf16.mxu0 0
        %2043 = vmatpush1.bf16.msra.mxu0 0
        %2044 = vmatprep.subr.bf16.mxu0 0
        %2045 = vmatpush1.bf16.msra.mxu0 0
        %2046 = vmatprep.mubr.bf16.mxu0 0
        %2047 = vmatmul.mubr.bf16.gmra.mrb[0].mxu0 %v2009
        %v2048 = vpop.f32.mrb[0].mxu0
        %v2049 = vadd.f32 0.0, %v2048
        %v2050 = vpop.f32.mrb[0].mxu0
        %v2051 = vpop.f32.mrb[0].mxu0
        %v2052 = vadd.f32 0.0, %v2051
        %v2053 = vpop.f32.mrb[0].mxu0
        %2054 = vmatprep.mubr.bf16.mxu0 0
        %2055 = vmatmul.mubr.bf16.gmra.mrb[0].mxu0 %v2012
        %v2056 = vpop.f32.mrb[0].mxu0
        %v2057 = vadd.f32 0.0, %v2056
        %v2058 = vpop.f32.mrb[0].mxu0
        %v2059 = vpop.f32.mrb[0].mxu0
        %v2060 = vadd.f32 0.0, %v2059
        %v2061 = vpop.f32.mrb[0].mxu0
        %2062 = vdwg.mxu0
        %2067 = vrot.lane.b32.xlu0 %v1697, 2
        %v2068 = vpop.permute.xlu0 %2067
        %2069 = vrot.lane.b32.xlu0 %v1700, 2
        %v2070 = vpop.permute.xlu0 %2069
        %2071 = vrot.lane.b32.xlu0 %v1705, 2
        %v2072 = vpop.permute.xlu0 %2071
        %2073 = vrot.lane.b32.xlu0 %v1708, 2
        %v2074 = vpop.permute.xlu0 %2073
        %2083 = vrot.lane.b32.xlu0 %v1873, 4
        %v2084 = vpop.permute.xlu0 %2083
        %2085 = vrot.lane.b32.xlu0 %v1876, 4
        %v2086 = vpop.permute.xlu0 %2085
        %2087 = vrot.lane.b32.xlu0 %v1881, 4
        %v2088 = vpop.permute.xlu0 %2087
        %2089 = vrot.lane.b32.xlu0 %v1884, 4
        %v2090 = vpop.permute.xlu0 %2089
        %2099 = vrot.lane.b32.xlu0 %v2049, 6
        %v2100 = vpop.permute.xlu0 %2099
        %2101 = vrot.lane.b32.xlu0 %v2052, 6
        %v2102 = vpop.permute.xlu0 %2101
        %2103 = vrot.lane.b32.xlu0 %v2057, 6
        %v2104 = vpop.permute.xlu0 %2103
        %2105 = vrot.lane.b32.xlu0 %v2060, 6
        %v2106 = vpop.permute.xlu0 %2105
        %v2111 = vsel %vm1366, %v1521, %v2068
        %v2112 = vsel %vm1366, %v1524, %v2070
        %v2113 = vsel %vm1366, %v1529, %v2072
        %v2114 = vsel %vm1366, %v1532, %v2074
        %vm2115 = vcmask 31744
        %v2116 = vsel %vm2115, %v2111, %v2084
        %v2117 = vsel %vm2115, %v2112, %v2086
        %v2118 = vsel %vm2115, %v2113, %v2088
        %v2119 = vsel %vm2115, %v2114, %v2090
        %vm2120 = vcmask 48128
        %v2121 = vsel %vm2120, %v2116, %v2100
        %v2122 = vsel %vm2120, %v2117, %v2102
        %v2123 = vsel %vm2120, %v2118, %v2104
        %v2124 = vsel %vm2120, %v2119, %v2106
        %v2125 = vpack.c.bf16 %v2122, %v2121
        %v2126 = vpack.c.bf16 %v2124, %v2123
        %v2128 = vunpack.c.l.b16 %v631
        %v2129 = vpack.c.b16 %v2128, %v2128
        %2130 = vrot.lane.b32.xlu0 %v2129, 104
        %v2131 = vpop.permute.xlu0 %2130
        %2132 = vrot.lane.b32.xlu0 %v1298, 104
        %v2133 = vpop.permute.xlu0 %2132
        %v2136 = vsel %vm726, %v2125, 0
        %v2139 = vsel %vm726, %v2126, 0
        %v2142 = vsel %vm790, %v2131, 0
        %2144 = vmatprep.subr.bf16.mxu0 0
        %2145 = vmatpush1.bf16.msra.mxu0 %v2142
        %2146 = vmatprep.subr.bf16.mxu0 0
        %2147 = vmatpush1.bf16.msra.mxu0 0
        %2148 = vmatprep.subr.bf16.mxu0 0
        %2149 = vmatpush1.bf16.msra.mxu0 0
        %2150 = vmatprep.subr.bf16.mxu0 0
        %2151 = vmatpush1.bf16.msra.mxu0 0
        %2152 = vmatprep.subr.bf16.mxu0 0
        %2153 = vmatpush1.bf16.msra.mxu0 0
        %2154 = vmatprep.subr.bf16.mxu0 0
        %2155 = vmatpush1.bf16.msra.mxu0 0
        %2156 = vmatprep.subr.bf16.mxu0 0
        %2157 = vmatpush1.bf16.msra.mxu0 0
        %2158 = vmatprep.subr.bf16.mxu0 0
        %2159 = vmatpush1.bf16.msra.mxu0 0
        %2160 = vmatprep.subr.bf16.mxu0 0
        %2161 = vmatpush1.bf16.msra.mxu0 0
        %2162 = vmatprep.subr.bf16.mxu0 0
        %2163 = vmatpush1.bf16.msra.mxu0 0
        %2164 = vmatprep.subr.bf16.mxu0 0
        %2165 = vmatpush1.bf16.msra.mxu0 0
        %2166 = vmatprep.subr.bf16.mxu0 0
        %2167 = vmatpush1.bf16.msra.mxu0 0
        %2168 = vmatprep.subr.bf16.mxu0 0
        %2169 = vmatpush1.bf16.msra.mxu0 0
        %2170 = vmatprep.subr.bf16.mxu0 0
        %2171 = vmatpush1.bf16.msra.mxu0 0
        %2172 = vmatprep.subr.bf16.mxu0 0
        %2173 = vmatpush1.bf16.msra.mxu0 0
        %2174 = vmatprep.subr.bf16.mxu0 0
        %2175 = vmatpush1.bf16.msra.mxu0 0
        %2176 = vmatprep.mubr.bf16.mxu0 0
        %2177 = vmatmul.mubr.bf16.gmra.mrb[0].mxu0 %v2136
        %v2178 = vpop.f32.mrb[0].mxu0
        %v2179 = vadd.f32 %v2133, %v2178
        %v2180 = vpop.f32.mrb[0].mxu0
        %v2181 = vpop.f32.mrb[0].mxu0
        %v2182 = vadd.f32 %v2133, %v2181
        %v2183 = vpop.f32.mrb[0].mxu0
        %2184 = vmatprep.mubr.bf16.mxu0 0
        %2185 = vmatmul.mubr.bf16.gmra.mrb[0].mxu0 %v2139
        %v2186 = vpop.f32.mrb[0].mxu0
        %v2187 = vadd.f32 %v2133, %v2186
        %v2188 = vpop.f32.mrb[0].mxu0
        %v2189 = vpop.f32.mrb[0].mxu0
        %v2190 = vadd.f32 %v2133, %v2189
        %v2191 = vpop.f32.mrb[0].mxu0
        %2192 = vdwg.mxu0
        %2193 = vxpose.xlu0.b32.start [1/16] %v2179, 128
        %2194 = vxpose.xlu0.b32.cont [2/16] %v2182, 128
        %2195 = vxpose.xlu0.b32.cont [3/16] %v2187, 128
        %2196 = vxpose.xlu0.b32.cont [4/16] %v2190, 128
        %2197 = vxpose.xlu0.b32.cont [5/16] 0.0, 128
        %2198 = vxpose.xlu0.b32.cont [6/16] 0.0, 128
        %2199 = vxpose.xlu0.b32.cont [7/16] 0.0, 128
        %2200 = vxpose.xlu0.b32.cont [8/16] 0.0, 128
        %2201 = vxpose.xlu0.b32.cont [9/16] 0.0, 128
        %2202 = vxpose.xlu0.b32.cont [10/16] 0.0, 128
        %2203 = vxpose.xlu0.b32.cont [11/16] 0.0, 128
        %2204 = vxpose.xlu0.b32.cont [12/16] 0.0, 128
        %2205 = vxpose.xlu0.b32.cont [13/16] 0.0, 128
        %2206 = vxpose.xlu0.b32.cont [14/16] 0.0, 128
        %2207 = vxpose.xlu0.b32.cont [15/16] 0.0, 128
        %2208 = vxpose.xlu0.b32.end [16/16] 0.0, 128
        %v2209 = vpop.trf.xlu0
        %v2210 = vpop.trf.xlu0
        %v2211 = vpop.trf.xlu0
        %v2212 = vpop.trf.xlu0
        %v2213 = vpop.trf.xlu0
        %v2214 = vpop.trf.xlu0
        %v2215 = vpop.trf.xlu0
        %v2216 = vpop.trf.xlu0
        %v2217 = vpop.trf.xlu0
        %v2218 = vpop.trf.xlu0
        %v2219 = vpop.trf.xlu0
        %v2220 = vpop.trf.xlu0
        %v2221 = vpop.trf.xlu0
        %v2222 = vpop.trf.xlu0
        %v2223 = vpop.trf.xlu0
        %v2224 = vpop.trf.xlu0
        %v2225 = vadd.f32 %v1234, %v2209
        %v2226 = vsel %vm633, %v2225, 0.0
        %2227 = vadd.xlane.f32.xlu0 %v2226
        %v2228 = vpop.xlane.xlu0 %2227
        %v2229 = vrot.slane %v2228, 4
        %v2230 = vadd.f32 %v2228, %v2229
        %v2231 = vrot.slane %v2230, 2
        %v2232 = vadd.f32 %v2230, %v2231
        %v2233 = vrot.slane %v2232, 1
        %v2234 = vadd.f32 %v2232, %v2233
        %v2235 = vmul.f32 %v2234, %v643
        %v2236 = vsub.f32 %v2225, %v2235
        %v2237 = vmul.f32 %v2236, %v2236
        %v2238 = vsel %vm633, %v2237, 0.0
        %2239 = vadd.xlane.f32.xlu0 %v2238
        %v2240 = vpop.xlane.xlu0 %2239
        %v2241 = vrot.slane %v2240, 4
        %v2242 = vadd.f32 %v2240, %v2241
        %v2243 = vrot.slane %v2242, 2
        %v2244 = vadd.f32 %v2242, %v2243
        %v2245 = vrot.slane %v2244, 1
        %v2246 = vadd.f32 %v2244, %v2245
        %v2247 = vmul.f32 %v2246, %v643
        %v2248 = vadd.f32 %v2247, 1e-05
        %v2249 = vrsqrt.pop %v2248
        %v2250 = vmul.f32 %v2236, %v2249
        %v2251 = vpack.c.bf16 %v2250, %v2250
        %v2253 = vlaneseq
        %v2254 = vshrl.u32 %v2253, 7
        %v2255 = vsub.s32 0, %v2254
        %v2256 = vrot.slane %v630, %v2255
        %v2262 = vunpack.c.l.b16 %v625
        %v2263 = vunpack.c.l.b16 %v626
        %v2264 = vunpack.c.l.b16 %v627
        %v2265 = vunpack.c.l.b16 %v628
        %v2266 = vpack.c.b16 %v2263, %v2262
        %v2267 = vpack.c.b16 %v2265, %v2264
        %v2271 = vsel %vm633, %v2251, 0
        %2273 = vmatprep.subr.bf16.mxu0 0
        %2274 = vmatpush1.bf16.msra.mxu0 %v2266
        %2275 = vmatprep.subr.bf16.mxu0 0
        %2276 = vmatpush1.bf16.msra.mxu0 %v2267
        %2277 = vmatprep.subr.bf16.mxu0 0
        %2278 = vmatpush1.bf16.msra.mxu0 0
        %2279 = vmatprep.subr.bf16.mxu0 0
        %2280 = vmatpush1.bf16.msra.mxu0 0
        %2281 = vmatprep.subr.bf16.mxu0 0
        %2282 = vmatpush1.bf16.msra.mxu0 0
        %2283 = vmatprep.subr.bf16.mxu0 0
        %2284 = vmatpush1.bf16.msra.mxu0 0
        %2285 = vmatprep.subr.bf16.mxu0 0
        %2286 = vmatpush1.bf16.msra.mxu0 0
        %2287 = vmatprep.subr.bf16.mxu0 0
        %2288 = vmatpush1.bf16.msra.mxu0 0
        %2289 = vmatprep.subr.bf16.mxu0 0
        %2290 = vmatpush1.bf16.msra.mxu0 0
        %2291 = vmatprep.subr.bf16.mxu0 0
        %2292 = vmatpush1.bf16.msra.mxu0 0
        %2293 = vmatprep.subr.bf16.mxu0 0
        %2294 = vmatpush1.bf16.msra.mxu0 0
        %2295 = vmatprep.subr.bf16.mxu0 0
        %2296 = vmatpush1.bf16.msra.mxu0 0
        %2297 = vmatprep.subr.bf16.mxu0 0
        %2298 = vmatpush1.bf16.msra.mxu0 0
        %2299 = vmatprep.subr.bf16.mxu0 0
        %2300 = vmatpush1.bf16.msra.mxu0 0
        %2301 = vmatprep.subr.bf16.mxu0 0
        %2302 = vmatpush1.bf16.msra.mxu0 0
        %2303 = vmatprep.subr.bf16.mxu0 0
        %2304 = vmatpush1.bf16.msra.mxu0 0
        %2305 = vmatprep.mubr.bf16.mxu0 0
        %2306 = vmatmul.mubr.bf16.gmra.mrb[0].mxu0 %v2271
        %v2307 = vpop.f32.mrb[0].mxu0
        %v2308 = vadd.f32 %v2256, %v2307
        %v2309 = vpop.f32.mrb[0].mxu0
        %v2310 = vpop.f32.mrb[0].mxu0
        %v2311 = vpop.f32.mrb[0].mxu0
        %2312 = vdwg.mxu0
        %v2313 = vmul.f32 %v2308, 0.70710677
        %v2314 = vand.u32 2147483647, %v2313
        %v2315 = vmul.f32 %v2314, 0.3275911
        %v2316 = vadd.f32 %v2315, 1.0
        %v2317 = vrcp.pop %v2316
        %v2318 = vmul.f32 1.0, %v2317
        %v2319 = vmul.f32 %v2318, 1.0614054
        %v2320 = vadd.f32 %v2319, -1.4531521
        %v2321 = vmul.f32 %v2318, %v2320
        %v2322 = vadd.f32 %v2321, 1.4214138
        %v2323 = vmul.f32 %v2318, %v2322
        %v2324 = vadd.f32 %v2323, -0.28449672
        %v2325 = vmul.f32 %v2318, %v2324
        %v2326 = vadd.f32 %v2325, 0.2548296
        %v2327 = vmul.f32 %v2318, %v2326
        %v2328 = vsub.f32 0.0, %v2314
        %v2329 = vmul.f32 %v2328, %v2314
        %v2330 = vmul.f32 %v2329, 1.442695
        %v2331 = vpow.pop %v2330
        %v2332 = vmul.f32 %v2327, %v2331
        %v2333 = vsub.f32 1.0, %v2332
        %vm2334 = vcmp.lt.f32.partialorder %v2313, 0.0
        %v2335 = vsub.f32 0.0, %v2333
        %v2336 = vsel %vm2334, %v2335, %v2333
        %v2337 = vmul.f32 %v2308, 0.5
        %v2338 = vadd.f32 %v2336, 1.0
        %v2339 = vmul.f32 %v2337, %v2338
        %v2340 = vadd.f32 %v2225, %v2339
        %2341 = vst.msk [vmem:[#allocation2] sm:$0xff] %vm633, %v2340
        %p2342 = scmp.eq.s32.totalorder %s31, 1
        // Predicated region
        $region81: #{tpu_custom_call.1} parent=59 // pred_check
          %p2343 = pneg %p2342
        $region82: #{tpu_custom_call.1} parent=59 // pred_check_branch
          %2345 = sbr.rel (%p2343) target = $region84
        $region83: #{tpu_custom_call.1} parent=59 // pred_region
          %v2346 = vld [vmem:[%s8] sm:$0xf]
          %v2347 = vld [vmem:[%s8 + $0x4] sm:$0xf]
          %v2348 = vld [vmem:[%s8 + $0x8] sm:$0xf]
          %v2349 = vld [vmem:[%s8 + $0xc] sm:$0xf]
          %v2350 = vpack.c.bf16 %v2340, %v2340
          %v2351 = vld [vmem:[%s9] sm:$0x1]
          %v2353 = vlaneseq
          %v2354 = vshrl.u32 %v2353, 7
          %v2355 = vsub.s32 0, %v2354
          %v2356 = vrot.slane %v2351, %v2355
          %v2362 = vunpack.c.l.b16 %v2346
          %v2363 = vunpack.c.l.b16 %v2347
          %v2364 = vunpack.c.l.b16 %v2348
          %v2365 = vunpack.c.l.b16 %v2349
          %v2366 = vpack.c.b16 %v2363, %v2362
          %v2367 = vpack.c.b16 %v2365, %v2364
          %v2371 = vsel %vm633, %v2350, 0
          %2373 = vmatprep.subr.bf16.mxu0 0
          %2374 = vmatpush1.bf16.msra.mxu0 %v2366
          %2375 = vmatprep.subr.bf16.mxu0 0
          %2376 = vmatpush1.bf16.msra.mxu0 %v2367
          %2377 = vmatprep.subr.bf16.mxu0 0
          %2378 = vmatpush1.bf16.msra.mxu0 0
          %2379 = vmatprep.subr.bf16.mxu0 0
          %2380 = vmatpush1.bf16.msra.mxu0 0
          %2381 = vmatprep.subr.bf16.mxu0 0
          %2382 = vmatpush1.bf16.msra.mxu0 0
          %2383 = vmatprep.subr.bf16.mxu0 0
          %2384 = vmatpush1.bf16.msra.mxu0 0
          %2385 = vmatprep.subr.bf16.mxu0 0
          %2386 = vmatpush1.bf16.msra.mxu0 0
          %2387 = vmatprep.subr.bf16.mxu0 0
          %2388 = vmatpush1.bf16.msra.mxu0 0
          %2389 = vmatprep.subr.bf16.mxu0 0
          %2390 = vmatpush1.bf16.msra.mxu0 0
          %2391 = vmatprep.subr.bf16.mxu0 0
          %2392 = vmatpush1.bf16.msra.mxu0 0
          %2393 = vmatprep.subr.bf16.mxu0 0
          %2394 = vmatpush1.bf16.msra.mxu0 0
          %2395 = vmatprep.subr.bf16.mxu0 0
          %2396 = vmatpush1.bf16.msra.mxu0 0
          %2397 = vmatprep.subr.bf16.mxu0 0
          %2398 = vmatpush1.bf16.msra.mxu0 0
          %2399 = vmatprep.subr.bf16.mxu0 0
          %2400 = vmatpush1.bf16.msra.mxu0 0
          %2401 = vmatprep.subr.bf16.mxu0 0
          %2402 = vmatpush1.bf16.msra.mxu0 0
          %2403 = vmatprep.subr.bf16.mxu0 0
          %2404 = vmatpush1.bf16.msra.mxu0 0
          %2405 = vmatprep.mubr.bf16.mxu0 0
          %2406 = vmatmul.mubr.bf16.gmra.mrb[0].mxu0 %v2371
          %v2407 = vpop.f32.mrb[0].mxu0
          %v2408 = vadd.f32 %v2356, %v2407
          %v2409 = vpop.f32.mrb[0].mxu0
          %v2410 = vpop.f32.mrb[0].mxu0
          %v2411 = vpop.f32.mrb[0].mxu0
          %2412 = vdwg.mxu0
          %2413 = vst.msk [vmem:[%s486] sm:$0xff] %vm1177, %v2408
        $region84: #{tpu_custom_call.1} parent=59 // pred_fallthru
          _
        %s2414 = sand.u32 %s281, 1
        %s2415 = scalar_lea.sflag [#allocation5], %s2414
        %s2416 = sand.u32 %s281, 1
        %s2417 = smul.addr %s2416, 8
        %s2418 = scalar_lea.vmem [#allocation10], %s2417
        // Predicated region
        $region85: #{tpu_custom_call.1} parent=59 // pred_check
          %p2419 = pneg %p291
        $region86: #{tpu_custom_call.1} parent=59 // pred_check_branch
          %2421 = sbr.rel (%p2419) target = $region88
        $region87: #{tpu_custom_call.1} parent=59 // pred_region
          %s2423 = ssub.s32 128, 128
          %2424 = vsyncadd %s2415, %s2423
          %s2425 = smul.addr %s30, 128
          %s2426 = scalar_lea.hbm %s10, %s2425
          %s2428 = sshll.u32 %s2418, 4
          %s2429 = int_to_ptr.vmem [resolvable:$true] %s2428
          %2431 = dma.vmem_to_hbm [thread:$0]  %s2429, 128, %s2426, %s2415
        $region88: #{tpu_custom_call.1} parent=59 // pred_fallthru
          _
      $region60: #{tpu_custom_call.1} parent=5 // pred_fallthru
        _
      %p2432 = scmp.le.s32.totalorder 2, %s21
      // Predicated region
      $region89: #{tpu_custom_call.1} parent=5 // pred_check
        %p2433 = pneg %p2432
      $region90: #{tpu_custom_call.1} parent=5 // pred_check_branch
        %2435 = sbr.rel (%p2433) target = $region92
      $region91: #{tpu_custom_call.1} parent=5 // pred_region
        %s2436 = ssub.s32 %s21, 2
        // Predicated region
        $region93: #{tpu_custom_call.1} parent=91 // pred_check
          %p2437 = pneg %p297
        $region94: #{tpu_custom_call.1} parent=91 // pred_check_branch
          %2439 = sbr.rel (%p2437) target = $region96
        $region95: #{tpu_custom_call.1} parent=91 // pred_region
          %s2440 = sand.u32 %s282, 1
          %s2441 = scalar_lea.sflag [#allocation5], %s2440
          %s2442 = sand.u32 %s282, 1
          %s2443 = smul.addr %s2442, 8
          %s2444 = scalar_lea.vmem [#allocation10], %s2443
          %2445 = dma.done %s2441, 128
        $region96: #{tpu_custom_call.1} parent=91 // pred_fallthru
          _
      $region92: #{tpu_custom_call.1} parent=5 // pred_fallthru
        _
    $region6: #{tpu_custom_call.1} parent=1 // loop_footer
      %s25 = sadd.s32 1, %s21
    $region7: #{tpu_custom_call.1} parent=1 // loop_footer_branch
      %20 = sbr.rel target = $region3
    $region8: #{tpu_custom_call.1} parent=1 // loop_exit
      _
    %2446 = vsyncpa [#allocation4], 1
    %s2447 = scalar_lea.sflag [#allocation4], 1
    %2448 = vsyncpa %s2447, 1
    %2449 = vsyncpa [#allocation7], 1
    %2450 = vsyncpa [#allocation5], 1
    %s2451 = scalar_lea.sflag [#allocation5], 1
    %2452 = vsyncpa %s2451, 1

</llo_original>
